<compile_context>
chip_gen: v7x
topology: tpu7x:2x2x1
jax: 0.10.0
libtpu: 0.0.40
codegen_flags: <defaults>
</compile_context>

<pallas_src>
import functools

import jax
import jax.numpy as jnp
from jax.experimental import pallas as pl
from jax.experimental.pallas import tpu as pltpu


# ----------------------------------------------------------------------------
# Pallas kernel: one full BERT encoder layer for a tile of Bt batch elements.
# ----------------------------------------------------------------------------
def encoder_layer_kernel(
    x_ref, mask_ref,
    wq_ref, bq_ref, wk_ref, bk_ref, wv_ref, bv_ref,
    wo_ref, bo_ref,
    g1_ref, be1_ref,
    w1_ref, bf1_ref, w2_ref, bf2_ref,
    g2_ref, be2_ref,
    *out_and_scratch,
    bt, n_head, d_head, eps, store_attn,
):
    if store_attn:
        out_ref, attn_ref, merge_ref = out_and_scratch
    else:
        out_ref, merge_ref = out_and_scratch
        attn_ref = None

    S = x_ref.shape[1]
    D = x_ref.shape[2]
    rows = bt * S                 # batch fused into the matmul M dimension
    n = bt * n_head               # batched-attention "batch" dim (b-major)

    # (Bt, S, D) -> (Bt*S, D); keep the f32 copy for residuals / LayerNorm.
    x2 = x_ref[...].reshape(rows, D)
    xb = x2.astype(jnp.bfloat16)

    # --- QKV projections: large MXU matmuls, bf16 operands, f32 accumulation.
    #     (1/sqrt(d_head) is already folded into wq/bq by the wrapper.)
    q = (jnp.dot(xb, wq_ref[...], preferred_element_type=jnp.float32)
         + bq_ref[...]).astype(jnp.bfloat16)
    k = (jnp.dot(xb, wk_ref[...], preferred_element_type=jnp.float32)
         + bk_ref[...]).astype(jnp.bfloat16)
    v = (jnp.dot(xb, wv_ref[...], preferred_element_type=jnp.float32)
         + bv_ref[...]).astype(jnp.bfloat16)

    # --- one head-major relayout per tensor (static lane slices + major-axis
    #     stack, done on bf16 so half the bytes move): (rows, H*dh) ->
    #     (Bt*H, S, dh).  Keeping a single batch dim lets the attention run as
    #     3D batched contractions, which lower reliably on Mosaic.
    def split_heads(t):
        parts = [
            t[:, h * d_head:(h + 1) * d_head].reshape(bt, S, d_head)
            for h in range(n_head)
        ]
        return jnp.stack(parts, axis=1).reshape(n, S, d_head)

    qh = split_heads(q)
    kh = split_heads(k)
    vh = split_heads(v)

    # --- batched scaled dot-product attention over all (batch, head) pairs ---
    scores = jnp.einsum('nqd,nkd->nqk', qh, kh,
                        preferred_element_type=jnp.float32)        # (n, S, S)

    # key-padding bias (-1e9 at padded keys, +BIG elsewhere), broadcast only
    # over the head axis (bt*H*S floats) and applied with a single min():
    # exact masked_fill(-1e9) semantics, one VPU op per score, no full-mask
    # materialization.
    bias = jnp.broadcast_to(
        mask_ref[...].reshape(bt, 1, 1, S), (bt, n_head, 1, S)
    ).reshape(n, 1, S)
    scores = jnp.minimum(scores, bias)

    s_max = jnp.max(scores, axis=-1, keepdims=True)
    e = jnp.exp(scores - s_max)
    denom = jnp.sum(e, axis=-1, keepdims=True)
    inv = pl.reciprocal(denom, approx=True)        # EUP slot, ~free

    if store_attn:
        p = e * inv
        # single lane-dense store of all heads' attention probabilities
        attn_ref[...] = p.reshape(bt, n_head, S, S).astype(attn_ref.dtype)
        ctx = jnp.einsum('nqk,nkd->nqd', p.astype(jnp.bfloat16), vh,
                         preferred_element_type=jnp.float32)       # (n, S, dh)
    else:
        # normalize after the PV matmul: the multiply touches (n, S, d_head)
        # instead of (n, S, S)  (~S/d_head fewer VPU multiplies).
        ctx = jnp.einsum('nqk,nkd->nqd', e.astype(jnp.bfloat16), vh,
                         preferred_element_type=jnp.float32) * inv

    # --- output projection: merge heads back to (rows, H*dh) through a small
    #     bf16 VMEM scratch (one relayout), then a SINGLE full-depth MXU
    #     matmul with W_O (K = H*d_head) - no per-head matmuls, no head-sum,
    #     no (H, rows, D) intermediate.
    ctx4 = ctx.reshape(bt, n_head, S, d_head)
    for h in range(n_head):
        merge_ref[:, h * d_head:(h + 1) * d_head] = (
            ctx4[:, h, :, :].reshape(rows, d_head).astype(jnp.bfloat16))
    att_out = (jnp.dot(merge_ref[...], wo_ref[...],
                       preferred_element_type=jnp.float32) + bo_ref[...])

    # --- residual + LayerNorm 1 (f32 statistics) ---
    h1 = att_out + x2
    mu1 = jnp.mean(h1, axis=-1, keepdims=True)
    var1 = jnp.mean((h1 - mu1) ** 2, axis=-1, keepdims=True)
    ln1 = (h1 - mu1) * jax.lax.rsqrt(var1 + eps) * g1_ref[...] + be1_ref[...]

    # --- position-wise feed-forward (bf16 operands, f32 accumulation) ---
    # For BERT-base on v7x, W1/W2 should additionally be streamed over d_ff
    # tiles (pltpu.emit_pipeline) instead of staying fully resident.
    f = (jnp.dot(ln1.astype(jnp.bfloat16), w1_ref[...],
                 preferred_element_type=jnp.float32) + bf1_ref[...])
    f = jnp.maximum(f, 0.0)                                          # ReLU
    f = (jnp.dot(f.astype(jnp.bfloat16), w2_ref[...],
                 preferred_element_type=jnp.float32) + bf2_ref[...])

    # --- residual + LayerNorm 2 ---
    h2 = f + ln1
    mu2 = jnp.mean(h2, axis=-1, keepdims=True)
    var2 = jnp.mean((h2 - mu2) ** 2, axis=-1, keepdims=True)
    ln2 = (h2 - mu2) * jax.lax.rsqrt(var2 + eps) * g2_ref[...] + be2_ref[...]

    out_ref[...] = ln2.reshape(bt, S, D)


# ----------------------------------------------------------------------------
# Generation-aware sizing helpers.
# ----------------------------------------------------------------------------
def _vmem_capacity_bytes():
    try:
        return int(pltpu.get_tpu_info().vmem_capacity_bytes)
    except Exception:
        return 64 << 20          # conservative (v7x-sized) fallback


def _mxu_target_rows():
    # v5e has a 128x128 MXU (128 rows fill it); v6e/v7x want >= 256 rows.
    try:
        kind = jax.devices()[0].device_kind.lower()
        if "v5 lite" in kind or "v5lite" in kind or "v5e" in kind:
            return 128
    except Exception:
        pass
    return 256


def _pick_batch_tile(batch, seq, target_rows):
    """Smallest divisor Bt of `batch` with Bt*seq >= target_rows, while always
    keeping >= 2 grid steps so both v7x TensorCores get work."""
    if batch <= 1:
        return batch
    best = 1
    for bt in range(1, batch // 2 + 1):
        if batch % bt == 0:
            best = bt
            if bt * seq >= target_rows:
                return bt
    return best


# ----------------------------------------------------------------------------
# Wrapper: one encoder layer over the full batch (grid over batch tiles).
# ----------------------------------------------------------------------------
def encoder_layer(x, mask_bias, p, *, n_head, d_head, eps,
                  attn_dtype=jnp.float32):
    B, S, D = x.shape
    HD = n_head * d_head
    d_ff = p["w1"].shape[1]
    Bt = _pick_batch_tile(B, S, _mxu_target_rows())
    grid = (B // Bt,)
    rows = Bt * S
    store_attn = attn_dtype is not None

    bf16 = jnp.bfloat16
    scale = 1.0 / (float(d_head) ** 0.5)
    # fold the attention scale into W_Q / b_Q; bf16 weights for the MXU,
    # biases / LayerNorm parameters stay f32 (added after f32 accumulation).
    wq = (p["wq"] * scale).astype(bf16)
    bq = (p["bq"] * scale).astype(jnp.float32)
    wk = p["wk"].astype(bf16); bk = p["bk"]
    wv = p["wv"].astype(bf16); bv = p["bv"]
    wo = p["wo"].astype(bf16); bo = p["bo"]
    w1 = p["w1"].astype(bf16); b1 = p["b1"]
    w2 = p["w2"].astype(bf16); b2 = p["b2"]
    g1, be1 = p["ln1_g"], p["ln1_b"]
    g2, be2 = p["ln2_g"], p["ln2_b"]
    weight_arrays = [wq, bq, wk, bk, wv, bv, wo, bo, g1, be1,
                     w1, b1, w2, b2, g2, be2]

    kernel = functools.partial(
        encoder_layer_kernel, bt=Bt, n_head=n_head, d_head=d_head, eps=eps,
        store_attn=store_attn)

    def make_in_specs(single_buffer_weights):
        def wspec(shape):
            zeros = (0,) * len(shape)
            kwargs = {}
            if single_buffer_weights:
                # grid-invariant weights: no benefit from double buffering.
                kwargs["pipeline_mode"] = pl.Buffered(1)
            return pl.BlockSpec(shape, lambda b, _z=zeros: _z, **kwargs)

        return [
            pl.BlockSpec((Bt, S, D), lambda b: (b, 0, 0)),      # x
            pl.BlockSpec((Bt, 1, S), lambda b: (b, 0, 0)),      # key-pad bias
            wspec((D, HD)), wspec((1, HD)),                     # W_Q (scaled), b_Q
            wspec((D, HD)), wspec((1, HD)),                     # W_K, b_K
            wspec((D, HD)), wspec((1, HD)),                     # W_V, b_V
            wspec((HD, D)), wspec((1, D)),                      # W_O, b_O
            wspec((1, D)), wspec((1, D)),                       # LN1 gamma/beta
            wspec((D, d_ff)), wspec((1, d_ff)),                 # FFN W1, b1
            wspec((d_ff, D)), wspec((1, D)),                    # FFN W2, b2
            wspec((1, D)), wspec((1, D)),                       # LN2 gamma/beta
        ]

    out_spec_x = pl.BlockSpec((Bt, S, D), lambda b: (b, 0, 0))
    if store_attn:
        out_shape = (jax.ShapeDtypeStruct((B, S, D), jnp.float32),
                     jax.ShapeDtypeStruct((B, n_head, S, S), attn_dtype))
        out_specs = (out_spec_x,
                     pl.BlockSpec((Bt, n_head, S, S), lambda b: (b, 0, 0, 0)))
    else:
        out_shape = jax.ShapeDtypeStruct((B, S, D), jnp.float32)
        out_specs = out_spec_x

    cap = _vmem_capacity_bytes()
    ceiling = max(cap - (16 << 20), 32 << 20)   # leave headroom for compiler

    def run(single_buffer_weights):
        weight_mult = 1 if single_buffer_weights else 2
        weight_bytes = weight_mult * sum(
            int(a.size) * a.dtype.itemsize for a in weight_arrays)
        io_bytes = 2 * 4 * (2 * rows * D + Bt * S)          # x/out/mask blocks
        if store_attn:
            io_bytes += 2 * jnp.dtype(attn_dtype).itemsize * Bt * n_head * S * S
        interm_bytes = (4 * (3 * Bt * n_head * S * S + 6 * rows * HD
                             + rows * d_ff + 2 * rows * D) + 2 * rows * HD)
        need = weight_bytes + io_bytes + interm_bytes + (4 << 20)
        vmem_limit = int(min(max(need, 32 << 20), ceiling))

        return pl.pallas_call(
            kernel,
            grid=grid,
            in_specs=make_in_specs(single_buffer_weights),
            out_specs=out_specs,
            out_shape=out_shape,
            scratch_shapes=[pltpu.VMEM((rows, HD), jnp.bfloat16)],
            compiler_params=pltpu.CompilerParams(
                dimension_semantics=("parallel",),   # batch tiles independent
                vmem_limit_bytes=vmem_limit,
            ),
        )(x, mask_bias,
          wq, bq, wk, bk, wv, bv,
          wo, bo, g1, be1, w1, b1, w2, b2, g2, be2)

    try:
        outs = run(True)
    except Exception:
        # pipeline_mode=pl.Buffered(1) unsupported on this jax/jaxlib -> fall
        # back to default double-buffered weight blocks (same numerics).
        outs = run(False)

    if store_attn:
        return outs[0], outs[1]
    return outs, None


# ----------------------------------------------------------------------------
# Full Encoder forward (embeddings + mask in plain JAX, layers in Pallas).
# ----------------------------------------------------------------------------
def encoder_forward(inputs, segments, params, cfg, *, attn_dtype=jnp.float32):
    B, S = inputs.shape
    # positions = arange(S) + 1, zeroed where input is padding
    positions = jnp.broadcast_to(jnp.arange(S, dtype=inputs.dtype) + 1, (B, S))
    positions = jnp.where(inputs == cfg["i_pad"], 0, positions)

    outputs = (
        jnp.take(params["enc_emb"], inputs, axis=0)
        + jnp.take(params["pos_emb"], positions, axis=0)
        + jnp.take(params["seg_emb"], segments, axis=0)
    ).astype(jnp.float32)

    # compact key-padding bias (B, 1, S): -1e9 where the KEY token is padding,
    # +BIG elsewhere; the kernel applies it with jnp.minimum, which reproduces
    # masked_fill(-1e9) exactly with a single VPU op and no (S, S) broadcast.
    mask_bias = jnp.where(inputs == cfg["i_pad"],
                          jnp.float32(-1e9), jnp.float32(3.0e38))
    mask_bias = mask_bias[:, None, :].astype(jnp.float32)

    attn_probs = []
    for lp in params["layers"]:
        outputs, attn_prob = encoder_layer(
            outputs, mask_bias, lp,
            n_head=cfg["n_head"], d_head=cfg["d_head"],
            eps=cfg["layer_norm_epsilon"], attn_dtype=attn_dtype,
        )
        attn_probs.append(attn_prob)
    return outputs, attn_probs


# ----------------------------------------------------------------------------
# Deterministic parameter init (synthetic, not a checkpoint).
# ----------------------------------------------------------------------------
def init_params(key, cfg):
    D = cfg["d_hidn"]
    HD = cfg["n_head"] * cfg["d_head"]
    d_ff = cfg["d_ff"]
    keys = jax.random.split(key, 4 + cfg["n_layer"])

    def nrm(k, shape, s=0.02):
        return (s * jax.random.normal(k, shape)).astype(jnp.float32)

    params = {
        "enc_emb": nrm(keys[0], (cfg["n_enc_vocab"], D)),
        "pos_emb": nrm(keys[1], (cfg["n_enc_seq"] + 1, D)),
        "seg_emb": nrm(keys[2], (cfg["n_seg_type"], D)),
        "layers": [],
    }
    for li in range(cfg["n_layer"]):
        ks = jax.random.split(keys[4 + li], 6)
        params["layers"].append({
            "wq": nrm(ks[0], (D, HD)), "bq": jnp.zeros((1, HD), jnp.float32),
            "wk": nrm(ks[1], (D, HD)), "bk": jnp.zeros((1, HD), jnp.float32),
            "wv": nrm(ks[2], (D, HD)), "bv": jnp.zeros((1, HD), jnp.float32),
            "wo": nrm(ks[3], (HD, D)), "bo": jnp.zeros((1, D), jnp.float32),
            "ln1_g": jnp.ones((1, D), jnp.float32),
            "ln1_b": jnp.zeros((1, D), jnp.float32),
            "w1": nrm(ks[4], (D, d_ff)), "b1": jnp.zeros((1, d_ff), jnp.float32),
            "w2": nrm(ks[5], (d_ff, D)), "b2": jnp.zeros((1, D), jnp.float32),
            "ln2_g": jnp.ones((1, D), jnp.float32),
            "ln2_b": jnp.zeros((1, D), jnp.float32),
        })
    return params


if __name__ == "__main__":
    cfg = dict(
        n_enc_vocab=50, n_enc_seq=8, n_seg_type=2,
        d_hidn=32, n_head=4, d_head=8, d_ff=64,
        n_layer=2, i_pad=0, layer_norm_epsilon=1e-12, dropout=0.0,
    )
    B, S = 2, cfg["n_enc_seq"]

    key = jax.random.PRNGKey(0)
    k_par, k_inp, k_seg = jax.random.split(key, 3)

    params = init_params(k_par, cfg)

    inputs = jax.random.randint(k_inp, (B, S), 1, cfg["n_enc_vocab"], dtype=jnp.int32)
    # make the tail of the second sequence padding so the mask path is exercised
    inputs = inputs.at[1, -2:].set(cfg["i_pad"])
    segments = jax.random.randint(k_seg, (B, S), 0, cfg["n_seg_type"], dtype=jnp.int32)

    # reference-matching path: attention probabilities returned in f32
    outputs, attn_probs = encoder_forward(inputs, segments, params, cfg)
    jax.block_until_ready(outputs)
    for ap in attn_probs:
        jax.block_until_ready(ap)

    assert outputs.shape == (B, S, cfg["d_hidn"])
    assert len(attn_probs) == cfg["n_layer"]
    assert attn_probs[0].shape == (B, cfg["n_head"], S, S)
    assert bool(jnp.all(jnp.isfinite(outputs)))

    # bandwidth-lean path: drop the attention-probability writeback entirely
    outputs_noattn, _ = encoder_forward(inputs, segments, params, cfg,
                                        attn_dtype=None)
    jax.block_until_ready(outputs_noattn)
    assert outputs_noattn.shape == (B, S, cfg["d_hidn"])
    assert bool(jnp.allclose(outputs, outputs_noattn, atol=2e-2, rtol=2e-2))

    print("KERNEL_OK")
</pallas_src>

<mosaic_0001>
module attributes {stable_mosaic.version = 11 : i64} {
  func.func @encoder_layer_kernel(%arg0: i32, %arg1: memref<1x8x32xf32, #tpu.memory_space<vmem>>, %arg2: memref<1x1x8xf32, #tpu.memory_space<vmem>>, %arg3: memref<32x32xbf16, #tpu.memory_space<vmem>>, %arg4: memref<1x32xf32, #tpu.memory_space<vmem>>, %arg5: memref<32x32xbf16, #tpu.memory_space<vmem>>, %arg6: memref<1x32xf32, #tpu.memory_space<vmem>>, %arg7: memref<32x32xbf16, #tpu.memory_space<vmem>>, %arg8: memref<1x32xf32, #tpu.memory_space<vmem>>, %arg9: memref<32x32xbf16, #tpu.memory_space<vmem>>, %arg10: memref<1x32xf32, #tpu.memory_space<vmem>>, %arg11: memref<1x32xf32, #tpu.memory_space<vmem>>, %arg12: memref<1x32xf32, #tpu.memory_space<vmem>>, %arg13: memref<32x64xbf16, #tpu.memory_space<vmem>>, %arg14: memref<1x64xf32, #tpu.memory_space<vmem>>, %arg15: memref<64x32xbf16, #tpu.memory_space<vmem>>, %arg16: memref<1x32xf32, #tpu.memory_space<vmem>>, %arg17: memref<1x32xf32, #tpu.memory_space<vmem>>, %arg18: memref<1x32xf32, #tpu.memory_space<vmem>>, %arg19: memref<1x8x32xf32, #tpu.memory_space<vmem>>, %arg20: memref<1x4x8x8xf32, #tpu.memory_space<vmem>>, %arg21: memref<8x32xbf16, #tpu.memory_space<vmem>>) attributes {dimension_semantics = [#tpu.dimension_semantics<parallel>], iteration_bounds = array<i64: 2>, scalar_prefetch = 0 : i64, scratch_operands = 1 : i64, tpu.core_type = #tpu.core_type<tc>, window_params = [{transform_indices = @transform_0, window_bounds = array<i64: 1, 8, 32>}, {transform_indices = @transform_1, window_bounds = array<i64: 1, 1, 8>}, {pipeline_mode = #tpu.pipeline_mode<synchronous>, transform_indices = @transform_2, window_bounds = array<i64: 32, 32>}, {pipeline_mode = #tpu.pipeline_mode<synchronous>, transform_indices = @transform_3, window_bounds = array<i64: 1, 32>}, {pipeline_mode = #tpu.pipeline_mode<synchronous>, transform_indices = @transform_4, window_bounds = array<i64: 32, 32>}, {pipeline_mode = #tpu.pipeline_mode<synchronous>, transform_indices = @transform_5, window_bounds = array<i64: 1, 32>}, {pipeline_mode = #tpu.pipeline_mode<synchronous>, transform_indices = @transform_6, window_bounds = array<i64: 32, 32>}, {pipeline_mode = #tpu.pipeline_mode<synchronous>, transform_indices = @transform_7, window_bounds = array<i64: 1, 32>}, {pipeline_mode = #tpu.pipeline_mode<synchronous>, transform_indices = @transform_8, window_bounds = array<i64: 32, 32>}, {pipeline_mode = #tpu.pipeline_mode<synchronous>, transform_indices = @transform_9, window_bounds = array<i64: 1, 32>}, {pipeline_mode = #tpu.pipeline_mode<synchronous>, transform_indices = @transform_10, window_bounds = array<i64: 1, 32>}, {pipeline_mode = #tpu.pipeline_mode<synchronous>, transform_indices = @transform_11, window_bounds = array<i64: 1, 32>}, {pipeline_mode = #tpu.pipeline_mode<synchronous>, transform_indices = @transform_12, window_bounds = array<i64: 32, 64>}, {pipeline_mode = #tpu.pipeline_mode<synchronous>, transform_indices = @transform_13, window_bounds = array<i64: 1, 64>}, {pipeline_mode = #tpu.pipeline_mode<synchronous>, transform_indices = @transform_14, window_bounds = array<i64: 64, 32>}, {pipeline_mode = #tpu.pipeline_mode<synchronous>, transform_indices = @transform_15, window_bounds = array<i64: 1, 32>}, {pipeline_mode = #tpu.pipeline_mode<synchronous>, transform_indices = @transform_16, window_bounds = array<i64: 1, 32>}, {pipeline_mode = #tpu.pipeline_mode<synchronous>, transform_indices = @transform_17, window_bounds = array<i64: 1, 32>}, {transform_indices = @transform_18, window_bounds = array<i64: 1, 8, 32>}, {transform_indices = @transform_19, window_bounds = array<i64: 1, 4, 8, 8>}]} {
    %c0 = arith.constant 0 : index
    %c0_0 = arith.constant 0 : index
    %c0_1 = arith.constant 0 : index
    %0 = vector.load %arg1[%c0, %c0_0, %c0_1] : memref<1x8x32xf32, #tpu.memory_space<vmem>>, vector<1x8x32xf32>
    %1 = vector.shape_cast %0 : vector<1x8x32xf32> to vector<8x32xf32>
    %2 = arith.truncf %1 : vector<8x32xf32> to vector<8x32xbf16>
    %c0_2 = arith.constant 0 : index
    %c0_3 = arith.constant 0 : index
    %3 = vector.load %arg3[%c0_2, %c0_3] : memref<32x32xbf16, #tpu.memory_space<vmem>>, vector<32x32xbf16>
    %cst = arith.constant dense<0.000000e+00> : vector<8x32xf32>
    %4 = tpu.matmul %2, %3, %cst {dimension_numbers = #tpu.dot_dimension_numbers<[1], [0], [0], [1], [0, 0, 1, 1], [], []>} : vector<8x32xbf16>, vector<32x32xbf16>, vector<8x32xf32> -> vector<8x32xf32>
    %c0_4 = arith.constant 0 : index
    %c0_5 = arith.constant 0 : index
    %5 = vector.load %arg4[%c0_4, %c0_5] : memref<1x32xf32, #tpu.memory_space<vmem>>, vector<1x32xf32>
    %6 = vector.broadcast %5 : vector<1x32xf32> to vector<8x32xf32>
    %7 = arith.addf %4, %6 : vector<8x32xf32>
    %8 = arith.truncf %7 : vector<8x32xf32> to vector<8x32xbf16>
    %c0_6 = arith.constant 0 : index
    %c0_7 = arith.constant 0 : index
    %9 = vector.load %arg5[%c0_6, %c0_7] : memref<32x32xbf16, #tpu.memory_space<vmem>>, vector<32x32xbf16>
    %cst_8 = arith.constant dense<0.000000e+00> : vector<8x32xf32>
    %10 = tpu.matmul %2, %9, %cst_8 {dimension_numbers = #tpu.dot_dimension_numbers<[1], [0], [0], [1], [0, 0, 1, 1], [], []>} : vector<8x32xbf16>, vector<32x32xbf16>, vector<8x32xf32> -> vector<8x32xf32>
    %c0_9 = arith.constant 0 : index
    %c0_10 = arith.constant 0 : index
    %11 = vector.load %arg6[%c0_9, %c0_10] : memref<1x32xf32, #tpu.memory_space<vmem>>, vector<1x32xf32>
    %12 = vector.broadcast %11 : vector<1x32xf32> to vector<8x32xf32>
    %13 = arith.addf %10, %12 : vector<8x32xf32>
    %14 = arith.truncf %13 : vector<8x32xf32> to vector<8x32xbf16>
    %c0_11 = arith.constant 0 : index
    %c0_12 = arith.constant 0 : index
    %15 = vector.load %arg7[%c0_11, %c0_12] : memref<32x32xbf16, #tpu.memory_space<vmem>>, vector<32x32xbf16>
    %cst_13 = arith.constant dense<0.000000e+00> : vector<8x32xf32>
    %16 = tpu.matmul %2, %15, %cst_13 {dimension_numbers = #tpu.dot_dimension_numbers<[1], [0], [0], [1], [0, 0, 1, 1], [], []>} : vector<8x32xbf16>, vector<32x32xbf16>, vector<8x32xf32> -> vector<8x32xf32>
    %c0_14 = arith.constant 0 : index
    %c0_15 = arith.constant 0 : index
    %17 = vector.load %arg8[%c0_14, %c0_15] : memref<1x32xf32, #tpu.memory_space<vmem>>, vector<1x32xf32>
    %18 = vector.broadcast %17 : vector<1x32xf32> to vector<8x32xf32>
    %19 = arith.addf %16, %18 : vector<8x32xf32>
    %20 = arith.truncf %19 : vector<8x32xf32> to vector<8x32xbf16>
    %21 = vector.extract_strided_slice %8 {offsets = [0, 0], sizes = [8, 8], strides = [1, 1]} : vector<8x32xbf16> to vector<8x8xbf16>
    %22 = vector.shape_cast %21 : vector<8x8xbf16> to vector<1x8x8xbf16>
    %23 = vector.extract_strided_slice %8 {offsets = [0, 8], sizes = [8, 8], strides = [1, 1]} : vector<8x32xbf16> to vector<8x8xbf16>
    %24 = vector.shape_cast %23 : vector<8x8xbf16> to vector<1x8x8xbf16>
    %25 = vector.extract_strided_slice %8 {offsets = [0, 16], sizes = [8, 8], strides = [1, 1]} : vector<8x32xbf16> to vector<8x8xbf16>
    %26 = vector.shape_cast %25 : vector<8x8xbf16> to vector<1x8x8xbf16>
    %27 = vector.extract_strided_slice %8 {offsets = [0, 24], sizes = [8, 8], strides = [1, 1]} : vector<8x32xbf16> to vector<8x8xbf16>
    %28 = vector.shape_cast %27 : vector<8x8xbf16> to vector<1x8x8xbf16>
    %29 = vector.shape_cast %22 : vector<1x8x8xbf16> to vector<1x1x8x8xbf16>
    %30 = vector.shape_cast %24 : vector<1x8x8xbf16> to vector<1x1x8x8xbf16>
    %31 = vector.shape_cast %26 : vector<1x8x8xbf16> to vector<1x1x8x8xbf16>
    %32 = vector.shape_cast %28 : vector<1x8x8xbf16> to vector<1x1x8x8xbf16>
    %33 = tpu.concatenate %29, %30, %31, %32 in 1 : vector<1x1x8x8xbf16>, vector<1x1x8x8xbf16>, vector<1x1x8x8xbf16>, vector<1x1x8x8xbf16> -> vector<1x4x8x8xbf16>
    %34 = vector.shape_cast %33 : vector<1x4x8x8xbf16> to vector<4x8x8xbf16>
    %35 = vector.extract_strided_slice %14 {offsets = [0, 0], sizes = [8, 8], strides = [1, 1]} : vector<8x32xbf16> to vector<8x8xbf16>
    %36 = vector.shape_cast %35 : vector<8x8xbf16> to vector<1x8x8xbf16>
    %37 = vector.extract_strided_slice %14 {offsets = [0, 8], sizes = [8, 8], strides = [1, 1]} : vector<8x32xbf16> to vector<8x8xbf16>
    %38 = vector.shape_cast %37 : vector<8x8xbf16> to vector<1x8x8xbf16>
    %39 = vector.extract_strided_slice %14 {offsets = [0, 16], sizes = [8, 8], strides = [1, 1]} : vector<8x32xbf16> to vector<8x8xbf16>
    %40 = vector.shape_cast %39 : vector<8x8xbf16> to vector<1x8x8xbf16>
    %41 = vector.extract_strided_slice %14 {offsets = [0, 24], sizes = [8, 8], strides = [1, 1]} : vector<8x32xbf16> to vector<8x8xbf16>
    %42 = vector.shape_cast %41 : vector<8x8xbf16> to vector<1x8x8xbf16>
    %43 = vector.shape_cast %36 : vector<1x8x8xbf16> to vector<1x1x8x8xbf16>
    %44 = vector.shape_cast %38 : vector<1x8x8xbf16> to vector<1x1x8x8xbf16>
    %45 = vector.shape_cast %40 : vector<1x8x8xbf16> to vector<1x1x8x8xbf16>
    %46 = vector.shape_cast %42 : vector<1x8x8xbf16> to vector<1x1x8x8xbf16>
    %47 = tpu.concatenate %43, %44, %45, %46 in 1 : vector<1x1x8x8xbf16>, vector<1x1x8x8xbf16>, vector<1x1x8x8xbf16>, vector<1x1x8x8xbf16> -> vector<1x4x8x8xbf16>
    %48 = vector.shape_cast %47 : vector<1x4x8x8xbf16> to vector<4x8x8xbf16>
    %49 = vector.extract_strided_slice %20 {offsets = [0, 0], sizes = [8, 8], strides = [1, 1]} : vector<8x32xbf16> to vector<8x8xbf16>
    %50 = vector.shape_cast %49 : vector<8x8xbf16> to vector<1x8x8xbf16>
    %51 = vector.extract_strided_slice %20 {offsets = [0, 8], sizes = [8, 8], strides = [1, 1]} : vector<8x32xbf16> to vector<8x8xbf16>
    %52 = vector.shape_cast %51 : vector<8x8xbf16> to vector<1x8x8xbf16>
    %53 = vector.extract_strided_slice %20 {offsets = [0, 16], sizes = [8, 8], strides = [1, 1]} : vector<8x32xbf16> to vector<8x8xbf16>
    %54 = vector.shape_cast %53 : vector<8x8xbf16> to vector<1x8x8xbf16>
    %55 = vector.extract_strided_slice %20 {offsets = [0, 24], sizes = [8, 8], strides = [1, 1]} : vector<8x32xbf16> to vector<8x8xbf16>
    %56 = vector.shape_cast %55 : vector<8x8xbf16> to vector<1x8x8xbf16>
    %57 = vector.shape_cast %50 : vector<1x8x8xbf16> to vector<1x1x8x8xbf16>
    %58 = vector.shape_cast %52 : vector<1x8x8xbf16> to vector<1x1x8x8xbf16>
    %59 = vector.shape_cast %54 : vector<1x8x8xbf16> to vector<1x1x8x8xbf16>
    %60 = vector.shape_cast %56 : vector<1x8x8xbf16> to vector<1x1x8x8xbf16>
    %61 = tpu.concatenate %57, %58, %59, %60 in 1 : vector<1x1x8x8xbf16>, vector<1x1x8x8xbf16>, vector<1x1x8x8xbf16>, vector<1x1x8x8xbf16> -> vector<1x4x8x8xbf16>
    %62 = vector.shape_cast %61 : vector<1x4x8x8xbf16> to vector<4x8x8xbf16>
    "tpu.trace_start"() <{level = 10 : i32, message = "nqd,nkd->nqk"}> : () -> ()
    %cst_16 = arith.constant dense<0.000000e+00> : vector<4x8x8xf32>
    %63 = tpu.matmul %34, %48, %cst_16 {dimension_numbers = #tpu.dot_dimension_numbers<[2], [2], [1], [1], [0, 0, 0, 1, 1, 1], [0], [0]>} : vector<4x8x8xbf16>, vector<4x8x8xbf16>, vector<4x8x8xf32> -> vector<4x8x8xf32>
    "tpu.trace_stop"() : () -> ()
    %c0_17 = arith.constant 0 : index
    %c0_18 = arith.constant 0 : index
    %c0_19 = arith.constant 0 : index
    %64 = vector.load %arg2[%c0_17, %c0_18, %c0_19] : memref<1x1x8xf32, #tpu.memory_space<vmem>>, vector<1x1x8xf32>
    %65 = vector.shape_cast %64 : vector<1x1x8xf32> to vector<1x1x1x8xf32>
    %66 = vector.shape_cast %65 : vector<1x1x1x8xf32> to vector<1x1x1x8xf32>
    %67 = vector.broadcast %66 : vector<1x1x1x8xf32> to vector<1x4x1x8xf32>
    %68 = vector.shape_cast %67 : vector<1x4x1x8xf32> to vector<4x1x8xf32>
    %69 = vector.broadcast %68 : vector<4x1x8xf32> to vector<4x8x8xf32>
    %70 = arith.minimumf %63, %69 : vector<4x8x8xf32>
    %cst_20 = arith.constant dense<0xFF800000> : vector<4x8xf32>
    %71 = vector.multi_reduction <maximumf>, %70, %cst_20 [2] : vector<4x8x8xf32> to vector<4x8xf32>
    %72 = vector.shape_cast %71 : vector<4x8xf32> to vector<4x8x1xf32>
    %73 = vector.broadcast %72 : vector<4x8x1xf32> to vector<4x8x8xf32>
    %74 = arith.subf %70, %73 : vector<4x8x8xf32>
    %75 = math.exp %74 : vector<4x8x8xf32>
    %cst_21 = arith.constant dense<0.000000e+00> : vector<4x8xf32>
    %76 = vector.multi_reduction <add>, %75, %cst_21 [2] : vector<4x8x8xf32> to vector<4x8xf32>
    %77 = vector.shape_cast %76 : vector<4x8xf32> to vector<4x8x1xf32>
    %78 = tpu.reciprocal %77 {approx = true} : vector<4x8x1xf32> -> vector<4x8x1xf32>
    %79 = vector.broadcast %78 : vector<4x8x1xf32> to vector<4x8x8xf32>
    %80 = arith.mulf %75, %79 : vector<4x8x8xf32>
    %81 = vector.shape_cast %80 : vector<4x8x8xf32> to vector<1x4x8x8xf32>
    %c0_22 = arith.constant 0 : index
    %c0_23 = arith.constant 0 : index
    %c0_24 = arith.constant 0 : index
    %c0_25 = arith.constant 0 : index
    %82 = vector.load %arg20[%c0_22, %c0_23, %c0_24, %c0_25] : memref<1x4x8x8xf32, #tpu.memory_space<vmem>>, vector<1x4x8x8xf32>
    tpu.vector_store %arg20[%c0_22, %c0_23, %c0_24, %c0_25], %81 {strides = array<i32>} : memref<1x4x8x8xf32, #tpu.memory_space<vmem>>, vector<1x4x8x8xf32>,
    %83 = arith.truncf %80 : vector<4x8x8xf32> to vector<4x8x8xbf16>
    "tpu.trace_start"() <{level = 10 : i32, message = "nqk,nkd->nqd"}> : () -> ()
    %cst_26 = arith.constant dense<0.000000e+00> : vector<4x8x8xf32>
    %84 = tpu.matmul %83, %62, %cst_26 {dimension_numbers = #tpu.dot_dimension_numbers<[2], [1], [1], [2], [0, 0, 0, 1, 1, 2], [0], [0]>} : vector<4x8x8xbf16>, vector<4x8x8xbf16>, vector<4x8x8xf32> -> vector<4x8x8xf32>
    "tpu.trace_stop"() : () -> ()
    %85 = vector.shape_cast %84 : vector<4x8x8xf32> to vector<1x4x8x8xf32>
    %86 = vector.extract_strided_slice %85 {offsets = [0, 0, 0, 0], sizes = [1, 1, 8, 8], strides = [1, 1, 1, 1]} : vector<1x4x8x8xf32> to vector<1x1x8x8xf32>
    %87 = vector.shape_cast %86 : vector<1x1x8x8xf32> to vector<1x8x8xf32>
    %88 = vector.shape_cast %87 : vector<1x8x8xf32> to vector<8x8xf32>
    %89 = arith.truncf %88 : vector<8x8xf32> to vector<8x8xbf16>
    %c0_27 = arith.constant 0 : index
    %c0_28 = arith.constant 0 : index
    %90 = vector.load %arg21[%c0_27, %c0_28] : memref<8x32xbf16, #tpu.memory_space<vmem>>, vector<8x8xbf16>
    tpu.vector_store %arg21[%c0_27, %c0_28], %89 {strides = array<i32>} : memref<8x32xbf16, #tpu.memory_space<vmem>>, vector<8x8xbf16>,
    %91 = vector.extract_strided_slice %85 {offsets = [0, 1, 0, 0], sizes = [1, 1, 8, 8], strides = [1, 1, 1, 1]} : vector<1x4x8x8xf32> to vector<1x1x8x8xf32>
    %92 = vector.shape_cast %91 : vector<1x1x8x8xf32> to vector<1x8x8xf32>
    %93 = vector.shape_cast %92 : vector<1x8x8xf32> to vector<8x8xf32>
    %94 = arith.truncf %93 : vector<8x8xf32> to vector<8x8xbf16>
    %c0_29 = arith.constant 0 : index
    %c8 = arith.constant 8 : index
    %95 = vector.load %arg21[%c0_29, %c8] : memref<8x32xbf16, #tpu.memory_space<vmem>>, vector<8x8xbf16>
    tpu.vector_store %arg21[%c0_29, %c8], %94 {strides = array<i32>} : memref<8x32xbf16, #tpu.memory_space<vmem>>, vector<8x8xbf16>,
    %96 = vector.extract_strided_slice %85 {offsets = [0, 2, 0, 0], sizes = [1, 1, 8, 8], strides = [1, 1, 1, 1]} : vector<1x4x8x8xf32> to vector<1x1x8x8xf32>
    %97 = vector.shape_cast %96 : vector<1x1x8x8xf32> to vector<1x8x8xf32>
    %98 = vector.shape_cast %97 : vector<1x8x8xf32> to vector<8x8xf32>
    %99 = arith.truncf %98 : vector<8x8xf32> to vector<8x8xbf16>
    %c0_30 = arith.constant 0 : index
    %c16 = arith.constant 16 : index
    %100 = vector.load %arg21[%c0_30, %c16] : memref<8x32xbf16, #tpu.memory_space<vmem>>, vector<8x8xbf16>
    tpu.vector_store %arg21[%c0_30, %c16], %99 {strides = array<i32>} : memref<8x32xbf16, #tpu.memory_space<vmem>>, vector<8x8xbf16>,
    %101 = vector.extract_strided_slice %85 {offsets = [0, 3, 0, 0], sizes = [1, 1, 8, 8], strides = [1, 1, 1, 1]} : vector<1x4x8x8xf32> to vector<1x1x8x8xf32>
    %102 = vector.shape_cast %101 : vector<1x1x8x8xf32> to vector<1x8x8xf32>
    %103 = vector.shape_cast %102 : vector<1x8x8xf32> to vector<8x8xf32>
    %104 = arith.truncf %103 : vector<8x8xf32> to vector<8x8xbf16>
    %c0_31 = arith.constant 0 : index
    %c24 = arith.constant 24 : index
    %105 = vector.load %arg21[%c0_31, %c24] : memref<8x32xbf16, #tpu.memory_space<vmem>>, vector<8x8xbf16>
    tpu.vector_store %arg21[%c0_31, %c24], %104 {strides = array<i32>} : memref<8x32xbf16, #tpu.memory_space<vmem>>, vector<8x8xbf16>,
    %c0_32 = arith.constant 0 : index
    %c0_33 = arith.constant 0 : index
    %106 = vector.load %arg21[%c0_32, %c0_33] : memref<8x32xbf16, #tpu.memory_space<vmem>>, vector<8x32xbf16>
    %c0_34 = arith.constant 0 : index
    %c0_35 = arith.constant 0 : index
    %107 = vector.load %arg9[%c0_34, %c0_35] : memref<32x32xbf16, #tpu.memory_space<vmem>>, vector<32x32xbf16>
    %cst_36 = arith.constant dense<0.000000e+00> : vector<8x32xf32>
    %108 = tpu.matmul %106, %107, %cst_36 {dimension_numbers = #tpu.dot_dimension_numbers<[1], [0], [0], [1], [0, 0, 1, 1], [], []>} : vector<8x32xbf16>, vector<32x32xbf16>, vector<8x32xf32> -> vector<8x32xf32>
    %c0_37 = arith.constant 0 : index
    %c0_38 = arith.constant 0 : index
    %109 = vector.load %arg10[%c0_37, %c0_38] : memref<1x32xf32, #tpu.memory_space<vmem>>, vector<1x32xf32>
    %110 = vector.broadcast %109 : vector<1x32xf32> to vector<8x32xf32>
    %111 = arith.addf %108, %110 : vector<8x32xf32>
    %112 = arith.addf %111, %1 : vector<8x32xf32>
    %cst_39 = arith.constant dense<0.000000e+00> : vector<8xf32>
    %113 = vector.multi_reduction <add>, %112, %cst_39 [1] : vector<8x32xf32> to vector<8xf32>
    %114 = vector.shape_cast %113 : vector<8xf32> to vector<8x1xf32>
    %cst_40 = arith.constant 3.200000e+01 : f32
    %115 = vector.broadcast %cst_40 : f32 to vector<8x1xf32>
    %116 = arith.divf %114, %115 : vector<8x1xf32>
    %117 = vector.broadcast %116 : vector<8x1xf32> to vector<8x32xf32>
    %118 = arith.subf %112, %117 : vector<8x32xf32>
    %119 = arith.mulf %118, %118 : vector<8x32xf32>
    %cst_41 = arith.constant dense<0.000000e+00> : vector<8xf32>
    %120 = vector.multi_reduction <add>, %119, %cst_41 [1] : vector<8x32xf32> to vector<8xf32>
    %121 = vector.shape_cast %120 : vector<8xf32> to vector<8x1xf32>
    %cst_42 = arith.constant 3.200000e+01 : f32
    %122 = vector.broadcast %cst_42 : f32 to vector<8x1xf32>
    %123 = arith.divf %121, %122 : vector<8x1xf32>
    %124 = vector.broadcast %116 : vector<8x1xf32> to vector<8x32xf32>
    %125 = arith.subf %112, %124 : vector<8x32xf32>
    %cst_43 = arith.constant 9.99999996E-13 : f32
    %126 = vector.broadcast %cst_43 : f32 to vector<8x1xf32>
    %127 = arith.addf %123, %126 : vector<8x1xf32>
    %128 = math.rsqrt %127 : vector<8x1xf32>
    %129 = vector.broadcast %128 : vector<8x1xf32> to vector<8x32xf32>
    %130 = arith.mulf %125, %129 : vector<8x32xf32>
    %c0_44 = arith.constant 0 : index
    %c0_45 = arith.constant 0 : index
    %131 = vector.load %arg11[%c0_44, %c0_45] : memref<1x32xf32, #tpu.memory_space<vmem>>, vector<1x32xf32>
    %132 = vector.broadcast %131 : vector<1x32xf32> to vector<8x32xf32>
    %133 = arith.mulf %130, %132 : vector<8x32xf32>
    %c0_46 = arith.constant 0 : index
    %c0_47 = arith.constant 0 : index
    %134 = vector.load %arg12[%c0_46, %c0_47] : memref<1x32xf32, #tpu.memory_space<vmem>>, vector<1x32xf32>
    %135 = vector.broadcast %134 : vector<1x32xf32> to vector<8x32xf32>
    %136 = arith.addf %133, %135 : vector<8x32xf32>
    %137 = arith.truncf %136 : vector<8x32xf32> to vector<8x32xbf16>
    %c0_48 = arith.constant 0 : index
    %c0_49 = arith.constant 0 : index
    %138 = vector.load %arg13[%c0_48, %c0_49] : memref<32x64xbf16, #tpu.memory_space<vmem>>, vector<32x64xbf16>
    %cst_50 = arith.constant dense<0.000000e+00> : vector<8x64xf32>
    %139 = tpu.matmul %137, %138, %cst_50 {dimension_numbers = #tpu.dot_dimension_numbers<[1], [0], [0], [1], [0, 0, 1, 1], [], []>} : vector<8x32xbf16>, vector<32x64xbf16>, vector<8x64xf32> -> vector<8x64xf32>
    %c0_51 = arith.constant 0 : index
    %c0_52 = arith.constant 0 : index
    %140 = vector.load %arg14[%c0_51, %c0_52] : memref<1x64xf32, #tpu.memory_space<vmem>>, vector<1x64xf32>
    %141 = vector.broadcast %140 : vector<1x64xf32> to vector<8x64xf32>
    %142 = arith.addf %139, %141 : vector<8x64xf32>
    %cst_53 = arith.constant 0.000000e+00 : f32
    %143 = vector.broadcast %cst_53 : f32 to vector<8x64xf32>
    %144 = arith.maximumf %142, %143 : vector<8x64xf32>
    %145 = arith.truncf %144 : vector<8x64xf32> to vector<8x64xbf16>
    %c0_54 = arith.constant 0 : index
    %c0_55 = arith.constant 0 : index
    %146 = vector.load %arg15[%c0_54, %c0_55] : memref<64x32xbf16, #tpu.memory_space<vmem>>, vector<64x32xbf16>
    %cst_56 = arith.constant dense<0.000000e+00> : vector<8x32xf32>
    %147 = tpu.matmul %145, %146, %cst_56 {dimension_numbers = #tpu.dot_dimension_numbers<[1], [0], [0], [1], [0, 0, 1, 1], [], []>} : vector<8x64xbf16>, vector<64x32xbf16>, vector<8x32xf32> -> vector<8x32xf32>
    %c0_57 = arith.constant 0 : index
    %c0_58 = arith.constant 0 : index
    %148 = vector.load %arg16[%c0_57, %c0_58] : memref<1x32xf32, #tpu.memory_space<vmem>>, vector<1x32xf32>
    %149 = vector.broadcast %148 : vector<1x32xf32> to vector<8x32xf32>
    %150 = arith.addf %147, %149 : vector<8x32xf32>
    %151 = arith.addf %150, %136 : vector<8x32xf32>
    %cst_59 = arith.constant dense<0.000000e+00> : vector<8xf32>
    %152 = vector.multi_reduction <add>, %151, %cst_59 [1] : vector<8x32xf32> to vector<8xf32>
    %153 = vector.shape_cast %152 : vector<8xf32> to vector<8x1xf32>
    %cst_60 = arith.constant 3.200000e+01 : f32
    %154 = vector.broadcast %cst_60 : f32 to vector<8x1xf32>
    %155 = arith.divf %153, %154 : vector<8x1xf32>
    %156 = vector.broadcast %155 : vector<8x1xf32> to vector<8x32xf32>
    %157 = arith.subf %151, %156 : vector<8x32xf32>
    %158 = arith.mulf %157, %157 : vector<8x32xf32>
    %cst_61 = arith.constant dense<0.000000e+00> : vector<8xf32>
    %159 = vector.multi_reduction <add>, %158, %cst_61 [1] : vector<8x32xf32> to vector<8xf32>
    %160 = vector.shape_cast %159 : vector<8xf32> to vector<8x1xf32>
    %cst_62 = arith.constant 3.200000e+01 : f32
    %161 = vector.broadcast %cst_62 : f32 to vector<8x1xf32>
    %162 = arith.divf %160, %161 : vector<8x1xf32>
    %163 = vector.broadcast %155 : vector<8x1xf32> to vector<8x32xf32>
    %164 = arith.subf %151, %163 : vector<8x32xf32>
    %cst_63 = arith.constant 9.99999996E-13 : f32
    %165 = vector.broadcast %cst_63 : f32 to vector<8x1xf32>
    %166 = arith.addf %162, %165 : vector<8x1xf32>
    %167 = math.rsqrt %166 : vector<8x1xf32>
    %168 = vector.broadcast %167 : vector<8x1xf32> to vector<8x32xf32>
    %169 = arith.mulf %164, %168 : vector<8x32xf32>
    %c0_64 = arith.constant 0 : index
    %c0_65 = arith.constant 0 : index
    %170 = vector.load %arg17[%c0_64, %c0_65] : memref<1x32xf32, #tpu.memory_space<vmem>>, vector<1x32xf32>
    %171 = vector.broadcast %170 : vector<1x32xf32> to vector<8x32xf32>
    %172 = arith.mulf %169, %171 : vector<8x32xf32>
    %c0_66 = arith.constant 0 : index
    %c0_67 = arith.constant 0 : index
    %173 = vector.load %arg18[%c0_66, %c0_67] : memref<1x32xf32, #tpu.memory_space<vmem>>, vector<1x32xf32>
    %174 = vector.broadcast %173 : vector<1x32xf32> to vector<8x32xf32>
    %175 = arith.addf %172, %174 : vector<8x32xf32>
    %176 = vector.shape_cast %175 : vector<8x32xf32> to vector<1x8x32xf32>
    %c0_68 = arith.constant 0 : index
    %c0_69 = arith.constant 0 : index
    %c0_70 = arith.constant 0 : index
    %177 = vector.load %arg19[%c0_68, %c0_69, %c0_70] : memref<1x8x32xf32, #tpu.memory_space<vmem>>, vector<1x8x32xf32>
    tpu.vector_store %arg19[%c0_68, %c0_69, %c0_70], %176 {strides = array<i32>} : memref<1x8x32xf32, #tpu.memory_space<vmem>>, vector<1x8x32xf32>,
    return
  }
  func.func @transform_0(%arg0: i32) -> (i32, i32, i32) {
    %c0_i32 = arith.constant 0 : i32
    %c0_i32_0 = arith.constant 0 : i32
    %c0_i32_1 = arith.constant 0 : i32
    return %arg0, %c0_i32, %c0_i32_0 : i32, i32, i32
  }
  func.func @transform_1(%arg0: i32) -> (i32, i32, i32) {
    %c0_i32 = arith.constant 0 : i32
    %c0_i32_0 = arith.constant 0 : i32
    %c0_i32_1 = arith.constant 0 : i32
    return %arg0, %c0_i32, %c0_i32_0 : i32, i32, i32
  }
  func.func @transform_2(%arg0: i32) -> (i32, i32) {
    %c0_i32 = arith.constant 0 : i32
    %c0_i32_0 = arith.constant 0 : i32
    %c0_i32_1 = arith.constant 0 : i32
    return %c0_i32, %c0_i32_0 : i32, i32
  }
  func.func @transform_3(%arg0: i32) -> (i32, i32) {
    %c0_i32 = arith.constant 0 : i32
    %c0_i32_0 = arith.constant 0 : i32
    %c0_i32_1 = arith.constant 0 : i32
    return %c0_i32, %c0_i32_0 : i32, i32
  }
  func.func @transform_4(%arg0: i32) -> (i32, i32) {
    %c0_i32 = arith.constant 0 : i32
    %c0_i32_0 = arith.constant 0 : i32
    %c0_i32_1 = arith.constant 0 : i32
    return %c0_i32, %c0_i32_0 : i32, i32
  }
  func.func @transform_5(%arg0: i32) -> (i32, i32) {
    %c0_i32 = arith.constant 0 : i32
    %c0_i32_0 = arith.constant 0 : i32
    %c0_i32_1 = arith.constant 0 : i32
    return %c0_i32, %c0_i32_0 : i32, i32
  }
  func.func @transform_6(%arg0: i32) -> (i32, i32) {
    %c0_i32 = arith.constant 0 : i32
    %c0_i32_0 = arith.constant 0 : i32
    %c0_i32_1 = arith.constant 0 : i32
    return %c0_i32, %c0_i32_0 : i32, i32
  }
  func.func @transform_7(%arg0: i32) -> (i32, i32) {
    %c0_i32 = arith.constant 0 : i32
    %c0_i32_0 = arith.constant 0 : i32
    %c0_i32_1 = arith.constant 0 : i32
    return %c0_i32, %c0_i32_0 : i32, i32
  }
  func.func @transform_8(%arg0: i32) -> (i32, i32) {
    %c0_i32 = arith.constant 0 : i32
    %c0_i32_0 = arith.constant 0 : i32
    %c0_i32_1 = arith.constant 0 : i32
    return %c0_i32, %c0_i32_0 : i32, i32
  }
  func.func @transform_9(%arg0: i32) -> (i32, i32) {
    %c0_i32 = arith.constant 0 : i32
    %c0_i32_0 = arith.constant 0 : i32
    %c0_i32_1 = arith.constant 0 : i32
    return %c0_i32, %c0_i32_0 : i32, i32
  }
  func.func @transform_10(%arg0: i32) -> (i32, i32) {
    %c0_i32 = arith.constant 0 : i32
    %c0_i32_0 = arith.constant 0 : i32
    %c0_i32_1 = arith.constant 0 : i32
    return %c0_i32, %c0_i32_0 : i32, i32
  }
  func.func @transform_11(%arg0: i32) -> (i32, i32) {
    %c0_i32 = arith.constant 0 : i32
    %c0_i32_0 = arith.constant 0 : i32
    %c0_i32_1 = arith.constant 0 : i32
    return %c0_i32, %c0_i32_0 : i32, i32
  }
  func.func @transform_12(%arg0: i32) -> (i32, i32) {
    %c0_i32 = arith.constant 0 : i32
    %c0_i32_0 = arith.constant 0 : i32
    %c0_i32_1 = arith.constant 0 : i32
    return %c0_i32, %c0_i32_0 : i32, i32
  }
  func.func @transform_13(%arg0: i32) -> (i32, i32) {
    %c0_i32 = arith.constant 0 : i32
    %c0_i32_0 = arith.constant 0 : i32
    %c0_i32_1 = arith.constant 0 : i32
    return %c0_i32, %c0_i32_0 : i32, i32
  }
  func.func @transform_14(%arg0: i32) -> (i32, i32) {
    %c0_i32 = arith.constant 0 : i32
    %c0_i32_0 = arith.constant 0 : i32
    %c0_i32_1 = arith.constant 0 : i32
    return %c0_i32, %c0_i32_0 : i32, i32
  }
  func.func @transform_15(%arg0: i32) -> (i32, i32) {
    %c0_i32 = arith.constant 0 : i32
    %c0_i32_0 = arith.constant 0 : i32
    %c0_i32_1 = arith.constant 0 : i32
    return %c0_i32, %c0_i32_0 : i32, i32
  }
  func.func @transform_16(%arg0: i32) -> (i32, i32) {
    %c0_i32 = arith.constant 0 : i32
    %c0_i32_0 = arith.constant 0 : i32
    %c0_i32_1 = arith.constant 0 : i32
    return %c0_i32, %c0_i32_0 : i32, i32
  }
  func.func @transform_17(%arg0: i32) -> (i32, i32) {
    %c0_i32 = arith.constant 0 : i32
    %c0_i32_0 = arith.constant 0 : i32
    %c0_i32_1 = arith.constant 0 : i32
    return %c0_i32, %c0_i32_0 : i32, i32
  }
  func.func @transform_18(%arg0: i32) -> (i32, i32, i32) {
    %c0_i32 = arith.constant 0 : i32
    %c0_i32_0 = arith.constant 0 : i32
    %c0_i32_1 = arith.constant 0 : i32
    return %arg0, %c0_i32, %c0_i32_0 : i32, i32, i32
  }
  func.func @transform_19(%arg0: i32) -> (i32, i32, i32, i32) {
    %c0_i32 = arith.constant 0 : i32
    %c0_i32_0 = arith.constant 0 : i32
    %c0_i32_1 = arith.constant 0 : i32
    %c0_i32_2 = arith.constant 0 : i32
    return %arg0, %c0_i32, %c0_i32_0, %c0_i32_1 : i32, i32, i32, i32
  }
}

module attributes {stable_mosaic.version = 11 : i64} {
  func.func @encoder_layer_kernel(%arg0: i32, %arg1: memref<1x8x32xf32, #tpu.memory_space<vmem>>, %arg2: memref<1x1x8xf32, #tpu.memory_space<vmem>>, %arg3: memref<32x32xbf16, #tpu.memory_space<vmem>>, %arg4: memref<1x32xf32, #tpu.memory_space<vmem>>, %arg5: memref<32x32xbf16, #tpu.memory_space<vmem>>, %arg6: memref<1x32xf32, #tpu.memory_space<vmem>>, %arg7: memref<32x32xbf16, #tpu.memory_space<vmem>>, %arg8: memref<1x32xf32, #tpu.memory_space<vmem>>, %arg9: memref<32x32xbf16, #tpu.memory_space<vmem>>, %arg10: memref<1x32xf32, #tpu.memory_space<vmem>>, %arg11: memref<1x32xf32, #tpu.memory_space<vmem>>, %arg12: memref<1x32xf32, #tpu.memory_space<vmem>>, %arg13: memref<32x64xbf16, #tpu.memory_space<vmem>>, %arg14: memref<1x64xf32, #tpu.memory_space<vmem>>, %arg15: memref<64x32xbf16, #tpu.memory_space<vmem>>, %arg16: memref<1x32xf32, #tpu.memory_space<vmem>>, %arg17: memref<1x32xf32, #tpu.memory_space<vmem>>, %arg18: memref<1x32xf32, #tpu.memory_space<vmem>>, %arg19: memref<1x8x32xf32, #tpu.memory_space<vmem>>, %arg20: memref<1x4x8x8xf32, #tpu.memory_space<vmem>>, %arg21: memref<8x32xbf16, #tpu.memory_space<vmem>>) attributes {dimension_semantics = [#tpu.dimension_semantics<parallel>], iteration_bounds = array<i64: 2>, scalar_prefetch = 0 : i64, scratch_operands = 1 : i64, tpu.core_type = #tpu.core_type<tc>, window_params = [{transform_indices = @transform_0, window_bounds = array<i64: 1, 8, 32>}, {transform_indices = @transform_1, window_bounds = array<i64: 1, 1, 8>}, {pipeline_mode = #tpu.pipeline_mode<synchronous>, transform_indices = @transform_2, window_bounds = array<i64: 32, 32>}, {pipeline_mode = #tpu.pipeline_mode<synchronous>, transform_indices = @transform_3, window_bounds = array<i64: 1, 32>}, {pipeline_mode = #tpu.pipeline_mode<synchronous>, transform_indices = @transform_4, window_bounds = array<i64: 32, 32>}, {pipeline_mode = #tpu.pipeline_mode<synchronous>, transform_indices = @transform_5, window_bounds = array<i64: 1, 32>}, {pipeline_mode = #tpu.pipeline_mode<synchronous>, transform_indices = @transform_6, window_bounds = array<i64: 32, 32>}, {pipeline_mode = #tpu.pipeline_mode<synchronous>, transform_indices = @transform_7, window_bounds = array<i64: 1, 32>}, {pipeline_mode = #tpu.pipeline_mode<synchronous>, transform_indices = @transform_8, window_bounds = array<i64: 32, 32>}, {pipeline_mode = #tpu.pipeline_mode<synchronous>, transform_indices = @transform_9, window_bounds = array<i64: 1, 32>}, {pipeline_mode = #tpu.pipeline_mode<synchronous>, transform_indices = @transform_10, window_bounds = array<i64: 1, 32>}, {pipeline_mode = #tpu.pipeline_mode<synchronous>, transform_indices = @transform_11, window_bounds = array<i64: 1, 32>}, {pipeline_mode = #tpu.pipeline_mode<synchronous>, transform_indices = @transform_12, window_bounds = array<i64: 32, 64>}, {pipeline_mode = #tpu.pipeline_mode<synchronous>, transform_indices = @transform_13, window_bounds = array<i64: 1, 64>}, {pipeline_mode = #tpu.pipeline_mode<synchronous>, transform_indices = @transform_14, window_bounds = array<i64: 64, 32>}, {pipeline_mode = #tpu.pipeline_mode<synchronous>, transform_indices = @transform_15, window_bounds = array<i64: 1, 32>}, {pipeline_mode = #tpu.pipeline_mode<synchronous>, transform_indices = @transform_16, window_bounds = array<i64: 1, 32>}, {pipeline_mode = #tpu.pipeline_mode<synchronous>, transform_indices = @transform_17, window_bounds = array<i64: 1, 32>}, {transform_indices = @transform_18, window_bounds = array<i64: 1, 8, 32>}, {transform_indices = @transform_19, window_bounds = array<i64: 1, 4, 8, 8>}]} {
    %c0 = arith.constant 0 : index
    %c0_0 = arith.constant 0 : index
    %c0_1 = arith.constant 0 : index
    %0 = vector.load %arg1[%c0, %c0_0, %c0_1] : memref<1x8x32xf32, #tpu.memory_space<vmem>>, vector<1x8x32xf32>
    %1 = vector.shape_cast %0 : vector<1x8x32xf32> to vector<8x32xf32>
    %2 = arith.truncf %1 : vector<8x32xf32> to vector<8x32xbf16>
    %c0_2 = arith.constant 0 : index
    %c0_3 = arith.constant 0 : index
    %3 = vector.load %arg3[%c0_2, %c0_3] : memref<32x32xbf16, #tpu.memory_space<vmem>>, vector<32x32xbf16>
    %cst = arith.constant dense<0.000000e+00> : vector<8x32xf32>
    %4 = tpu.matmul %2, %3, %cst {dimension_numbers = #tpu.dot_dimension_numbers<[1], [0], [0], [1], [0, 0, 1, 1], [], []>} : vector<8x32xbf16>, vector<32x32xbf16>, vector<8x32xf32> -> vector<8x32xf32>
    %c0_4 = arith.constant 0 : index
    %c0_5 = arith.constant 0 : index
    %5 = vector.load %arg4[%c0_4, %c0_5] : memref<1x32xf32, #tpu.memory_space<vmem>>, vector<1x32xf32>
    %6 = vector.broadcast %5 : vector<1x32xf32> to vector<8x32xf32>
    %7 = arith.addf %4, %6 : vector<8x32xf32>
    %8 = arith.truncf %7 : vector<8x32xf32> to vector<8x32xbf16>
    %c0_6 = arith.constant 0 : index
    %c0_7 = arith.constant 0 : index
    %9 = vector.load %arg5[%c0_6, %c0_7] : memref<32x32xbf16, #tpu.memory_space<vmem>>, vector<32x32xbf16>
    %cst_8 = arith.constant dense<0.000000e+00> : vector<8x32xf32>
    %10 = tpu.matmul %2, %9, %cst_8 {dimension_numbers = #tpu.dot_dimension_numbers<[1], [0], [0], [1], [0, 0, 1, 1], [], []>} : vector<8x32xbf16>, vector<32x32xbf16>, vector<8x32xf32> -> vector<8x32xf32>
    %c0_9 = arith.constant 0 : index
    %c0_10 = arith.constant 0 : index
    %11 = vector.load %arg6[%c0_9, %c0_10] : memref<1x32xf32, #tpu.memory_space<vmem>>, vector<1x32xf32>
    %12 = vector.broadcast %11 : vector<1x32xf32> to vector<8x32xf32>
    %13 = arith.addf %10, %12 : vector<8x32xf32>
    %14 = arith.truncf %13 : vector<8x32xf32> to vector<8x32xbf16>
    %c0_11 = arith.constant 0 : index
    %c0_12 = arith.constant 0 : index
    %15 = vector.load %arg7[%c0_11, %c0_12] : memref<32x32xbf16, #tpu.memory_space<vmem>>, vector<32x32xbf16>
    %cst_13 = arith.constant dense<0.000000e+00> : vector<8x32xf32>
    %16 = tpu.matmul %2, %15, %cst_13 {dimension_numbers = #tpu.dot_dimension_numbers<[1], [0], [0], [1], [0, 0, 1, 1], [], []>} : vector<8x32xbf16>, vector<32x32xbf16>, vector<8x32xf32> -> vector<8x32xf32>
    %c0_14 = arith.constant 0 : index
    %c0_15 = arith.constant 0 : index
    %17 = vector.load %arg8[%c0_14, %c0_15] : memref<1x32xf32, #tpu.memory_space<vmem>>, vector<1x32xf32>
    %18 = vector.broadcast %17 : vector<1x32xf32> to vector<8x32xf32>
    %19 = arith.addf %16, %18 : vector<8x32xf32>
    %20 = arith.truncf %19 : vector<8x32xf32> to vector<8x32xbf16>
    %21 = vector.extract_strided_slice %8 {offsets = [0, 0], sizes = [8, 8], strides = [1, 1]} : vector<8x32xbf16> to vector<8x8xbf16>
    %22 = vector.shape_cast %21 : vector<8x8xbf16> to vector<1x8x8xbf16>
    %23 = vector.extract_strided_slice %8 {offsets = [0, 8], sizes = [8, 8], strides = [1, 1]} : vector<8x32xbf16> to vector<8x8xbf16>
    %24 = vector.shape_cast %23 : vector<8x8xbf16> to vector<1x8x8xbf16>
    %25 = vector.extract_strided_slice %8 {offsets = [0, 16], sizes = [8, 8], strides = [1, 1]} : vector<8x32xbf16> to vector<8x8xbf16>
    %26 = vector.shape_cast %25 : vector<8x8xbf16> to vector<1x8x8xbf16>
    %27 = vector.extract_strided_slice %8 {offsets = [0, 24], sizes = [8, 8], strides = [1, 1]} : vector<8x32xbf16> to vector<8x8xbf16>
    %28 = vector.shape_cast %27 : vector<8x8xbf16> to vector<1x8x8xbf16>
    %29 = vector.shape_cast %22 : vector<1x8x8xbf16> to vector<1x1x8x8xbf16>
    %30 = vector.shape_cast %24 : vector<1x8x8xbf16> to vector<1x1x8x8xbf16>
    %31 = vector.shape_cast %26 : vector<1x8x8xbf16> to vector<1x1x8x8xbf16>
    %32 = vector.shape_cast %28 : vector<1x8x8xbf16> to vector<1x1x8x8xbf16>
    %33 = tpu.concatenate %29, %30, %31, %32 in 1 : vector<1x1x8x8xbf16>, vector<1x1x8x8xbf16>, vector<1x1x8x8xbf16>, vector<1x1x8x8xbf16> -> vector<1x4x8x8xbf16>
    %34 = vector.shape_cast %33 : vector<1x4x8x8xbf16> to vector<4x8x8xbf16>
    %35 = vector.extract_strided_slice %14 {offsets = [0, 0], sizes = [8, 8], strides = [1, 1]} : vector<8x32xbf16> to vector<8x8xbf16>
    %36 = vector.shape_cast %35 : vector<8x8xbf16> to vector<1x8x8xbf16>
    %37 = vector.extract_strided_slice %14 {offsets = [0, 8], sizes = [8, 8], strides = [1, 1]} : vector<8x32xbf16> to vector<8x8xbf16>
    %38 = vector.shape_cast %37 : vector<8x8xbf16> to vector<1x8x8xbf16>
    %39 = vector.extract_strided_slice %14 {offsets = [0, 16], sizes = [8, 8], strides = [1, 1]} : vector<8x32xbf16> to vector<8x8xbf16>
    %40 = vector.shape_cast %39 : vector<8x8xbf16> to vector<1x8x8xbf16>
    %41 = vector.extract_strided_slice %14 {offsets = [0, 24], sizes = [8, 8], strides = [1, 1]} : vector<8x32xbf16> to vector<8x8xbf16>
    %42 = vector.shape_cast %41 : vector<8x8xbf16> to vector<1x8x8xbf16>
    %43 = vector.shape_cast %36 : vector<1x8x8xbf16> to vector<1x1x8x8xbf16>
    %44 = vector.shape_cast %38 : vector<1x8x8xbf16> to vector<1x1x8x8xbf16>
    %45 = vector.shape_cast %40 : vector<1x8x8xbf16> to vector<1x1x8x8xbf16>
    %46 = vector.shape_cast %42 : vector<1x8x8xbf16> to vector<1x1x8x8xbf16>
    %47 = tpu.concatenate %43, %44, %45, %46 in 1 : vector<1x1x8x8xbf16>, vector<1x1x8x8xbf16>, vector<1x1x8x8xbf16>, vector<1x1x8x8xbf16> -> vector<1x4x8x8xbf16>
    %48 = vector.shape_cast %47 : vector<1x4x8x8xbf16> to vector<4x8x8xbf16>
    %49 = vector.extract_strided_slice %20 {offsets = [0, 0], sizes = [8, 8], strides = [1, 1]} : vector<8x32xbf16> to vector<8x8xbf16>
    %50 = vector.shape_cast %49 : vector<8x8xbf16> to vector<1x8x8xbf16>
    %51 = vector.extract_strided_slice %20 {offsets = [0, 8], sizes = [8, 8], strides = [1, 1]} : vector<8x32xbf16> to vector<8x8xbf16>
    %52 = vector.shape_cast %51 : vector<8x8xbf16> to vector<1x8x8xbf16>
    %53 = vector.extract_strided_slice %20 {offsets = [0, 16], sizes = [8, 8], strides = [1, 1]} : vector<8x32xbf16> to vector<8x8xbf16>
    %54 = vector.shape_cast %53 : vector<8x8xbf16> to vector<1x8x8xbf16>
    %55 = vector.extract_strided_slice %20 {offsets = [0, 24], sizes = [8, 8], strides = [1, 1]} : vector<8x32xbf16> to vector<8x8xbf16>
    %56 = vector.shape_cast %55 : vector<8x8xbf16> to vector<1x8x8xbf16>
    %57 = vector.shape_cast %50 : vector<1x8x8xbf16> to vector<1x1x8x8xbf16>
    %58 = vector.shape_cast %52 : vector<1x8x8xbf16> to vector<1x1x8x8xbf16>
    %59 = vector.shape_cast %54 : vector<1x8x8xbf16> to vector<1x1x8x8xbf16>
    %60 = vector.shape_cast %56 : vector<1x8x8xbf16> to vector<1x1x8x8xbf16>
    %61 = tpu.concatenate %57, %58, %59, %60 in 1 : vector<1x1x8x8xbf16>, vector<1x1x8x8xbf16>, vector<1x1x8x8xbf16>, vector<1x1x8x8xbf16> -> vector<1x4x8x8xbf16>
    %62 = vector.shape_cast %61 : vector<1x4x8x8xbf16> to vector<4x8x8xbf16>
    "tpu.trace_start"() <{level = 10 : i32, message = "nqd,nkd->nqk"}> : () -> ()
    %cst_16 = arith.constant dense<0.000000e+00> : vector<4x8x8xf32>
    %63 = tpu.matmul %34, %48, %cst_16 {dimension_numbers = #tpu.dot_dimension_numbers<[2], [2], [1], [1], [0, 0, 0, 1, 1, 1], [0], [0]>} : vector<4x8x8xbf16>, vector<4x8x8xbf16>, vector<4x8x8xf32> -> vector<4x8x8xf32>
    "tpu.trace_stop"() : () -> ()
    %c0_17 = arith.constant 0 : index
    %c0_18 = arith.constant 0 : index
    %c0_19 = arith.constant 0 : index
    %64 = vector.load %arg2[%c0_17, %c0_18, %c0_19] : memref<1x1x8xf32, #tpu.memory_space<vmem>>, vector<1x1x8xf32>
    %65 = vector.shape_cast %64 : vector<1x1x8xf32> to vector<1x1x1x8xf32>
    %66 = vector.shape_cast %65 : vector<1x1x1x8xf32> to vector<1x1x1x8xf32>
    %67 = vector.broadcast %66 : vector<1x1x1x8xf32> to vector<1x4x1x8xf32>
    %68 = vector.shape_cast %67 : vector<1x4x1x8xf32> to vector<4x1x8xf32>
    %69 = vector.broadcast %68 : vector<4x1x8xf32> to vector<4x8x8xf32>
    %70 = arith.minimumf %63, %69 : vector<4x8x8xf32>
    %cst_20 = arith.constant dense<0xFF800000> : vector<4x8xf32>
    %71 = vector.multi_reduction <maximumf>, %70, %cst_20 [2] : vector<4x8x8xf32> to vector<4x8xf32>
    %72 = vector.shape_cast %71 : vector<4x8xf32> to vector<4x8x1xf32>
    %73 = vector.broadcast %72 : vector<4x8x1xf32> to vector<4x8x8xf32>
    %74 = arith.subf %70, %73 : vector<4x8x8xf32>
    %75 = math.exp %74 : vector<4x8x8xf32>
    %cst_21 = arith.constant dense<0.000000e+00> : vector<4x8xf32>
    %76 = vector.multi_reduction <add>, %75, %cst_21 [2] : vector<4x8x8xf32> to vector<4x8xf32>
    %77 = vector.shape_cast %76 : vector<4x8xf32> to vector<4x8x1xf32>
    %78 = tpu.reciprocal %77 {approx = true} : vector<4x8x1xf32> -> vector<4x8x1xf32>
    %79 = vector.broadcast %78 : vector<4x8x1xf32> to vector<4x8x8xf32>
    %80 = arith.mulf %75, %79 : vector<4x8x8xf32>
    %81 = vector.shape_cast %80 : vector<4x8x8xf32> to vector<1x4x8x8xf32>
    %c0_22 = arith.constant 0 : index
    %c0_23 = arith.constant 0 : index
    %c0_24 = arith.constant 0 : index
    %c0_25 = arith.constant 0 : index
    %82 = vector.load %arg20[%c0_22, %c0_23, %c0_24, %c0_25] : memref<1x4x8x8xf32, #tpu.memory_space<vmem>>, vector<1x4x8x8xf32>
    tpu.vector_store %arg20[%c0_22, %c0_23, %c0_24, %c0_25], %81 {strides = array<i32>} : memref<1x4x8x8xf32, #tpu.memory_space<vmem>>, vector<1x4x8x8xf32>,
    %83 = arith.truncf %80 : vector<4x8x8xf32> to vector<4x8x8xbf16>
    "tpu.trace_start"() <{level = 10 : i32, message = "nqk,nkd->nqd"}> : () -> ()
    %cst_26 = arith.constant dense<0.000000e+00> : vector<4x8x8xf32>
    %84 = tpu.matmul %83, %62, %cst_26 {dimension_numbers = #tpu.dot_dimension_numbers<[2], [1], [1], [2], [0, 0, 0, 1, 1, 2], [0], [0]>} : vector<4x8x8xbf16>, vector<4x8x8xbf16>, vector<4x8x8xf32> -> vector<4x8x8xf32>
    "tpu.trace_stop"() : () -> ()
    %85 = vector.shape_cast %84 : vector<4x8x8xf32> to vector<1x4x8x8xf32>
    %86 = vector.extract_strided_slice %85 {offsets = [0, 0, 0, 0], sizes = [1, 1, 8, 8], strides = [1, 1, 1, 1]} : vector<1x4x8x8xf32> to vector<1x1x8x8xf32>
    %87 = vector.shape_cast %86 : vector<1x1x8x8xf32> to vector<1x8x8xf32>
    %88 = vector.shape_cast %87 : vector<1x8x8xf32> to vector<8x8xf32>
    %89 = arith.truncf %88 : vector<8x8xf32> to vector<8x8xbf16>
    %c0_27 = arith.constant 0 : index
    %c0_28 = arith.constant 0 : index
    %90 = vector.load %arg21[%c0_27, %c0_28] : memref<8x32xbf16, #tpu.memory_space<vmem>>, vector<8x8xbf16>
    tpu.vector_store %arg21[%c0_27, %c0_28], %89 {strides = array<i32>} : memref<8x32xbf16, #tpu.memory_space<vmem>>, vector<8x8xbf16>,
    %91 = vector.extract_strided_slice %85 {offsets = [0, 1, 0, 0], sizes = [1, 1, 8, 8], strides = [1, 1, 1, 1]} : vector<1x4x8x8xf32> to vector<1x1x8x8xf32>
    %92 = vector.shape_cast %91 : vector<1x1x8x8xf32> to vector<1x8x8xf32>
    %93 = vector.shape_cast %92 : vector<1x8x8xf32> to vector<8x8xf32>
    %94 = arith.truncf %93 : vector<8x8xf32> to vector<8x8xbf16>
    %c0_29 = arith.constant 0 : index
    %c8 = arith.constant 8 : index
    %95 = vector.load %arg21[%c0_29, %c8] : memref<8x32xbf16, #tpu.memory_space<vmem>>, vector<8x8xbf16>
    tpu.vector_store %arg21[%c0_29, %c8], %94 {strides = array<i32>} : memref<8x32xbf16, #tpu.memory_space<vmem>>, vector<8x8xbf16>,
    %96 = vector.extract_strided_slice %85 {offsets = [0, 2, 0, 0], sizes = [1, 1, 8, 8], strides = [1, 1, 1, 1]} : vector<1x4x8x8xf32> to vector<1x1x8x8xf32>
    %97 = vector.shape_cast %96 : vector<1x1x8x8xf32> to vector<1x8x8xf32>
    %98 = vector.shape_cast %97 : vector<1x8x8xf32> to vector<8x8xf32>
    %99 = arith.truncf %98 : vector<8x8xf32> to vector<8x8xbf16>
    %c0_30 = arith.constant 0 : index
    %c16 = arith.constant 16 : index
    %100 = vector.load %arg21[%c0_30, %c16] : memref<8x32xbf16, #tpu.memory_space<vmem>>, vector<8x8xbf16>
    tpu.vector_store %arg21[%c0_30, %c16], %99 {strides = array<i32>} : memref<8x32xbf16, #tpu.memory_space<vmem>>, vector<8x8xbf16>,
    %101 = vector.extract_strided_slice %85 {offsets = [0, 3, 0, 0], sizes = [1, 1, 8, 8], strides = [1, 1, 1, 1]} : vector<1x4x8x8xf32> to vector<1x1x8x8xf32>
    %102 = vector.shape_cast %101 : vector<1x1x8x8xf32> to vector<1x8x8xf32>
    %103 = vector.shape_cast %102 : vector<1x8x8xf32> to vector<8x8xf32>
    %104 = arith.truncf %103 : vector<8x8xf32> to vector<8x8xbf16>
    %c0_31 = arith.constant 0 : index
    %c24 = arith.constant 24 : index
    %105 = vector.load %arg21[%c0_31, %c24] : memref<8x32xbf16, #tpu.memory_space<vmem>>, vector<8x8xbf16>
    tpu.vector_store %arg21[%c0_31, %c24], %104 {strides = array<i32>} : memref<8x32xbf16, #tpu.memory_space<vmem>>, vector<8x8xbf16>,
    %c0_32 = arith.constant 0 : index
    %c0_33 = arith.constant 0 : index
    %106 = vector.load %arg21[%c0_32, %c0_33] : memref<8x32xbf16, #tpu.memory_space<vmem>>, vector<8x32xbf16>
    %c0_34 = arith.constant 0 : index
    %c0_35 = arith.constant 0 : index
    %107 = vector.load %arg9[%c0_34, %c0_35] : memref<32x32xbf16, #tpu.memory_space<vmem>>, vector<32x32xbf16>
    %cst_36 = arith.constant dense<0.000000e+00> : vector<8x32xf32>
    %108 = tpu.matmul %106, %107, %cst_36 {dimension_numbers = #tpu.dot_dimension_numbers<[1], [0], [0], [1], [0, 0, 1, 1], [], []>} : vector<8x32xbf16>, vector<32x32xbf16>, vector<8x32xf32> -> vector<8x32xf32>
    %c0_37 = arith.constant 0 : index
    %c0_38 = arith.constant 0 : index
    %109 = vector.load %arg10[%c0_37, %c0_38] : memref<1x32xf32, #tpu.memory_space<vmem>>, vector<1x32xf32>
    %110 = vector.broadcast %109 : vector<1x32xf32> to vector<8x32xf32>
    %111 = arith.addf %108, %110 : vector<8x32xf32>
    %112 = arith.addf %111, %1 : vector<8x32xf32>
    %cst_39 = arith.constant dense<0.000000e+00> : vector<8xf32>
    %113 = vector.multi_reduction <add>, %112, %cst_39 [1] : vector<8x32xf32> to vector<8xf32>
    %114 = vector.shape_cast %113 : vector<8xf32> to vector<8x1xf32>
    %cst_40 = arith.constant 3.200000e+01 : f32
    %115 = vector.broadcast %cst_40 : f32 to vector<8x1xf32>
    %116 = arith.divf %114, %115 : vector<8x1xf32>
    %117 = vector.broadcast %116 : vector<8x1xf32> to vector<8x32xf32>
    %118 = arith.subf %112, %117 : vector<8x32xf32>
    %119 = arith.mulf %118, %118 : vector<8x32xf32>
    %cst_41 = arith.constant dense<0.000000e+00> : vector<8xf32>
    %120 = vector.multi_reduction <add>, %119, %cst_41 [1] : vector<8x32xf32> to vector<8xf32>
    %121 = vector.shape_cast %120 : vector<8xf32> to vector<8x1xf32>
    %cst_42 = arith.constant 3.200000e+01 : f32
    %122 = vector.broadcast %cst_42 : f32 to vector<8x1xf32>
    %123 = arith.divf %121, %122 : vector<8x1xf32>
    %124 = vector.broadcast %116 : vector<8x1xf32> to vector<8x32xf32>
    %125 = arith.subf %112, %124 : vector<8x32xf32>
    %cst_43 = arith.constant 9.99999996E-13 : f32
    %126 = vector.broadcast %cst_43 : f32 to vector<8x1xf32>
    %127 = arith.addf %123, %126 : vector<8x1xf32>
    %128 = math.rsqrt %127 : vector<8x1xf32>
    %129 = vector.broadcast %128 : vector<8x1xf32> to vector<8x32xf32>
    %130 = arith.mulf %125, %129 : vector<8x32xf32>
    %c0_44 = arith.constant 0 : index
    %c0_45 = arith.constant 0 : index
    %131 = vector.load %arg11[%c0_44, %c0_45] : memref<1x32xf32, #tpu.memory_space<vmem>>, vector<1x32xf32>
    %132 = vector.broadcast %131 : vector<1x32xf32> to vector<8x32xf32>
    %133 = arith.mulf %130, %132 : vector<8x32xf32>
    %c0_46 = arith.constant 0 : index
    %c0_47 = arith.constant 0 : index
    %134 = vector.load %arg12[%c0_46, %c0_47] : memref<1x32xf32, #tpu.memory_space<vmem>>, vector<1x32xf32>
    %135 = vector.broadcast %134 : vector<1x32xf32> to vector<8x32xf32>
    %136 = arith.addf %133, %135 : vector<8x32xf32>
    %137 = arith.truncf %136 : vector<8x32xf32> to vector<8x32xbf16>
    %c0_48 = arith.constant 0 : index
    %c0_49 = arith.constant 0 : index
    %138 = vector.load %arg13[%c0_48, %c0_49] : memref<32x64xbf16, #tpu.memory_space<vmem>>, vector<32x64xbf16>
    %cst_50 = arith.constant dense<0.000000e+00> : vector<8x64xf32>
    %139 = tpu.matmul %137, %138, %cst_50 {dimension_numbers = #tpu.dot_dimension_numbers<[1], [0], [0], [1], [0, 0, 1, 1], [], []>} : vector<8x32xbf16>, vector<32x64xbf16>, vector<8x64xf32> -> vector<8x64xf32>
    %c0_51 = arith.constant 0 : index
    %c0_52 = arith.constant 0 : index
    %140 = vector.load %arg14[%c0_51, %c0_52] : memref<1x64xf32, #tpu.memory_space<vmem>>, vector<1x64xf32>
    %141 = vector.broadcast %140 : vector<1x64xf32> to vector<8x64xf32>
    %142 = arith.addf %139, %141 : vector<8x64xf32>
    %cst_53 = arith.constant 0.000000e+00 : f32
    %143 = vector.broadcast %cst_53 : f32 to vector<8x64xf32>
    %144 = arith.maximumf %142, %143 : vector<8x64xf32>
    %145 = arith.truncf %144 : vector<8x64xf32> to vector<8x64xbf16>
    %c0_54 = arith.constant 0 : index
    %c0_55 = arith.constant 0 : index
    %146 = vector.load %arg15[%c0_54, %c0_55] : memref<64x32xbf16, #tpu.memory_space<vmem>>, vector<64x32xbf16>
    %cst_56 = arith.constant dense<0.000000e+00> : vector<8x32xf32>
    %147 = tpu.matmul %145, %146, %cst_56 {dimension_numbers = #tpu.dot_dimension_numbers<[1], [0], [0], [1], [0, 0, 1, 1], [], []>} : vector<8x64xbf16>, vector<64x32xbf16>, vector<8x32xf32> -> vector<8x32xf32>
    %c0_57 = arith.constant 0 : index
    %c0_58 = arith.constant 0 : index
    %148 = vector.load %arg16[%c0_57, %c0_58] : memref<1x32xf32, #tpu.memory_space<vmem>>, vector<1x32xf32>
    %149 = vector.broadcast %148 : vector<1x32xf32> to vector<8x32xf32>
    %150 = arith.addf %147, %149 : vector<8x32xf32>
    %151 = arith.addf %150, %136 : vector<8x32xf32>
    %cst_59 = arith.constant dense<0.000000e+00> : vector<8xf32>
    %152 = vector.multi_reduction <add>, %151, %cst_59 [1] : vector<8x32xf32> to vector<8xf32>
    %153 = vector.shape_cast %152 : vector<8xf32> to vector<8x1xf32>
    %cst_60 = arith.constant 3.200000e+01 : f32
    %154 = vector.broadcast %cst_60 : f32 to vector<8x1xf32>
    %155 = arith.divf %153, %154 : vector<8x1xf32>
    %156 = vector.broadcast %155 : vector<8x1xf32> to vector<8x32xf32>
    %157 = arith.subf %151, %156 : vector<8x32xf32>
    %158 = arith.mulf %157, %157 : vector<8x32xf32>
    %cst_61 = arith.constant dense<0.000000e+00> : vector<8xf32>
    %159 = vector.multi_reduction <add>, %158, %cst_61 [1] : vector<8x32xf32> to vector<8xf32>
    %160 = vector.shape_cast %159 : vector<8xf32> to vector<8x1xf32>
    %cst_62 = arith.constant 3.200000e+01 : f32
    %161 = vector.broadcast %cst_62 : f32 to vector<8x1xf32>
    %162 = arith.divf %160, %161 : vector<8x1xf32>
    %163 = vector.broadcast %155 : vector<8x1xf32> to vector<8x32xf32>
    %164 = arith.subf %151, %163 : vector<8x32xf32>
    %cst_63 = arith.constant 9.99999996E-13 : f32
    %165 = vector.broadcast %cst_63 : f32 to vector<8x1xf32>
    %166 = arith.addf %162, %165 : vector<8x1xf32>
    %167 = math.rsqrt %166 : vector<8x1xf32>
    %168 = vector.broadcast %167 : vector<8x1xf32> to vector<8x32xf32>
    %169 = arith.mulf %164, %168 : vector<8x32xf32>
    %c0_64 = arith.constant 0 : index
    %c0_65 = arith.constant 0 : index
    %170 = vector.load %arg17[%c0_64, %c0_65] : memref<1x32xf32, #tpu.memory_space<vmem>>, vector<1x32xf32>
    %171 = vector.broadcast %170 : vector<1x32xf32> to vector<8x32xf32>
    %172 = arith.mulf %169, %171 : vector<8x32xf32>
    %c0_66 = arith.constant 0 : index
    %c0_67 = arith.constant 0 : index
    %173 = vector.load %arg18[%c0_66, %c0_67] : memref<1x32xf32, #tpu.memory_space<vmem>>, vector<1x32xf32>
    %174 = vector.broadcast %173 : vector<1x32xf32> to vector<8x32xf32>
    %175 = arith.addf %172, %174 : vector<8x32xf32>
    %176 = vector.shape_cast %175 : vector<8x32xf32> to vector<1x8x32xf32>
    %c0_68 = arith.constant 0 : index
    %c0_69 = arith.constant 0 : index
    %c0_70 = arith.constant 0 : index
    %177 = vector.load %arg19[%c0_68, %c0_69, %c0_70] : memref<1x8x32xf32, #tpu.memory_space<vmem>>, vector<1x8x32xf32>
    tpu.vector_store %arg19[%c0_68, %c0_69, %c0_70], %176 {strides = array<i32>} : memref<1x8x32xf32, #tpu.memory_space<vmem>>, vector<1x8x32xf32>,
    return
  }
  func.func @transform_0(%arg0: i32) -> (i32, i32, i32) {
    %c0_i32 = arith.constant 0 : i32
    %c0_i32_0 = arith.constant 0 : i32
    %c0_i32_1 = arith.constant 0 : i32
    return %arg0, %c0_i32, %c0_i32_0 : i32, i32, i32
  }
  func.func @transform_1(%arg0: i32) -> (i32, i32, i32) {
    %c0_i32 = arith.constant 0 : i32
    %c0_i32_0 = arith.constant 0 : i32
    %c0_i32_1 = arith.constant 0 : i32
    return %arg0, %c0_i32, %c0_i32_0 : i32, i32, i32
  }
  func.func @transform_2(%arg0: i32) -> (i32, i32) {
    %c0_i32 = arith.constant 0 : i32
    %c0_i32_0 = arith.constant 0 : i32
    %c0_i32_1 = arith.constant 0 : i32
    return %c0_i32, %c0_i32_0 : i32, i32
  }
  func.func @transform_3(%arg0: i32) -> (i32, i32) {
    %c0_i32 = arith.constant 0 : i32
    %c0_i32_0 = arith.constant 0 : i32
    %c0_i32_1 = arith.constant 0 : i32
    return %c0_i32, %c0_i32_0 : i32, i32
  }
  func.func @transform_4(%arg0: i32) -> (i32, i32) {
    %c0_i32 = arith.constant 0 : i32
    %c0_i32_0 = arith.constant 0 : i32
    %c0_i32_1 = arith.constant 0 : i32
    return %c0_i32, %c0_i32_0 : i32, i32
  }
  func.func @transform_5(%arg0: i32) -> (i32, i32) {
    %c0_i32 = arith.constant 0 : i32
    %c0_i32_0 = arith.constant 0 : i32
    %c0_i32_1 = arith.constant 0 : i32
    return %c0_i32, %c0_i32_0 : i32, i32
  }
  func.func @transform_6(%arg0: i32) -> (i32, i32) {
    %c0_i32 = arith.constant 0 : i32
    %c0_i32_0 = arith.constant 0 : i32
    %c0_i32_1 = arith.constant 0 : i32
    return %c0_i32, %c0_i32_0 : i32, i32
  }
  func.func @transform_7(%arg0: i32) -> (i32, i32) {
    %c0_i32 = arith.constant 0 : i32
    %c0_i32_0 = arith.constant 0 : i32
    %c0_i32_1 = arith.constant 0 : i32
    return %c0_i32, %c0_i32_0 : i32, i32
  }
  func.func @transform_8(%arg0: i32) -> (i32, i32) {
    %c0_i32 = arith.constant 0 : i32
    %c0_i32_0 = arith.constant 0 : i32
    %c0_i32_1 = arith.constant 0 : i32
    return %c0_i32, %c0_i32_0 : i32, i32
  }
  func.func @transform_9(%arg0: i32) -> (i32, i32) {
    %c0_i32 = arith.constant 0 : i32
    %c0_i32_0 = arith.constant 0 : i32
    %c0_i32_1 = arith.constant 0 : i32
    return %c0_i32, %c0_i32_0 : i32, i32
  }
  func.func @transform_10(%arg0: i32) -> (i32, i32) {
    %c0_i32 = arith.constant 0 : i32
    %c0_i32_0 = arith.constant 0 : i32
    %c0_i32_1 = arith.constant 0 : i32
    return %c0_i32, %c0_i32_0 : i32, i32
  }
  func.func @transform_11(%arg0: i32) -> (i32, i32) {
    %c0_i32 = arith.constant 0 : i32
    %c0_i32_0 = arith.constant 0 : i32
    %c0_i32_1 = arith.constant 0 : i32
    return %c0_i32, %c0_i32_0 : i32, i32
  }
  func.func @transform_12(%arg0: i32) -> (i32, i32) {
    %c0_i32 = arith.constant 0 : i32
    %c0_i32_0 = arith.constant 0 : i32
    %c0_i32_1 = arith.constant 0 : i32
    return %c0_i32, %c0_i32_0 : i32, i32
  }
  func.func @transform_13(%arg0: i32) -> (i32, i32) {
    %c0_i32 = arith.constant 0 : i32
    %c0_i32_0 = arith.constant 0 : i32
    %c0_i32_1 = arith.constant 0 : i32
    return %c0_i32, %c0_i32_0 : i32, i32
  }
  func.func @transform_14(%arg0: i32) -> (i32, i32) {
    %c0_i32 = arith.constant 0 : i32
    %c0_i32_0 = arith.constant 0 : i32
    %c0_i32_1 = arith.constant 0 : i32
    return %c0_i32, %c0_i32_0 : i32, i32
  }
  func.func @transform_15(%arg0: i32) -> (i32, i32) {
    %c0_i32 = arith.constant 0 : i32
    %c0_i32_0 = arith.constant 0 : i32
    %c0_i32_1 = arith.constant 0 : i32
    return %c0_i32, %c0_i32_0 : i32, i32
  }
  func.func @transform_16(%arg0: i32) -> (i32, i32) {
    %c0_i32 = arith.constant 0 : i32
    %c0_i32_0 = arith.constant 0 : i32
    %c0_i32_1 = arith.constant 0 : i32
    return %c0_i32, %c0_i32_0 : i32, i32
  }
  func.func @transform_17(%arg0: i32) -> (i32, i32) {
    %c0_i32 = arith.constant 0 : i32
    %c0_i32_0 = arith.constant 0 : i32
    %c0_i32_1 = arith.constant 0 : i32
    return %c0_i32, %c0_i32_0 : i32, i32
  }
  func.func @transform_18(%arg0: i32) -> (i32, i32, i32) {
    %c0_i32 = arith.constant 0 : i32
    %c0_i32_0 = arith.constant 0 : i32
    %c0_i32_1 = arith.constant 0 : i32
    return %arg0, %c0_i32, %c0_i32_0 : i32, i32, i32
  }
  func.func @transform_19(%arg0: i32) -> (i32, i32, i32, i32) {
    %c0_i32 = arith.constant 0 : i32
    %c0_i32_0 = arith.constant 0 : i32
    %c0_i32_1 = arith.constant 0 : i32
    %c0_i32_2 = arith.constant 0 : i32
    return %arg0, %c0_i32, %c0_i32_0, %c0_i32_1 : i32, i32, i32, i32
  }
}

</mosaic_0001>

<llo_original>
// kernel: tpu_custom_call.1
$region0: #{tpu_custom_call.1}
  #allocation0 [shape = 'u32[]', space=smem, size = 0x4, offset = 0x4, fixed_abs, tag = 'smem constant byte address 0x4 - core index']
  #allocation1 [shape = 'u32[144,128]{1,0:T(1,128)}', space=vmem, size = 0x12000, scoped, tag = 'internal scratch']
  #allocation2 [shape = 'bf16[8,32]{1,0:T(8,128)(2,1)}', space=vmem, size = 0x800, scoped, tag = 'scratch operand']
  %s0 = inlined_call_operand.vmem [shape: f32[2,8,32], index: 0, kind: input, shape index: {}]
  %s1 = inlined_call_operand.vmem [shape: f32[2,1,8], index: 1, kind: input, shape index: {}]
  %s2 = inlined_call_operand.vmem [shape: bf16[32,32], index: 2, kind: input, shape index: {}]
  %s3 = inlined_call_operand.hbm [shape: f32[1,32], index: 3, kind: input, shape index: {}]
  %s4 = inlined_call_operand.vmem [shape: bf16[32,32], index: 4, kind: input, shape index: {}]
  %s5 = inlined_call_operand.hbm [shape: f32[1,32], index: 5, kind: input, shape index: {}]
  %s6 = inlined_call_operand.hbm [shape: bf16[32,32], index: 6, kind: input, shape index: {}]
  %s7 = inlined_call_operand.hbm [shape: f32[1,32], index: 7, kind: input, shape index: {}]
  %s8 = inlined_call_operand.hbm [shape: bf16[32,32], index: 8, kind: input, shape index: {}]
  %s9 = inlined_call_operand.hbm [shape: f32[1,32], index: 9, kind: input, shape index: {}]
  %s10 = inlined_call_operand.vmem [shape: f32[1,32], index: 10, kind: input, shape index: {}]
  %s11 = inlined_call_operand.vmem [shape: f32[1,32], index: 11, kind: input, shape index: {}]
  %s12 = inlined_call_operand.vmem [shape: bf16[32,64], index: 12, kind: input, shape index: {}]
  %s13 = inlined_call_operand.vmem [shape: f32[1,64], index: 13, kind: input, shape index: {}]
  %s14 = inlined_call_operand.vmem [shape: bf16[64,32], index: 14, kind: input, shape index: {}]
  %s15 = inlined_call_operand.vmem [shape: f32[1,32], index: 15, kind: input, shape index: {}]
  %s16 = inlined_call_operand.vmem [shape: f32[1,32], index: 16, kind: input, shape index: {}]
  %s17 = inlined_call_operand.vmem [shape: f32[1,32], index: 17, kind: input, shape index: {}]
  %s18 = inlined_call_operand.hbm [shape: f32[2,8,32], index: 18, kind: output, shape index: {0}]
  %s19 = inlined_call_operand.hbm [shape: f32[2,4,8,8], index: 19, kind: output, shape index: {1}]
  %20 = xla_tuple %s18, %s19
  %s21 = sld [smem:[#allocation0]]
  $region137: #{tpu_custom_call.1} parent=0
    _
  %s23 = ssub.s32 1, %s21
  %s24 = scalar_select 0, %s23, %s21
  $region1: #{tpu_custom_call.1} parent=0
    #allocation3 [shape = 'u8[512]{0}', space=vmem, size = 0x400, scoped, tag = 'input window, operand 3, single buffered']
    #allocation4 [shape = 's32[2]{0}', space=sflag, size = 0x8, scoped, tag = 'scoped memory for tpu_custom_call.1']
    #allocation5 [shape = 's32[2]{0}', space=sflag, size = 0x8, scoped, tag = 'scoped memory for tpu_custom_call.1']
    #allocation6 [shape = 'u8[512]{0}', space=vmem, size = 0x400, scoped, tag = 'input window, operand 5, single buffered']
    #allocation7 [shape = 's32[1]{0}', space=sflag, size = 0x4, scoped, tag = 'scoped memory for tpu_custom_call.1']
    #allocation8 [shape = 'u8[8192]{0}', space=vmem, size = 0x2000, scoped, tag = 'input window, operand 6, single buffered']
    #allocation9 [shape = 'u8[512]{0}', space=vmem, size = 0x400, scoped, tag = 'input window, operand 7, single buffered']
    #allocation10 [shape = 's32[1]{0}', space=sflag, size = 0x4, scoped, tag = 'scoped memory for tpu_custom_call.1']
    #allocation11 [shape = 'u8[8192]{0}', space=vmem, size = 0x2000, scoped, tag = 'input window, operand 8, single buffered']
    #allocation12 [shape = 'u8[512]{0}', space=vmem, size = 0x400, scoped, tag = 'input window, operand 9, single buffered']
    #allocation13 [shape = 's32[1]{0}', space=sflag, size = 0x4, scoped, tag = 'scoped memory for tpu_custom_call.1']
    #allocation14 [shape = 'u8[8192]{0}', space=vmem, size = 0x2000, scoped, tag = 'output window, operand 0']
    #allocation15 [shape = 'u8[32768]{0}', space=vmem, size = 0x8000, scoped, tag = 'output window, operand 1']
    #allocation16 [shape = 's32[2]{0}', space=sflag, size = 0x8, scoped, tag = 'scoped memory for tpu_custom_call.1']
    %25 = vsyncpa [#allocation4], 0
    %26 = vsyncpa [#allocation7], 0
    %27 = vsyncpa [#allocation10], 0
    %28 = vsyncpa [#allocation13], 0
    %29 = vsyncpa [#allocation5], 0
    %s30 = scalar_lea.sflag [#allocation5], 1
    %31 = vsyncpa %s30, 0
    %32 = vsyncpa [#allocation16], 0
    %s33 = scalar_lea.sflag [#allocation16], 1
    %34 = vsyncpa %s33, 0
    loop: start=0, step=1, limit=4
    $region2: #{tpu_custom_call.1} parent=1 // loop_pre_header
      _
    $region3: #{tpu_custom_call.1} parent=1 // loop_header
      %s36 = sphi 0, %s40
      %p37 = scmp.ge.s32.totalorder %s36, 4
      %s46 = sphi 0, %s48
      %s49 = sphi 0, %s46
      %s50 = sphi 0, %s49
      %s66 = sphi 0, %s50
      %s72 = sphi 0, %s74
      %s75 = sphi 0, %s72
      %s76 = sphi 0, %s75
      %s92 = sphi 0, %s76
      %s96 = sphi 0, %s96
      %s98 = sphi 0, %s96
      %s99 = sphi 0, %s98
      %s113 = sphi 0, %s99
      %s117 = sphi 0, %s117
      %s119 = sphi 0, %s117
      %s120 = sphi 0, %s119
      %s134 = sphi 0, %s120
      %s138 = sphi 0, %s138
      %s140 = sphi 0, %s138
      %s141 = sphi 0, %s140
      %s155 = sphi 0, %s141
      %s159 = sphi 0, %s159
      %s161 = sphi 0, %s159
      %s162 = sphi 0, %s161
      %s176 = sphi 0, %s162
      %s180 = sphi 0, %s180
      %s182 = sphi 0, %s180
      %s183 = sphi 0, %s182
      %s197 = sphi 0, %s183
      %s201 = sphi 0, %s201
      %s203 = sphi 0, %s201
      %s204 = sphi 0, %s203
      %s218 = sphi 0, %s204
      %s222 = sphi 0, %s222
      %s224 = sphi 0, %s222
      %s225 = sphi 0, %s224
      %s239 = sphi 0, %s225
      %s243 = sphi 0, %s243
      %s245 = sphi 0, %s243
      %s246 = sphi 0, %s245
      %s260 = sphi 0, %s246
      %s264 = sphi 0, %s264
      %s266 = sphi 0, %s264
      %s267 = sphi 0, %s266
      %s281 = sphi 0, %s267
      %s285 = sphi 0, %s285
      %s287 = sphi 0, %s285
      %s288 = sphi 0, %s287
      %s302 = sphi 0, %s288
      %s306 = sphi 0, %s306
      %s308 = sphi 0, %s306
      %s309 = sphi 0, %s308
      %s323 = sphi 0, %s309
      %s327 = sphi 0, %s327
      %s329 = sphi 0, %s327
      %s330 = sphi 0, %s329
      %s344 = sphi 0, %s330
      %s348 = sphi 0, %s348
      %s350 = sphi 0, %s348
      %s351 = sphi 0, %s350
      %s365 = sphi 0, %s351
      %s369 = sphi 0, %s369
      %s371 = sphi 0, %s369
      %s372 = sphi 0, %s371
      %s386 = sphi 0, %s372
      %s390 = sphi 0, %s390
      %s392 = sphi 0, %s390
      %s393 = sphi 0, %s392
      %s407 = sphi 0, %s393
      %s411 = sphi 0, %s411
      %s413 = sphi 0, %s411
      %s414 = sphi 0, %s413
      %s428 = sphi 0, %s414
      %s434 = sphi 0, %s436
      %s437 = sphi 0, %s434
      %s438 = sphi 0, %s437
      %s454 = sphi 0, %s438
      %s460 = sphi 0, %s462
      %s463 = sphi 0, %s460
      %s464 = sphi 0, %s463
      %s480 = sphi 0, %s464
    $region4: #{tpu_custom_call.1} parent=1 // loop_header_branch
      %39 = sbr.rel (%p37) target = $region8
    $region5: #{tpu_custom_call.1} parent=1 // loop_body
      %s41 = ssub.s32 %s36, 1
      %s42 = ssub.s32 %s36, 2
      %s43 = sadd.s32 %s36, 1
      %s44 = ssub.s32 %s36, %s43
      %p45 = scmp.eq.s32.totalorder %s44, 0
      %s47 = sadd.s32 %s46, 1
      %s48 = scalar_select %p45, %s46, %s47
      %p51 = pneg %p45
      %p52 = scmp.eq.s32.totalorder %s36, 1
      %p53 = por %p51, %p52
      %p54 = scmp.ne.s32.totalorder %s46, %s49
      %p55 = scmp.eq.s32.totalorder %s36, 0
      %p56 = por %p54, %p55
      %p57 = scmp.ne.s32.totalorder %s46, %s49
      %p58 = scmp.eq.s32.totalorder %s41, 1
      %p59 = por %p57, %p58
      %p60 = scmp.ne.s32.totalorder %s49, %s50
      %p61 = scmp.eq.s32.totalorder %s41, 0
      %p62 = por %p60, %p61
      %p63 = scmp.ne.s32.totalorder %s49, %s50
      %p64 = scmp.eq.s32.totalorder %s42, 1
      %p65 = por %p63, %p64
      %p67 = scmp.ne.s32.totalorder %s50, %s66
      %p68 = scmp.eq.s32.totalorder %s42, 0
      %p69 = por %p67, %p68
      %s70 = ssub.s32 %s36, %s43
      %p71 = scmp.eq.s32.totalorder %s70, 0
      %s73 = sadd.s32 %s72, 1
      %s74 = scalar_select %p71, %s72, %s73
      %p77 = pneg %p71
      %p78 = scmp.eq.s32.totalorder %s36, 1
      %p79 = por %p77, %p78
      %p80 = scmp.ne.s32.totalorder %s72, %s75
      %p81 = scmp.eq.s32.totalorder %s36, 0
      %p82 = por %p80, %p81
      %p83 = scmp.ne.s32.totalorder %s72, %s75
      %p84 = scmp.eq.s32.totalorder %s41, 1
      %p85 = por %p83, %p84
      %p86 = scmp.ne.s32.totalorder %s75, %s76
      %p87 = scmp.eq.s32.totalorder %s41, 0
      %p88 = por %p86, %p87
      %p89 = scmp.ne.s32.totalorder %s75, %s76
      %p90 = scmp.eq.s32.totalorder %s42, 1
      %p91 = por %p89, %p90
      %p93 = scmp.ne.s32.totalorder %s76, %s92
      %p94 = scmp.eq.s32.totalorder %s42, 0
      %p95 = por %p93, %p94
      %s97 = sadd.s32 %s96, 1
      %p100 = scmp.eq.s32.totalorder %s36, 1
      %p101 = scmp.ne.s32.totalorder %s96, %s98
      %p102 = scmp.eq.s32.totalorder %s36, 0
      %p103 = por %p101, %p102
      %p104 = scmp.ne.s32.totalorder %s96, %s98
      %p105 = scmp.eq.s32.totalorder %s41, 1
      %p106 = por %p104, %p105
      %p107 = scmp.ne.s32.totalorder %s98, %s99
      %p108 = scmp.eq.s32.totalorder %s41, 0
      %p109 = por %p107, %p108
      %p110 = scmp.ne.s32.totalorder %s98, %s99
      %p111 = scmp.eq.s32.totalorder %s42, 1
      %p112 = por %p110, %p111
      %p114 = scmp.ne.s32.totalorder %s99, %s113
      %p115 = scmp.eq.s32.totalorder %s42, 0
      %p116 = por %p114, %p115
      %s118 = sadd.s32 %s117, 1
      %p121 = scmp.eq.s32.totalorder %s36, 1
      %p122 = scmp.ne.s32.totalorder %s117, %s119
      %p123 = scmp.eq.s32.totalorder %s36, 0
      %p124 = por %p122, %p123
      %p125 = scmp.ne.s32.totalorder %s117, %s119
      %p126 = scmp.eq.s32.totalorder %s41, 1
      %p127 = por %p125, %p126
      %p128 = scmp.ne.s32.totalorder %s119, %s120
      %p129 = scmp.eq.s32.totalorder %s41, 0
      %p130 = por %p128, %p129
      %p131 = scmp.ne.s32.totalorder %s119, %s120
      %p132 = scmp.eq.s32.totalorder %s42, 1
      %p133 = por %p131, %p132
      %p135 = scmp.ne.s32.totalorder %s120, %s134
      %p136 = scmp.eq.s32.totalorder %s42, 0
      %p137 = por %p135, %p136
      %s139 = sadd.s32 %s138, 1
      %p142 = scmp.eq.s32.totalorder %s36, 1
      %p143 = scmp.ne.s32.totalorder %s138, %s140
      %p144 = scmp.eq.s32.totalorder %s36, 0
      %p145 = por %p143, %p144
      %p146 = scmp.ne.s32.totalorder %s138, %s140
      %p147 = scmp.eq.s32.totalorder %s41, 1
      %p148 = por %p146, %p147
      %p149 = scmp.ne.s32.totalorder %s140, %s141
      %p150 = scmp.eq.s32.totalorder %s41, 0
      %p151 = por %p149, %p150
      %p152 = scmp.ne.s32.totalorder %s140, %s141
      %p153 = scmp.eq.s32.totalorder %s42, 1
      %p154 = por %p152, %p153
      %p156 = scmp.ne.s32.totalorder %s141, %s155
      %p157 = scmp.eq.s32.totalorder %s42, 0
      %p158 = por %p156, %p157
      %s160 = sadd.s32 %s159, 1
      %p163 = scmp.eq.s32.totalorder %s36, 1
      %p164 = scmp.ne.s32.totalorder %s159, %s161
      %p165 = scmp.eq.s32.totalorder %s36, 0
      %p166 = por %p164, %p165
      %p167 = scmp.ne.s32.totalorder %s159, %s161
      %p168 = scmp.eq.s32.totalorder %s41, 1
      %p169 = por %p167, %p168
      %p170 = scmp.ne.s32.totalorder %s161, %s162
      %p171 = scmp.eq.s32.totalorder %s41, 0
      %p172 = por %p170, %p171
      %p173 = scmp.ne.s32.totalorder %s161, %s162
      %p174 = scmp.eq.s32.totalorder %s42, 1
      %p175 = por %p173, %p174
      %p177 = scmp.ne.s32.totalorder %s162, %s176
      %p178 = scmp.eq.s32.totalorder %s42, 0
      %p179 = por %p177, %p178
      %s181 = sadd.s32 %s180, 1
      %p184 = scmp.eq.s32.totalorder %s36, 1
      %p185 = scmp.ne.s32.totalorder %s180, %s182
      %p186 = scmp.eq.s32.totalorder %s36, 0
      %p187 = por %p185, %p186
      %p188 = scmp.ne.s32.totalorder %s180, %s182
      %p189 = scmp.eq.s32.totalorder %s41, 1
      %p190 = por %p188, %p189
      %p191 = scmp.ne.s32.totalorder %s182, %s183
      %p192 = scmp.eq.s32.totalorder %s41, 0
      %p193 = por %p191, %p192
      %p194 = scmp.ne.s32.totalorder %s182, %s183
      %p195 = scmp.eq.s32.totalorder %s42, 1
      %p196 = por %p194, %p195
      %p198 = scmp.ne.s32.totalorder %s183, %s197
      %p199 = scmp.eq.s32.totalorder %s42, 0
      %p200 = por %p198, %p199
      %s202 = sadd.s32 %s201, 1
      %p205 = scmp.eq.s32.totalorder %s36, 1
      %p206 = scmp.ne.s32.totalorder %s201, %s203
      %p207 = scmp.eq.s32.totalorder %s36, 0
      %p208 = por %p206, %p207
      %p209 = scmp.ne.s32.totalorder %s201, %s203
      %p210 = scmp.eq.s32.totalorder %s41, 1
      %p211 = por %p209, %p210
      %p212 = scmp.ne.s32.totalorder %s203, %s204
      %p213 = scmp.eq.s32.totalorder %s41, 0
      %p214 = por %p212, %p213
      %p215 = scmp.ne.s32.totalorder %s203, %s204
      %p216 = scmp.eq.s32.totalorder %s42, 1
      %p217 = por %p215, %p216
      %p219 = scmp.ne.s32.totalorder %s204, %s218
      %p220 = scmp.eq.s32.totalorder %s42, 0
      %p221 = por %p219, %p220
      %s223 = sadd.s32 %s222, 1
      %p226 = scmp.eq.s32.totalorder %s36, 1
      %p227 = scmp.ne.s32.totalorder %s222, %s224
      %p228 = scmp.eq.s32.totalorder %s36, 0
      %p229 = por %p227, %p228
      %p230 = scmp.ne.s32.totalorder %s222, %s224
      %p231 = scmp.eq.s32.totalorder %s41, 1
      %p232 = por %p230, %p231
      %p233 = scmp.ne.s32.totalorder %s224, %s225
      %p234 = scmp.eq.s32.totalorder %s41, 0
      %p235 = por %p233, %p234
      %p236 = scmp.ne.s32.totalorder %s224, %s225
      %p237 = scmp.eq.s32.totalorder %s42, 1
      %p238 = por %p236, %p237
      %p240 = scmp.ne.s32.totalorder %s225, %s239
      %p241 = scmp.eq.s32.totalorder %s42, 0
      %p242 = por %p240, %p241
      %s244 = sadd.s32 %s243, 1
      %p247 = scmp.eq.s32.totalorder %s36, 1
      %p248 = scmp.ne.s32.totalorder %s243, %s245
      %p249 = scmp.eq.s32.totalorder %s36, 0
      %p250 = por %p248, %p249
      %p251 = scmp.ne.s32.totalorder %s243, %s245
      %p252 = scmp.eq.s32.totalorder %s41, 1
      %p253 = por %p251, %p252
      %p254 = scmp.ne.s32.totalorder %s245, %s246
      %p255 = scmp.eq.s32.totalorder %s41, 0
      %p256 = por %p254, %p255
      %p257 = scmp.ne.s32.totalorder %s245, %s246
      %p258 = scmp.eq.s32.totalorder %s42, 1
      %p259 = por %p257, %p258
      %p261 = scmp.ne.s32.totalorder %s246, %s260
      %p262 = scmp.eq.s32.totalorder %s42, 0
      %p263 = por %p261, %p262
      %s265 = sadd.s32 %s264, 1
      %p268 = scmp.eq.s32.totalorder %s36, 1
      %p269 = scmp.ne.s32.totalorder %s264, %s266
      %p270 = scmp.eq.s32.totalorder %s36, 0
      %p271 = por %p269, %p270
      %p272 = scmp.ne.s32.totalorder %s264, %s266
      %p273 = scmp.eq.s32.totalorder %s41, 1
      %p274 = por %p272, %p273
      %p275 = scmp.ne.s32.totalorder %s266, %s267
      %p276 = scmp.eq.s32.totalorder %s41, 0
      %p277 = por %p275, %p276
      %p278 = scmp.ne.s32.totalorder %s266, %s267
      %p279 = scmp.eq.s32.totalorder %s42, 1
      %p280 = por %p278, %p279
      %p282 = scmp.ne.s32.totalorder %s267, %s281
      %p283 = scmp.eq.s32.totalorder %s42, 0
      %p284 = por %p282, %p283
      %s286 = sadd.s32 %s285, 1
      %p289 = scmp.eq.s32.totalorder %s36, 1
      %p290 = scmp.ne.s32.totalorder %s285, %s287
      %p291 = scmp.eq.s32.totalorder %s36, 0
      %p292 = por %p290, %p291
      %p293 = scmp.ne.s32.totalorder %s285, %s287
      %p294 = scmp.eq.s32.totalorder %s41, 1
      %p295 = por %p293, %p294
      %p296 = scmp.ne.s32.totalorder %s287, %s288
      %p297 = scmp.eq.s32.totalorder %s41, 0
      %p298 = por %p296, %p297
      %p299 = scmp.ne.s32.totalorder %s287, %s288
      %p300 = scmp.eq.s32.totalorder %s42, 1
      %p301 = por %p299, %p300
      %p303 = scmp.ne.s32.totalorder %s288, %s302
      %p304 = scmp.eq.s32.totalorder %s42, 0
      %p305 = por %p303, %p304
      %s307 = sadd.s32 %s306, 1
      %p310 = scmp.eq.s32.totalorder %s36, 1
      %p311 = scmp.ne.s32.totalorder %s306, %s308
      %p312 = scmp.eq.s32.totalorder %s36, 0
      %p313 = por %p311, %p312
      %p314 = scmp.ne.s32.totalorder %s306, %s308
      %p315 = scmp.eq.s32.totalorder %s41, 1
      %p316 = por %p314, %p315
      %p317 = scmp.ne.s32.totalorder %s308, %s309
      %p318 = scmp.eq.s32.totalorder %s41, 0
      %p319 = por %p317, %p318
      %p320 = scmp.ne.s32.totalorder %s308, %s309
      %p321 = scmp.eq.s32.totalorder %s42, 1
      %p322 = por %p320, %p321
      %p324 = scmp.ne.s32.totalorder %s309, %s323
      %p325 = scmp.eq.s32.totalorder %s42, 0
      %p326 = por %p324, %p325
      %s328 = sadd.s32 %s327, 1
      %p331 = scmp.eq.s32.totalorder %s36, 1
      %p332 = scmp.ne.s32.totalorder %s327, %s329
      %p333 = scmp.eq.s32.totalorder %s36, 0
      %p334 = por %p332, %p333
      %p335 = scmp.ne.s32.totalorder %s327, %s329
      %p336 = scmp.eq.s32.totalorder %s41, 1
      %p337 = por %p335, %p336
      %p338 = scmp.ne.s32.totalorder %s329, %s330
      %p339 = scmp.eq.s32.totalorder %s41, 0
      %p340 = por %p338, %p339
      %p341 = scmp.ne.s32.totalorder %s329, %s330
      %p342 = scmp.eq.s32.totalorder %s42, 1
      %p343 = por %p341, %p342
      %p345 = scmp.ne.s32.totalorder %s330, %s344
      %p346 = scmp.eq.s32.totalorder %s42, 0
      %p347 = por %p345, %p346
      %s349 = sadd.s32 %s348, 1
      %p352 = scmp.eq.s32.totalorder %s36, 1
      %p353 = scmp.ne.s32.totalorder %s348, %s350
      %p354 = scmp.eq.s32.totalorder %s36, 0
      %p355 = por %p353, %p354
      %p356 = scmp.ne.s32.totalorder %s348, %s350
      %p357 = scmp.eq.s32.totalorder %s41, 1
      %p358 = por %p356, %p357
      %p359 = scmp.ne.s32.totalorder %s350, %s351
      %p360 = scmp.eq.s32.totalorder %s41, 0
      %p361 = por %p359, %p360
      %p362 = scmp.ne.s32.totalorder %s350, %s351
      %p363 = scmp.eq.s32.totalorder %s42, 1
      %p364 = por %p362, %p363
      %p366 = scmp.ne.s32.totalorder %s351, %s365
      %p367 = scmp.eq.s32.totalorder %s42, 0
      %p368 = por %p366, %p367
      %s370 = sadd.s32 %s369, 1
      %p373 = scmp.eq.s32.totalorder %s36, 1
      %p374 = scmp.ne.s32.totalorder %s369, %s371
      %p375 = scmp.eq.s32.totalorder %s36, 0
      %p376 = por %p374, %p375
      %p377 = scmp.ne.s32.totalorder %s369, %s371
      %p378 = scmp.eq.s32.totalorder %s41, 1
      %p379 = por %p377, %p378
      %p380 = scmp.ne.s32.totalorder %s371, %s372
      %p381 = scmp.eq.s32.totalorder %s41, 0
      %p382 = por %p380, %p381
      %p383 = scmp.ne.s32.totalorder %s371, %s372
      %p384 = scmp.eq.s32.totalorder %s42, 1
      %p385 = por %p383, %p384
      %p387 = scmp.ne.s32.totalorder %s372, %s386
      %p388 = scmp.eq.s32.totalorder %s42, 0
      %p389 = por %p387, %p388
      %s391 = sadd.s32 %s390, 1
      %p394 = scmp.eq.s32.totalorder %s36, 1
      %p395 = scmp.ne.s32.totalorder %s390, %s392
      %p396 = scmp.eq.s32.totalorder %s36, 0
      %p397 = por %p395, %p396
      %p398 = scmp.ne.s32.totalorder %s390, %s392
      %p399 = scmp.eq.s32.totalorder %s41, 1
      %p400 = por %p398, %p399
      %p401 = scmp.ne.s32.totalorder %s392, %s393
      %p402 = scmp.eq.s32.totalorder %s41, 0
      %p403 = por %p401, %p402
      %p404 = scmp.ne.s32.totalorder %s392, %s393
      %p405 = scmp.eq.s32.totalorder %s42, 1
      %p406 = por %p404, %p405
      %p408 = scmp.ne.s32.totalorder %s393, %s407
      %p409 = scmp.eq.s32.totalorder %s42, 0
      %p410 = por %p408, %p409
      %s412 = sadd.s32 %s411, 1
      %p415 = scmp.eq.s32.totalorder %s36, 1
      %p416 = scmp.ne.s32.totalorder %s411, %s413
      %p417 = scmp.eq.s32.totalorder %s36, 0
      %p418 = por %p416, %p417
      %p419 = scmp.ne.s32.totalorder %s411, %s413
      %p420 = scmp.eq.s32.totalorder %s41, 1
      %p421 = por %p419, %p420
      %p422 = scmp.ne.s32.totalorder %s413, %s414
      %p423 = scmp.eq.s32.totalorder %s41, 0
      %p424 = por %p422, %p423
      %p425 = scmp.ne.s32.totalorder %s413, %s414
      %p426 = scmp.eq.s32.totalorder %s42, 1
      %p427 = por %p425, %p426
      %p429 = scmp.ne.s32.totalorder %s414, %s428
      %p430 = scmp.eq.s32.totalorder %s42, 0
      %p431 = por %p429, %p430
      %s432 = ssub.s32 %s36, %s43
      %p433 = scmp.eq.s32.totalorder %s432, 0
      %s435 = sadd.s32 %s434, 1
      %s436 = scalar_select %p433, %s434, %s435
      %p439 = pneg %p433
      %p440 = scmp.eq.s32.totalorder %s36, 1
      %p441 = por %p439, %p440
      %p442 = scmp.ne.s32.totalorder %s434, %s437
      %p443 = scmp.eq.s32.totalorder %s36, 0
      %p444 = por %p442, %p443
      %p445 = scmp.ne.s32.totalorder %s434, %s437
      %p446 = scmp.eq.s32.totalorder %s41, 1
      %p447 = por %p445, %p446
      %p448 = scmp.ne.s32.totalorder %s437, %s438
      %p449 = scmp.eq.s32.totalorder %s41, 0
      %p450 = por %p448, %p449
      %p451 = scmp.ne.s32.totalorder %s437, %s438
      %p452 = scmp.eq.s32.totalorder %s42, 1
      %p453 = por %p451, %p452
      %p455 = scmp.ne.s32.totalorder %s438, %s454
      %p456 = scmp.eq.s32.totalorder %s42, 0
      %p457 = por %p455, %p456
      %s458 = ssub.s32 %s36, %s43
      %p459 = scmp.eq.s32.totalorder %s458, 0
      %s461 = sadd.s32 %s460, 1
      %s462 = scalar_select %p459, %s460, %s461
      %p465 = pneg %p459
      %p466 = scmp.eq.s32.totalorder %s36, 1
      %p467 = por %p465, %p466
      %p468 = scmp.ne.s32.totalorder %s460, %s463
      %p469 = scmp.eq.s32.totalorder %s36, 0
      %p470 = por %p468, %p469
      %p471 = scmp.ne.s32.totalorder %s460, %s463
      %p472 = scmp.eq.s32.totalorder %s41, 1
      %p473 = por %p471, %p472
      %p474 = scmp.ne.s32.totalorder %s463, %s464
      %p475 = scmp.eq.s32.totalorder %s41, 0
      %p476 = por %p474, %p475
      %p477 = scmp.ne.s32.totalorder %s463, %s464
      %p478 = scmp.eq.s32.totalorder %s42, 1
      %p479 = por %p477, %p478
      %p481 = scmp.ne.s32.totalorder %s464, %s480
      %p482 = scmp.eq.s32.totalorder %s42, 0
      %p483 = por %p481, %p482
      %p484 = scmp.le.s32.totalorder 1, %s36
      %p485 = scmp.lt.s32.totalorder %s36, 3
      %p486 = pnand %p484, %p485
      %p487 = pneg %p486
      // Predicated region
      $region9: #{tpu_custom_call.1} parent=5 // pred_check
        _
      $region10: #{tpu_custom_call.1} parent=5 // pred_check_branch
        %489 = sbr.rel (%p486) target = $region12
      $region11: #{tpu_custom_call.1} parent=5 // pred_region
        %s490 = ssub.s32 %s36, 1
        // Predicated region
        $region13: #{tpu_custom_call.1} parent=11 // pred_check
          %p491 = pneg %p109
        $region14: #{tpu_custom_call.1} parent=11 // pred_check_branch
          %493 = sbr.rel (%p491) target = $region16
        $region15: #{tpu_custom_call.1} parent=11 // pred_region
          _
        $region16: #{tpu_custom_call.1} parent=11 // pred_fallthru
          _
        // Predicated region
        $region17: #{tpu_custom_call.1} parent=11 // pred_check
          %p494 = pneg %p130
        $region18: #{tpu_custom_call.1} parent=11 // pred_check_branch
          %496 = sbr.rel (%p494) target = $region20
        $region19: #{tpu_custom_call.1} parent=11 // pred_region
          %s498 = ssub.s32 16, 16
          %499 = vsyncadd [#allocation4], %s498
          %s501 = sshll.u32 [#allocation3], 4
          %s502 = int_to_ptr.vmem [resolvable:$true] %s501
          %504 = dma.hbm_to_vmem [thread:$0]  %s3, 16, %s502, [#allocation4]
        $region20: #{tpu_custom_call.1} parent=11 // pred_fallthru
          _
        // Predicated region
        $region21: #{tpu_custom_call.1} parent=11 // pred_check
          %p505 = pneg %p151
        $region22: #{tpu_custom_call.1} parent=11 // pred_check_branch
          %507 = sbr.rel (%p505) target = $region24
        $region23: #{tpu_custom_call.1} parent=11 // pred_region
          _
        $region24: #{tpu_custom_call.1} parent=11 // pred_fallthru
          _
        // Predicated region
        $region25: #{tpu_custom_call.1} parent=11 // pred_check
          %p508 = pneg %p172
        $region26: #{tpu_custom_call.1} parent=11 // pred_check_branch
          %510 = sbr.rel (%p508) target = $region28
        $region27: #{tpu_custom_call.1} parent=11 // pred_region
          %s512 = ssub.s32 16, 16
          %513 = vsyncadd [#allocation7], %s512
          %s515 = sshll.u32 [#allocation6], 4
          %s516 = int_to_ptr.vmem [resolvable:$true] %s515
          %518 = dma.hbm_to_vmem [thread:$0]  %s5, 16, %s516, [#allocation7]
        $region28: #{tpu_custom_call.1} parent=11 // pred_fallthru
          _
        // Predicated region
        $region29: #{tpu_custom_call.1} parent=11 // pred_check
          %p519 = pneg %p193
        $region30: #{tpu_custom_call.1} parent=11 // pred_check_branch
          %521 = sbr.rel (%p519) target = $region32
        $region31: #{tpu_custom_call.1} parent=11 // pred_region
          %s523 = ssub.s32 256, 256
          %524 = vsyncadd [#allocation7], %s523
          %s525 = sshll.u32 [#allocation8], 4
          %s526 = int_to_ptr.vmem [resolvable:$true] %s525
          %531 = dma.hbm_to_vmem [thread:$0]  %s6, 256, %s526, [#allocation7], 64, 64, 4
        $region32: #{tpu_custom_call.1} parent=11 // pred_fallthru
          _
        // Predicated region
        $region33: #{tpu_custom_call.1} parent=11 // pred_check
          %p532 = pneg %p214
        $region34: #{tpu_custom_call.1} parent=11 // pred_check_branch
          %534 = sbr.rel (%p532) target = $region36
        $region35: #{tpu_custom_call.1} parent=11 // pred_region
          %s536 = ssub.s32 16, 16
          %537 = vsyncadd [#allocation10], %s536
          %s539 = sshll.u32 [#allocation9], 4
          %s540 = int_to_ptr.vmem [resolvable:$true] %s539
          %542 = dma.hbm_to_vmem [thread:$0]  %s7, 16, %s540, [#allocation10]
        $region36: #{tpu_custom_call.1} parent=11 // pred_fallthru
          _
        // Predicated region
        $region37: #{tpu_custom_call.1} parent=11 // pred_check
          %p543 = pneg %p235
        $region38: #{tpu_custom_call.1} parent=11 // pred_check_branch
          %545 = sbr.rel (%p543) target = $region40
        $region39: #{tpu_custom_call.1} parent=11 // pred_region
          %s547 = ssub.s32 256, 256
          %548 = vsyncadd [#allocation10], %s547
          %s549 = sshll.u32 [#allocation11], 4
          %s550 = int_to_ptr.vmem [resolvable:$true] %s549
          %555 = dma.hbm_to_vmem [thread:$0]  %s8, 256, %s550, [#allocation10], 64, 64, 4
        $region40: #{tpu_custom_call.1} parent=11 // pred_fallthru
          _
        // Predicated region
        $region41: #{tpu_custom_call.1} parent=11 // pred_check
          %p556 = pneg %p256
        $region42: #{tpu_custom_call.1} parent=11 // pred_check_branch
          %558 = sbr.rel (%p556) target = $region44
        $region43: #{tpu_custom_call.1} parent=11 // pred_region
          %s560 = ssub.s32 16, 16
          %561 = vsyncadd [#allocation13], %s560
          %s563 = sshll.u32 [#allocation12], 4
          %s564 = int_to_ptr.vmem [resolvable:$true] %s563
          %566 = dma.hbm_to_vmem [thread:$0]  %s9, 16, %s564, [#allocation13]
        $region44: #{tpu_custom_call.1} parent=11 // pred_fallthru
          _
        // Predicated region
        $region45: #{tpu_custom_call.1} parent=11 // pred_check
          %p567 = pneg %p277
        $region46: #{tpu_custom_call.1} parent=11 // pred_check_branch
          %569 = sbr.rel (%p567) target = $region48
        $region47: #{tpu_custom_call.1} parent=11 // pred_region
          _
        $region48: #{tpu_custom_call.1} parent=11 // pred_fallthru
          _
        // Predicated region
        $region49: #{tpu_custom_call.1} parent=11 // pred_check
          %p570 = pneg %p298
        $region50: #{tpu_custom_call.1} parent=11 // pred_check_branch
          %572 = sbr.rel (%p570) target = $region52
        $region51: #{tpu_custom_call.1} parent=11 // pred_region
          _
        $region52: #{tpu_custom_call.1} parent=11 // pred_fallthru
          _
        // Predicated region
        $region53: #{tpu_custom_call.1} parent=11 // pred_check
          %p573 = pneg %p319
        $region54: #{tpu_custom_call.1} parent=11 // pred_check_branch
          %575 = sbr.rel (%p573) target = $region56
        $region55: #{tpu_custom_call.1} parent=11 // pred_region
          _
        $region56: #{tpu_custom_call.1} parent=11 // pred_fallthru
          _
        // Predicated region
        $region57: #{tpu_custom_call.1} parent=11 // pred_check
          %p576 = pneg %p340
        $region58: #{tpu_custom_call.1} parent=11 // pred_check_branch
          %578 = sbr.rel (%p576) target = $region60
        $region59: #{tpu_custom_call.1} parent=11 // pred_region
          _
        $region60: #{tpu_custom_call.1} parent=11 // pred_fallthru
          _
        // Predicated region
        $region61: #{tpu_custom_call.1} parent=11 // pred_check
          %p579 = pneg %p361
        $region62: #{tpu_custom_call.1} parent=11 // pred_check_branch
          %581 = sbr.rel (%p579) target = $region64
        $region63: #{tpu_custom_call.1} parent=11 // pred_region
          _
        $region64: #{tpu_custom_call.1} parent=11 // pred_fallthru
          _
        // Predicated region
        $region65: #{tpu_custom_call.1} parent=11 // pred_check
          %p582 = pneg %p382
        $region66: #{tpu_custom_call.1} parent=11 // pred_check_branch
          %584 = sbr.rel (%p582) target = $region68
        $region67: #{tpu_custom_call.1} parent=11 // pred_region
          _
        $region68: #{tpu_custom_call.1} parent=11 // pred_fallthru
          _
        // Predicated region
        $region69: #{tpu_custom_call.1} parent=11 // pred_check
          %p585 = pneg %p403
        $region70: #{tpu_custom_call.1} parent=11 // pred_check_branch
          %587 = sbr.rel (%p585) target = $region72
        $region71: #{tpu_custom_call.1} parent=11 // pred_region
          _
        $region72: #{tpu_custom_call.1} parent=11 // pred_fallthru
          _
        // Predicated region
        $region73: #{tpu_custom_call.1} parent=11 // pred_check
          %p588 = pneg %p424
        $region74: #{tpu_custom_call.1} parent=11 // pred_check_branch
          %590 = sbr.rel (%p588) target = $region76
        $region75: #{tpu_custom_call.1} parent=11 // pred_region
          _
        $region76: #{tpu_custom_call.1} parent=11 // pred_fallthru
          _
      $region12: #{tpu_custom_call.1} parent=5 // pred_fallthru
        _
      %p591 = scmp.lt.s32.totalorder %s36, 2
      // Predicated region
      $region77: #{tpu_custom_call.1} parent=5 // pred_check
        %p592 = pneg %p591
      $region78: #{tpu_custom_call.1} parent=5 // pred_check_branch
        %594 = sbr.rel (%p592) target = $region80
      $region79: #{tpu_custom_call.1} parent=5 // pred_region
        // Predicated region
        $region81: #{tpu_custom_call.1} parent=79 // pred_check
          %p595 = pneg %p56
        $region82: #{tpu_custom_call.1} parent=79 // pred_check_branch
          %597 = sbr.rel (%p595) target = $region84
        $region83: #{tpu_custom_call.1} parent=79 // pred_region
          %p598 = scmp.lt.s32.totalorder %s36, 1
          %s599 = scalar_select %p598, %s36, 1
          %s600 = smul.addr %s599, 8
          %s601 = scalar_lea.vmem %s0, %s600
        $region84: #{tpu_custom_call.1} parent=79 // pred_fallthru
          _
        // Predicated region
        $region85: #{tpu_custom_call.1} parent=79 // pred_check
          %p602 = pneg %p82
        $region86: #{tpu_custom_call.1} parent=79 // pred_check_branch
          %604 = sbr.rel (%p602) target = $region88
        $region87: #{tpu_custom_call.1} parent=79 // pred_region
          %p605 = scmp.lt.s32.totalorder %s36, 1
          %s606 = scalar_select %p605, %s36, 1
          %s607 = scalar_lea.vmem %s1, %s606
        $region88: #{tpu_custom_call.1} parent=79 // pred_fallthru
          _
      $region80: #{tpu_custom_call.1} parent=5 // pred_fallthru
        _
      %p608 = scmp.le.s32.totalorder 1, %s36
      %p609 = scmp.lt.s32.totalorder %s36, 3
      %p610 = pnand %p608, %p609
      %p611 = pneg %p610
      // Predicated region
      $region89: #{tpu_custom_call.1} parent=5 // pred_check
        _
      $region90: #{tpu_custom_call.1} parent=5 // pred_check_branch
        %613 = sbr.rel (%p610) target = $region92
      $region91: #{tpu_custom_call.1} parent=5 // pred_region
        %s614 = ssub.s32 %s36, 1
        // Predicated region
        $region93: #{tpu_custom_call.1} parent=91 // pred_check
          %p615 = pneg %p130
        $region94: #{tpu_custom_call.1} parent=91 // pred_check_branch
          %617 = sbr.rel (%p615) target = $region96
        $region95: #{tpu_custom_call.1} parent=91 // pred_region
          %618 = dma.done [#allocation4], 16
        $region96: #{tpu_custom_call.1} parent=91 // pred_fallthru
          _
        // Predicated region
        $region97: #{tpu_custom_call.1} parent=91 // pred_check
          %p619 = pneg %p172
        $region98: #{tpu_custom_call.1} parent=91 // pred_check_branch
          %621 = sbr.rel (%p619) target = $region100
        $region99: #{tpu_custom_call.1} parent=91 // pred_region
          %622 = dma.done [#allocation7], 16
        $region100: #{tpu_custom_call.1} parent=91 // pred_fallthru
          _
        // Predicated region
        $region101: #{tpu_custom_call.1} parent=91 // pred_check
          %p623 = pneg %p193
        $region102: #{tpu_custom_call.1} parent=91 // pred_check_branch
          %625 = sbr.rel (%p623) target = $region104
        $region103: #{tpu_custom_call.1} parent=91 // pred_region
          %626 = dma.done [#allocation7], 256
        $region104: #{tpu_custom_call.1} parent=91 // pred_fallthru
          _
        // Predicated region
        $region105: #{tpu_custom_call.1} parent=91 // pred_check
          %p627 = pneg %p214
        $region106: #{tpu_custom_call.1} parent=91 // pred_check_branch
          %629 = sbr.rel (%p627) target = $region108
        $region107: #{tpu_custom_call.1} parent=91 // pred_region
          %630 = dma.done [#allocation10], 16
        $region108: #{tpu_custom_call.1} parent=91 // pred_fallthru
          _
        // Predicated region
        $region109: #{tpu_custom_call.1} parent=91 // pred_check
          %p631 = pneg %p235
        $region110: #{tpu_custom_call.1} parent=91 // pred_check_branch
          %633 = sbr.rel (%p631) target = $region112
        $region111: #{tpu_custom_call.1} parent=91 // pred_region
          %634 = dma.done [#allocation10], 256
        $region112: #{tpu_custom_call.1} parent=91 // pred_fallthru
          _
        // Predicated region
        $region113: #{tpu_custom_call.1} parent=91 // pred_check
          %p635 = pneg %p256
        $region114: #{tpu_custom_call.1} parent=91 // pred_check_branch
          %637 = sbr.rel (%p635) target = $region116
        $region115: #{tpu_custom_call.1} parent=91 // pred_region
          %638 = dma.done [#allocation13], 16
        $region116: #{tpu_custom_call.1} parent=91 // pred_fallthru
          _
        %p639 = scmp.lt.s32.totalorder %s41, 1
        %s640 = scalar_select %p639, %s41, 1
        %s641 = smul.addr %s640, 8
        %s642 = scalar_lea.vmem %s0, %s641
        %p643 = pneg %p62
        %p644 = pneg %p59
        %p645 = scmp.lt.s32.totalorder %s41, 1
        %s646 = scalar_select %p645, %s41, 1
        %s647 = scalar_lea.vmem %s1, %s646
        %p648 = pneg %p88
        %p649 = pneg %p85
        %p650 = pneg %p109
        %p651 = pneg %p106
        %p652 = pneg %p130
        %p653 = pneg %p127
        %p654 = pneg %p151
        %p655 = pneg %p148
        %p656 = pneg %p172
        %p657 = pneg %p169
        %p658 = pneg %p193
        %p659 = pneg %p190
        %p660 = pneg %p214
        %p661 = pneg %p211
        %p662 = pneg %p235
        %p663 = pneg %p232
        %p664 = pneg %p256
        %p665 = pneg %p253
        %p666 = pneg %p277
        %p667 = pneg %p274
        %p668 = pneg %p298
        %p669 = pneg %p295
        %p670 = pneg %p319
        %p671 = pneg %p316
        %p672 = pneg %p340
        %p673 = pneg %p337
        %p674 = pneg %p361
        %p675 = pneg %p358
        %p676 = pneg %p382
        %p677 = pneg %p379
        %p678 = pneg %p403
        %p679 = pneg %p400
        %p680 = pneg %p424
        %p681 = pneg %p421
        %p682 = pneg %p450
        %p683 = pneg %p447
        %s684 = sand.u32 %s437, 1
        %s685 = scalar_lea.sflag [#allocation5], %s684
        %s686 = sand.u32 %s437, 1
        %s687 = smul.addr %s686, 8
        %s688 = scalar_lea.vmem [#allocation14], %s687
        %p689 = pneg %p476
        %p690 = pneg %p473
        %s691 = sand.u32 %s463, 1
        %s692 = scalar_lea.sflag [#allocation16], %s691
        %s693 = sand.u32 %s463, 1
        %s694 = smul.addr %s693, 32
        %s695 = scalar_lea.vmem [#allocation15], %s694
        %p696 = scmp.lt.s32.totalorder %s41, 1
        %s697 = scalar_select %p696, %s41, 1
        %s698 = smul.addr %s697, 8
        %s699 = scalar_lea.vmem %s0, %s698
        %p700 = scmp.lt.s32.totalorder %s41, 1
        %s701 = scalar_select %p700, %s41, 1
        %s702 = scalar_lea.vmem %s1, %s701
        %v704 = vld [vmem:[%s699] sm:$0xff]
        %v705 = vpack.c.bf16 %v704, %v704
        %v706 = vld [vmem:[%s2] sm:$0xf]
        %v707 = vld [vmem:[%s2 + $0x4] sm:$0xf]
        %v708 = vld [vmem:[%s2 + $0x8] sm:$0xf]
        %v709 = vld [vmem:[%s2 + $0xc] sm:$0xf]
        %v710 = vld [vmem:[#allocation3] sm:$0x1]
        %v712 = vlaneseq
        %v713 = vshrl.u32 %v712, 7
        %v714 = vsub.s32 0, %v713
        %v715 = vrot.slane %v710, %v714
        %v721 = vunpack.c.l.b16 %v706
        %v722 = vunpack.c.l.b16 %v707
        %v723 = vunpack.c.l.b16 %v708
        %v724 = vunpack.c.l.b16 %v709
        %v725 = vpack.c.b16 %v722, %v721
        %v726 = vpack.c.b16 %v724, %v723
        %vm729 = vcmask 261120
        %v731 = vsel %vm729, %v705, 0
        %733 = vmatprep.subr.bf16.mxu0 0
        %734 = vmatpush1.bf16.msra.mxu0 %v725
        %735 = vmatprep.subr.bf16.mxu0 0
        %736 = vmatpush1.bf16.msra.mxu0 %v726
        %737 = vmatprep.subr.bf16.mxu0 0
        %738 = vmatpush1.bf16.msra.mxu0 0
        %739 = vmatprep.subr.bf16.mxu0 0
        %740 = vmatpush1.bf16.msra.mxu0 0
        %741 = vmatprep.subr.bf16.mxu0 0
        %742 = vmatpush1.bf16.msra.mxu0 0
        %743 = vmatprep.subr.bf16.mxu0 0
        %744 = vmatpush1.bf16.msra.mxu0 0
        %745 = vmatprep.subr.bf16.mxu0 0
        %746 = vmatpush1.bf16.msra.mxu0 0
        %747 = vmatprep.subr.bf16.mxu0 0
        %748 = vmatpush1.bf16.msra.mxu0 0
        %749 = vmatprep.subr.bf16.mxu0 0
        %750 = vmatpush1.bf16.msra.mxu0 0
        %751 = vmatprep.subr.bf16.mxu0 0
        %752 = vmatpush1.bf16.msra.mxu0 0
        %753 = vmatprep.subr.bf16.mxu0 0
        %754 = vmatpush1.bf16.msra.mxu0 0
        %755 = vmatprep.subr.bf16.mxu0 0
        %756 = vmatpush1.bf16.msra.mxu0 0
        %757 = vmatprep.subr.bf16.mxu0 0
        %758 = vmatpush1.bf16.msra.mxu0 0
        %759 = vmatprep.subr.bf16.mxu0 0
        %760 = vmatpush1.bf16.msra.mxu0 0
        %761 = vmatprep.subr.bf16.mxu0 0
        %762 = vmatpush1.bf16.msra.mxu0 0
        %763 = vmatprep.subr.bf16.mxu0 0
        %764 = vmatpush1.bf16.msra.mxu0 0
        %765 = vmatprep.mubr.bf16.mxu0 0
        %766 = vmatmul.mubr.bf16.gmra.mrb[0].mxu0 %v731
        %v767 = vpop.f32.mrb[0].mxu0
        %v768 = vadd.f32 %v715, %v767
        %v769 = vpop.f32.mrb[0].mxu0
        %v770 = vpop.f32.mrb[0].mxu0
        %v771 = vpop.f32.mrb[0].mxu0
        %772 = vdwg.mxu0
        %v773 = vpack.c.bf16 %v768, %v768
        %v774 = vld [vmem:[%s4] sm:$0xf]
        %v775 = vld [vmem:[%s4 + $0x4] sm:$0xf]
        %v776 = vld [vmem:[%s4 + $0x8] sm:$0xf]
        %v777 = vld [vmem:[%s4 + $0xc] sm:$0xf]
        %v778 = vld [vmem:[#allocation6] sm:$0x1]
        %v780 = vlaneseq
        %v781 = vshrl.u32 %v780, 7
        %v782 = vsub.s32 0, %v781
        %v783 = vrot.slane %v778, %v782
        %v789 = vunpack.c.l.b16 %v774
        %v790 = vunpack.c.l.b16 %v775
        %v791 = vunpack.c.l.b16 %v776
        %v792 = vunpack.c.l.b16 %v777
        %v793 = vpack.c.b16 %v790, %v789
        %v794 = vpack.c.b16 %v792, %v791
        %797 = vmatprep.subr.bf16.mxu0 0
        %798 = vmatpush1.bf16.msra.mxu0 %v793
        %799 = vmatprep.subr.bf16.mxu0 0
        %800 = vmatpush1.bf16.msra.mxu0 %v794
        %801 = vmatprep.subr.bf16.mxu0 0
        %802 = vmatpush1.bf16.msra.mxu0 0
        %803 = vmatprep.subr.bf16.mxu0 0
        %804 = vmatpush1.bf16.msra.mxu0 0
        %805 = vmatprep.subr.bf16.mxu0 0
        %806 = vmatpush1.bf16.msra.mxu0 0
        %807 = vmatprep.subr.bf16.mxu0 0
        %808 = vmatpush1.bf16.msra.mxu0 0
        %809 = vmatprep.subr.bf16.mxu0 0
        %810 = vmatpush1.bf16.msra.mxu0 0
        %811 = vmatprep.subr.bf16.mxu0 0
        %812 = vmatpush1.bf16.msra.mxu0 0
        %813 = vmatprep.subr.bf16.mxu0 0
        %814 = vmatpush1.bf16.msra.mxu0 0
        %815 = vmatprep.subr.bf16.mxu0 0
        %816 = vmatpush1.bf16.msra.mxu0 0
        %817 = vmatprep.subr.bf16.mxu0 0
        %818 = vmatpush1.bf16.msra.mxu0 0
        %819 = vmatprep.subr.bf16.mxu0 0
        %820 = vmatpush1.bf16.msra.mxu0 0
        %821 = vmatprep.subr.bf16.mxu0 0
        %822 = vmatpush1.bf16.msra.mxu0 0
        %823 = vmatprep.subr.bf16.mxu0 0
        %824 = vmatpush1.bf16.msra.mxu0 0
        %825 = vmatprep.subr.bf16.mxu0 0
        %826 = vmatpush1.bf16.msra.mxu0 0
        %827 = vmatprep.subr.bf16.mxu0 0
        %828 = vmatpush1.bf16.msra.mxu0 0
        %829 = vmatprep.mubr.bf16.mxu0 0
        %830 = vmatmul.mubr.bf16.gmra.mrb[0].mxu0 %v731
        %v831 = vpop.f32.mrb[0].mxu0
        %v832 = vadd.f32 %v783, %v831
        %v833 = vpop.f32.mrb[0].mxu0
        %v834 = vpop.f32.mrb[0].mxu0
        %v835 = vpop.f32.mrb[0].mxu0
        %836 = vdwg.mxu0
        %v837 = vpack.c.bf16 %v832, %v832
        %v838 = vld [vmem:[#allocation8] sm:$0xf]
        %v839 = vld [vmem:[#allocation8 + $0x4] sm:$0xf]
        %v840 = vld [vmem:[#allocation8 + $0x8] sm:$0xf]
        %v841 = vld [vmem:[#allocation8 + $0xc] sm:$0xf]
        %v842 = vld [vmem:[#allocation9] sm:$0x1]
        %v844 = vlaneseq
        %v845 = vshrl.u32 %v844, 7
        %v846 = vsub.s32 0, %v845
        %v847 = vrot.slane %v842, %v846
        %v853 = vunpack.c.l.b16 %v838
        %v854 = vunpack.c.l.b16 %v839
        %v855 = vunpack.c.l.b16 %v840
        %v856 = vunpack.c.l.b16 %v841
        %v857 = vpack.c.b16 %v854, %v853
        %v858 = vpack.c.b16 %v856, %v855
        %861 = vmatprep.subr.bf16.mxu0 0
        %862 = vmatpush1.bf16.msra.mxu0 %v857
        %863 = vmatprep.subr.bf16.mxu0 0
        %864 = vmatpush1.bf16.msra.mxu0 %v858
        %865 = vmatprep.subr.bf16.mxu0 0
        %866 = vmatpush1.bf16.msra.mxu0 0
        %867 = vmatprep.subr.bf16.mxu0 0
        %868 = vmatpush1.bf16.msra.mxu0 0
        %869 = vmatprep.subr.bf16.mxu0 0
        %870 = vmatpush1.bf16.msra.mxu0 0
        %871 = vmatprep.subr.bf16.mxu0 0
        %872 = vmatpush1.bf16.msra.mxu0 0
        %873 = vmatprep.subr.bf16.mxu0 0
        %874 = vmatpush1.bf16.msra.mxu0 0
        %875 = vmatprep.subr.bf16.mxu0 0
        %876 = vmatpush1.bf16.msra.mxu0 0
        %877 = vmatprep.subr.bf16.mxu0 0
        %878 = vmatpush1.bf16.msra.mxu0 0
        %879 = vmatprep.subr.bf16.mxu0 0
        %880 = vmatpush1.bf16.msra.mxu0 0
        %881 = vmatprep.subr.bf16.mxu0 0
        %882 = vmatpush1.bf16.msra.mxu0 0
        %883 = vmatprep.subr.bf16.mxu0 0
        %884 = vmatpush1.bf16.msra.mxu0 0
        %885 = vmatprep.subr.bf16.mxu0 0
        %886 = vmatpush1.bf16.msra.mxu0 0
        %887 = vmatprep.subr.bf16.mxu0 0
        %888 = vmatpush1.bf16.msra.mxu0 0
        %889 = vmatprep.subr.bf16.mxu0 0
        %890 = vmatpush1.bf16.msra.mxu0 0
        %891 = vmatprep.subr.bf16.mxu0 0
        %892 = vmatpush1.bf16.msra.mxu0 0
        %893 = vmatprep.mubr.bf16.mxu0 0
        %894 = vmatmul.mubr.bf16.gmra.mrb[0].mxu0 %v731
        %v895 = vpop.f32.mrb[0].mxu0
        %v896 = vadd.f32 %v847, %v895
        %v897 = vpop.f32.mrb[0].mxu0
        %v898 = vpop.f32.mrb[0].mxu0
        %v899 = vpop.f32.mrb[0].mxu0
        %900 = vdwg.mxu0
        %v901 = vpack.c.bf16 %v896, %v896
        %903 = vrot.lane.b32.xlu0 %v773, 120
        %v904 = vpop.permute.xlu0 %903
        %905 = vrot.lane.b32.xlu0 %v773, 112
        %v906 = vpop.permute.xlu0 %905
        %907 = vrot.lane.b32.xlu0 %v773, 104
        %v908 = vpop.permute.xlu0 %907
        %910 = vrot.lane.b32.xlu0 %v837, 120
        %v911 = vpop.permute.xlu0 %910
        %912 = vrot.lane.b32.xlu0 %v837, 112
        %v913 = vpop.permute.xlu0 %912
        %914 = vrot.lane.b32.xlu0 %v837, 104
        %v915 = vpop.permute.xlu0 %914
        %917 = vrot.lane.b32.xlu0 %v901, 120
        %v918 = vpop.permute.xlu0 %917
        %919 = vrot.lane.b32.xlu0 %v901, 112
        %v920 = vpop.permute.xlu0 %919
        %921 = vrot.lane.b32.xlu0 %v901, 104
        %v922 = vpop.permute.xlu0 %921
        %vm923 = vcmask 64512
        %v925 = vsel %vm923, %v773, 0
        %v928 = vsel %vm923, %v837, 0
        %930 = vmatprep.subr.bf16.mxu0 0
        %931 = vmatpush1.bf16.xpose.msra.mxu0 %v928
        %932 = vmatprep.subr.bf16.mxu0 0
        %933 = vmatpush1.bf16.xpose.msra.mxu0 0
        %934 = vmatprep.subr.bf16.mxu0 0
        %935 = vmatpush1.bf16.xpose.msra.mxu0 0
        %936 = vmatprep.subr.bf16.mxu0 0
        %937 = vmatpush1.bf16.xpose.msra.mxu0 0
        %938 = vmatprep.subr.bf16.mxu0 0
        %939 = vmatpush1.bf16.xpose.msra.mxu0 0
        %940 = vmatprep.subr.bf16.mxu0 0
        %941 = vmatpush1.bf16.xpose.msra.mxu0 0
        %942 = vmatprep.subr.bf16.mxu0 0
        %943 = vmatpush1.bf16.xpose.msra.mxu0 0
        %944 = vmatprep.subr.bf16.mxu0 0
        %945 = vmatpush1.bf16.xpose.msra.mxu0 0
        %946 = vmatprep.subr.bf16.mxu0 0
        %947 = vmatpush1.bf16.xpose.msra.mxu0 0
        %948 = vmatprep.subr.bf16.mxu0 0
        %949 = vmatpush1.bf16.xpose.msra.mxu0 0
        %950 = vmatprep.subr.bf16.mxu0 0
        %951 = vmatpush1.bf16.xpose.msra.mxu0 0
        %952 = vmatprep.subr.bf16.mxu0 0
        %953 = vmatpush1.bf16.xpose.msra.mxu0 0
        %954 = vmatprep.subr.bf16.mxu0 0
        %955 = vmatpush1.bf16.xpose.msra.mxu0 0
        %956 = vmatprep.subr.bf16.mxu0 0
        %957 = vmatpush1.bf16.xpose.msra.mxu0 0
        %958 = vmatprep.subr.bf16.mxu0 0
        %959 = vmatpush1.bf16.xpose.msra.mxu0 0
        %960 = vmatprep.subr.bf16.mxu0 0
        %961 = vmatpush1.bf16.xpose.msra.mxu0 0
        %962 = vmatprep.mubr.bf16.mxu0 0
        %963 = vmatmul.mubr.bf16.gmra.mrb[0].mxu0 %v925
        %v964 = vpop.f32.mrb[0].mxu0
        %v965 = vadd.f32 0.0, %v964
        %v966 = vpop.f32.mrb[0].mxu0
        %v967 = vpop.f32.mrb[0].mxu0
        %v968 = vpop.f32.mrb[0].mxu0
        %969 = vdwg.mxu0
        %v971 = vsel %vm923, %v904, 0
        %v974 = vsel %vm923, %v911, 0
        %976 = vmatprep.subr.bf16.mxu0 0
        %977 = vmatpush1.bf16.xpose.msra.mxu0 %v974
        %978 = vmatprep.subr.bf16.mxu0 0
        %979 = vmatpush1.bf16.xpose.msra.mxu0 0
        %980 = vmatprep.subr.bf16.mxu0 0
        %981 = vmatpush1.bf16.xpose.msra.mxu0 0
        %982 = vmatprep.subr.bf16.mxu0 0
        %983 = vmatpush1.bf16.xpose.msra.mxu0 0
        %984 = vmatprep.subr.bf16.mxu0 0
        %985 = vmatpush1.bf16.xpose.msra.mxu0 0
        %986 = vmatprep.subr.bf16.mxu0 0
        %987 = vmatpush1.bf16.xpose.msra.mxu0 0
        %988 = vmatprep.subr.bf16.mxu0 0
        %989 = vmatpush1.bf16.xpose.msra.mxu0 0
        %990 = vmatprep.subr.bf16.mxu0 0
        %991 = vmatpush1.bf16.xpose.msra.mxu0 0
        %992 = vmatprep.subr.bf16.mxu0 0
        %993 = vmatpush1.bf16.xpose.msra.mxu0 0
        %994 = vmatprep.subr.bf16.mxu0 0
        %995 = vmatpush1.bf16.xpose.msra.mxu0 0
        %996 = vmatprep.subr.bf16.mxu0 0
        %997 = vmatpush1.bf16.xpose.msra.mxu0 0
        %998 = vmatprep.subr.bf16.mxu0 0
        %999 = vmatpush1.bf16.xpose.msra.mxu0 0
        %1000 = vmatprep.subr.bf16.mxu0 0
        %1001 = vmatpush1.bf16.xpose.msra.mxu0 0
        %1002 = vmatprep.subr.bf16.mxu0 0
        %1003 = vmatpush1.bf16.xpose.msra.mxu0 0
        %1004 = vmatprep.subr.bf16.mxu0 0
        %1005 = vmatpush1.bf16.xpose.msra.mxu0 0
        %1006 = vmatprep.subr.bf16.mxu0 0
        %1007 = vmatpush1.bf16.xpose.msra.mxu0 0
        %1008 = vmatprep.mubr.bf16.mxu0 0
        %1009 = vmatmul.mubr.bf16.gmra.mrb[0].mxu0 %v971
        %v1010 = vpop.f32.mrb[0].mxu0
        %v1011 = vadd.f32 0.0, %v1010
        %v1012 = vpop.f32.mrb[0].mxu0
        %v1013 = vpop.f32.mrb[0].mxu0
        %v1014 = vpop.f32.mrb[0].mxu0
        %1015 = vdwg.mxu0
        %v1017 = vsel %vm923, %v906, 0
        %v1020 = vsel %vm923, %v913, 0
        %1022 = vmatprep.subr.bf16.mxu0 0
        %1023 = vmatpush1.bf16.xpose.msra.mxu0 %v1020
        %1024 = vmatprep.subr.bf16.mxu0 0
        %1025 = vmatpush1.bf16.xpose.msra.mxu0 0
        %1026 = vmatprep.subr.bf16.mxu0 0
        %1027 = vmatpush1.bf16.xpose.msra.mxu0 0
        %1028 = vmatprep.subr.bf16.mxu0 0
        %1029 = vmatpush1.bf16.xpose.msra.mxu0 0
        %1030 = vmatprep.subr.bf16.mxu0 0
        %1031 = vmatpush1.bf16.xpose.msra.mxu0 0
        %1032 = vmatprep.subr.bf16.mxu0 0
        %1033 = vmatpush1.bf16.xpose.msra.mxu0 0
        %1034 = vmatprep.subr.bf16.mxu0 0
        %1035 = vmatpush1.bf16.xpose.msra.mxu0 0
        %1036 = vmatprep.subr.bf16.mxu0 0
        %1037 = vmatpush1.bf16.xpose.msra.mxu0 0
        %1038 = vmatprep.subr.bf16.mxu0 0
        %1039 = vmatpush1.bf16.xpose.msra.mxu0 0
        %1040 = vmatprep.subr.bf16.mxu0 0
        %1041 = vmatpush1.bf16.xpose.msra.mxu0 0
        %1042 = vmatprep.subr.bf16.mxu0 0
        %1043 = vmatpush1.bf16.xpose.msra.mxu0 0
        %1044 = vmatprep.subr.bf16.mxu0 0
        %1045 = vmatpush1.bf16.xpose.msra.mxu0 0
        %1046 = vmatprep.subr.bf16.mxu0 0
        %1047 = vmatpush1.bf16.xpose.msra.mxu0 0
        %1048 = vmatprep.subr.bf16.mxu0 0
        %1049 = vmatpush1.bf16.xpose.msra.mxu0 0
        %1050 = vmatprep.subr.bf16.mxu0 0
        %1051 = vmatpush1.bf16.xpose.msra.mxu0 0
        %1052 = vmatprep.subr.bf16.mxu0 0
        %1053 = vmatpush1.bf16.xpose.msra.mxu0 0
        %1054 = vmatprep.mubr.bf16.mxu0 0
        %1055 = vmatmul.mubr.bf16.gmra.mrb[0].mxu0 %v1017
        %v1056 = vpop.f32.mrb[0].mxu0
        %v1057 = vadd.f32 0.0, %v1056
        %v1058 = vpop.f32.mrb[0].mxu0
        %v1059 = vpop.f32.mrb[0].mxu0
        %v1060 = vpop.f32.mrb[0].mxu0
        %1061 = vdwg.mxu0
        %v1063 = vsel %vm923, %v908, 0
        %v1066 = vsel %vm923, %v915, 0
        %1068 = vmatprep.subr.bf16.mxu0 0
        %1069 = vmatpush1.bf16.xpose.msra.mxu0 %v1066
        %1070 = vmatprep.subr.bf16.mxu0 0
        %1071 = vmatpush1.bf16.xpose.msra.mxu0 0
        %1072 = vmatprep.subr.bf16.mxu0 0
        %1073 = vmatpush1.bf16.xpose.msra.mxu0 0
        %1074 = vmatprep.subr.bf16.mxu0 0
        %1075 = vmatpush1.bf16.xpose.msra.mxu0 0
        %1076 = vmatprep.subr.bf16.mxu0 0
        %1077 = vmatpush1.bf16.xpose.msra.mxu0 0
        %1078 = vmatprep.subr.bf16.mxu0 0
        %1079 = vmatpush1.bf16.xpose.msra.mxu0 0
        %1080 = vmatprep.subr.bf16.mxu0 0
        %1081 = vmatpush1.bf16.xpose.msra.mxu0 0
        %1082 = vmatprep.subr.bf16.mxu0 0
        %1083 = vmatpush1.bf16.xpose.msra.mxu0 0
        %1084 = vmatprep.subr.bf16.mxu0 0
        %1085 = vmatpush1.bf16.xpose.msra.mxu0 0
        %1086 = vmatprep.subr.bf16.mxu0 0
        %1087 = vmatpush1.bf16.xpose.msra.mxu0 0
        %1088 = vmatprep.subr.bf16.mxu0 0
        %1089 = vmatpush1.bf16.xpose.msra.mxu0 0
        %1090 = vmatprep.subr.bf16.mxu0 0
        %1091 = vmatpush1.bf16.xpose.msra.mxu0 0
        %1092 = vmatprep.subr.bf16.mxu0 0
        %1093 = vmatpush1.bf16.xpose.msra.mxu0 0
        %1094 = vmatprep.subr.bf16.mxu0 0
        %1095 = vmatpush1.bf16.xpose.msra.mxu0 0
        %1096 = vmatprep.subr.bf16.mxu0 0
        %1097 = vmatpush1.bf16.xpose.msra.mxu0 0
        %1098 = vmatprep.subr.bf16.mxu0 0
        %1099 = vmatpush1.bf16.xpose.msra.mxu0 0
        %1100 = vmatprep.mubr.bf16.mxu0 0
        %1101 = vmatmul.mubr.bf16.gmra.mrb[0].mxu0 %v1063
        %v1102 = vpop.f32.mrb[0].mxu0
        %v1103 = vadd.f32 0.0, %v1102
        %v1104 = vpop.f32.mrb[0].mxu0
        %v1105 = vpop.f32.mrb[0].mxu0
        %v1106 = vpop.f32.mrb[0].mxu0
        %1107 = vdwg.mxu0
        %v1108 = vld [vmem:[%s702] sm:$0x1]
        %v1110 = vlaneseq
        %v1111 = vshrl.u32 %v1110, 7
        %v1112 = vsub.s32 0, %v1111
        %v1113 = vrot.slane %v1108, %v1112
        %v1115 = vmin.f32 %v965, %v1113
        %v1116 = vmin.f32 %v1011, %v1113
        %v1117 = vmin.f32 %v1057, %v1113
        %v1118 = vmin.f32 %v1103, %v1113
        %v1119 = vsel %vm923, %v1115, -inf
        %1120 = vmax.xlane.f32.xlu0 %v1119
        %v1121 = vpop.xlane.xlu0 %1120
        %v1122 = vsel %vm923, %v1116, -inf
        %1123 = vmax.xlane.f32.xlu0 %v1122
        %v1124 = vpop.xlane.xlu0 %1123
        %v1125 = vsel %vm923, %v1117, -inf
        %1126 = vmax.xlane.f32.xlu0 %v1125
        %v1127 = vpop.xlane.xlu0 %1126
        %v1128 = vsel %vm923, %v1118, -inf
        %1129 = vmax.xlane.f32.xlu0 %v1128
        %v1130 = vpop.xlane.xlu0 %1129
        %v1131 = vsub.f32 %v1115, %v1121
        %v1132 = vsub.f32 %v1116, %v1124
        %v1133 = vsub.f32 %v1117, %v1127
        %v1134 = vsub.f32 %v1118, %v1130
        %v1135 = vmul.f32 %v1131, 1.442695
        %v1136 = vpow.pop %v1135
        %v1137 = vmul.f32 %v1132, 1.442695
        %v1138 = vpow.pop %v1137
        %v1139 = vmul.f32 %v1133, 1.442695
        %v1140 = vpow.pop %v1139
        %v1141 = vmul.f32 %v1134, 1.442695
        %v1142 = vpow.pop %v1141
        %v1143 = vsel %vm923, %v1136, 0.0
        %1144 = vadd.xlane.f32.xlu0 %v1143
        %v1145 = vpop.xlane.xlu0 %1144
        %v1146 = vsel %vm923, %v1138, 0.0
        %1147 = vadd.xlane.f32.xlu0 %v1146
        %v1148 = vpop.xlane.xlu0 %1147
        %v1149 = vsel %vm923, %v1140, 0.0
        %1150 = vadd.xlane.f32.xlu0 %v1149
        %v1151 = vpop.xlane.xlu0 %1150
        %v1152 = vsel %vm923, %v1142, 0.0
        %1153 = vadd.xlane.f32.xlu0 %v1152
        %v1154 = vpop.xlane.xlu0 %1153
        %v1155 = vrcp.pop %v1145
        %v1156 = vrcp.pop %v1148
        %v1157 = vrcp.pop %v1151
        %v1158 = vrcp.pop %v1154
        %v1159 = vmul.f32 %v1136, %v1155
        %v1160 = vmul.f32 %v1138, %v1156
        %v1161 = vmul.f32 %v1140, %v1157
        %v1162 = vmul.f32 %v1142, %v1158
        %1163 = vst.msk [vmem:[%s695] sm:$0xff] %vm923, %v1159
        %1164 = vst.msk [vmem:[%s695 + $0x8] sm:$0xff] %vm923, %v1160
        %1165 = vst.msk [vmem:[%s695 + $0x10] sm:$0xff] %vm923, %v1161
        %1166 = vst.msk [vmem:[%s695 + $0x18] sm:$0xff] %vm923, %v1162
        %v1167 = vpack.c.bf16 %v1159, %v1159
        %v1168 = vpack.c.bf16 %v1160, %v1160
        %v1169 = vpack.c.bf16 %v1161, %v1161
        %v1170 = vpack.c.bf16 %v1162, %v1162
        %v1172 = vsel %vm923, %v1167, 0
        %vm1174 = vcmask 1043456
        %v1176 = vsel %vm1174, %v901, 0
        %1178 = vmatprep.subr.bf16.mxu0 0
        %1179 = vmatpush1.bf16.msra.mxu0 %v1176
        %1180 = vmatprep.subr.bf16.mxu0 0
        %1181 = vmatpush1.bf16.msra.mxu0 0
        %1182 = vmatprep.subr.bf16.mxu0 0
        %1183 = vmatpush1.bf16.msra.mxu0 0
        %1184 = vmatprep.subr.bf16.mxu0 0
        %1185 = vmatpush1.bf16.msra.mxu0 0
        %1186 = vmatprep.subr.bf16.mxu0 0
        %1187 = vmatpush1.bf16.msra.mxu0 0
        %1188 = vmatprep.subr.bf16.mxu0 0
        %1189 = vmatpush1.bf16.msra.mxu0 0
        %1190 = vmatprep.subr.bf16.mxu0 0
        %1191 = vmatpush1.bf16.msra.mxu0 0
        %1192 = vmatprep.subr.bf16.mxu0 0
        %1193 = vmatpush1.bf16.msra.mxu0 0
        %1194 = vmatprep.subr.bf16.mxu0 0
        %1195 = vmatpush1.bf16.msra.mxu0 0
        %1196 = vmatprep.subr.bf16.mxu0 0
        %1197 = vmatpush1.bf16.msra.mxu0 0
        %1198 = vmatprep.subr.bf16.mxu0 0
        %1199 = vmatpush1.bf16.msra.mxu0 0
        %1200 = vmatprep.subr.bf16.mxu0 0
        %1201 = vmatpush1.bf16.msra.mxu0 0
        %1202 = vmatprep.subr.bf16.mxu0 0
        %1203 = vmatpush1.bf16.msra.mxu0 0
        %1204 = vmatprep.subr.bf16.mxu0 0
        %1205 = vmatpush1.bf16.msra.mxu0 0
        %1206 = vmatprep.subr.bf16.mxu0 0
        %1207 = vmatpush1.bf16.msra.mxu0 0
        %1208 = vmatprep.subr.bf16.mxu0 0
        %1209 = vmatpush1.bf16.msra.mxu0 0
        %1210 = vmatprep.mubr.bf16.mxu0 0
        %1211 = vmatmul.mubr.bf16.gmra.mrb[0].mxu0 %v1172
        %v1212 = vpop.f32.mrb[0].mxu0
        %v1213 = vadd.f32 0.0, %v1212
        %v1214 = vpop.f32.mrb[0].mxu0
        %v1215 = vpop.f32.mrb[0].mxu0
        %v1216 = vpop.f32.mrb[0].mxu0
        %1217 = vdwg.mxu0
        %v1219 = vsel %vm923, %v1168, 0
        %v1222 = vsel %vm1174, %v918, 0
        %1224 = vmatprep.subr.bf16.mxu0 0
        %1225 = vmatpush1.bf16.msra.mxu0 %v1222
        %1226 = vmatprep.subr.bf16.mxu0 0
        %1227 = vmatpush1.bf16.msra.mxu0 0
        %1228 = vmatprep.subr.bf16.mxu0 0
        %1229 = vmatpush1.bf16.msra.mxu0 0
        %1230 = vmatprep.subr.bf16.mxu0 0
        %1231 = vmatpush1.bf16.msra.mxu0 0
        %1232 = vmatprep.subr.bf16.mxu0 0
        %1233 = vmatpush1.bf16.msra.mxu0 0
        %1234 = vmatprep.subr.bf16.mxu0 0
        %1235 = vmatpush1.bf16.msra.mxu0 0
        %1236 = vmatprep.subr.bf16.mxu0 0
        %1237 = vmatpush1.bf16.msra.mxu0 0
        %1238 = vmatprep.subr.bf16.mxu0 0
        %1239 = vmatpush1.bf16.msra.mxu0 0
        %1240 = vmatprep.subr.bf16.mxu0 0
        %1241 = vmatpush1.bf16.msra.mxu0 0
        %1242 = vmatprep.subr.bf16.mxu0 0
        %1243 = vmatpush1.bf16.msra.mxu0 0
        %1244 = vmatprep.subr.bf16.mxu0 0
        %1245 = vmatpush1.bf16.msra.mxu0 0
        %1246 = vmatprep.subr.bf16.mxu0 0
        %1247 = vmatpush1.bf16.msra.mxu0 0
        %1248 = vmatprep.subr.bf16.mxu0 0
        %1249 = vmatpush1.bf16.msra.mxu0 0
        %1250 = vmatprep.subr.bf16.mxu0 0
        %1251 = vmatpush1.bf16.msra.mxu0 0
        %1252 = vmatprep.subr.bf16.mxu0 0
        %1253 = vmatpush1.bf16.msra.mxu0 0
        %1254 = vmatprep.subr.bf16.mxu0 0
        %1255 = vmatpush1.bf16.msra.mxu0 0
        %1256 = vmatprep.mubr.bf16.mxu0 0
        %1257 = vmatmul.mubr.bf16.gmra.mrb[0].mxu0 %v1219
        %v1258 = vpop.f32.mrb[0].mxu0
        %v1259 = vadd.f32 0.0, %v1258
        %v1260 = vpop.f32.mrb[0].mxu0
        %v1261 = vpop.f32.mrb[0].mxu0
        %v1262 = vpop.f32.mrb[0].mxu0
        %1263 = vdwg.mxu0
        %v1265 = vsel %vm923, %v1169, 0
        %v1268 = vsel %vm1174, %v920, 0
        %1270 = vmatprep.subr.bf16.mxu0 0
        %1271 = vmatpush1.bf16.msra.mxu0 %v1268
        %1272 = vmatprep.subr.bf16.mxu0 0
        %1273 = vmatpush1.bf16.msra.mxu0 0
        %1274 = vmatprep.subr.bf16.mxu0 0
        %1275 = vmatpush1.bf16.msra.mxu0 0
        %1276 = vmatprep.subr.bf16.mxu0 0
        %1277 = vmatpush1.bf16.msra.mxu0 0
        %1278 = vmatprep.subr.bf16.mxu0 0
        %1279 = vmatpush1.bf16.msra.mxu0 0
        %1280 = vmatprep.subr.bf16.mxu0 0
        %1281 = vmatpush1.bf16.msra.mxu0 0
        %1282 = vmatprep.subr.bf16.mxu0 0
        %1283 = vmatpush1.bf16.msra.mxu0 0
        %1284 = vmatprep.subr.bf16.mxu0 0
        %1285 = vmatpush1.bf16.msra.mxu0 0
        %1286 = vmatprep.subr.bf16.mxu0 0
        %1287 = vmatpush1.bf16.msra.mxu0 0
        %1288 = vmatprep.subr.bf16.mxu0 0
        %1289 = vmatpush1.bf16.msra.mxu0 0
        %1290 = vmatprep.subr.bf16.mxu0 0
        %1291 = vmatpush1.bf16.msra.mxu0 0
        %1292 = vmatprep.subr.bf16.mxu0 0
        %1293 = vmatpush1.bf16.msra.mxu0 0
        %1294 = vmatprep.subr.bf16.mxu0 0
        %1295 = vmatpush1.bf16.msra.mxu0 0
        %1296 = vmatprep.subr.bf16.mxu0 0
        %1297 = vmatpush1.bf16.msra.mxu0 0
        %1298 = vmatprep.subr.bf16.mxu0 0
        %1299 = vmatpush1.bf16.msra.mxu0 0
        %1300 = vmatprep.subr.bf16.mxu0 0
        %1301 = vmatpush1.bf16.msra.mxu0 0
        %1302 = vmatprep.mubr.bf16.mxu0 0
        %1303 = vmatmul.mubr.bf16.gmra.mrb[0].mxu0 %v1265
        %v1304 = vpop.f32.mrb[0].mxu0
        %v1305 = vadd.f32 0.0, %v1304
        %v1306 = vpop.f32.mrb[0].mxu0
        %v1307 = vpop.f32.mrb[0].mxu0
        %v1308 = vpop.f32.mrb[0].mxu0
        %1309 = vdwg.mxu0
        %v1311 = vsel %vm923, %v1170, 0
        %v1314 = vsel %vm1174, %v922, 0
        %1316 = vmatprep.subr.bf16.mxu0 0
        %1317 = vmatpush1.bf16.msra.mxu0 %v1314
        %1318 = vmatprep.subr.bf16.mxu0 0
        %1319 = vmatpush1.bf16.msra.mxu0 0
        %1320 = vmatprep.subr.bf16.mxu0 0
        %1321 = vmatpush1.bf16.msra.mxu0 0
        %1322 = vmatprep.subr.bf16.mxu0 0
        %1323 = vmatpush1.bf16.msra.mxu0 0
        %1324 = vmatprep.subr.bf16.mxu0 0
        %1325 = vmatpush1.bf16.msra.mxu0 0
        %1326 = vmatprep.subr.bf16.mxu0 0
        %1327 = vmatpush1.bf16.msra.mxu0 0
        %1328 = vmatprep.subr.bf16.mxu0 0
        %1329 = vmatpush1.bf16.msra.mxu0 0
        %1330 = vmatprep.subr.bf16.mxu0 0
        %1331 = vmatpush1.bf16.msra.mxu0 0
        %1332 = vmatprep.subr.bf16.mxu0 0
        %1333 = vmatpush1.bf16.msra.mxu0 0
        %1334 = vmatprep.subr.bf16.mxu0 0
        %1335 = vmatpush1.bf16.msra.mxu0 0
        %1336 = vmatprep.subr.bf16.mxu0 0
        %1337 = vmatpush1.bf16.msra.mxu0 0
        %1338 = vmatprep.subr.bf16.mxu0 0
        %1339 = vmatpush1.bf16.msra.mxu0 0
        %1340 = vmatprep.subr.bf16.mxu0 0
        %1341 = vmatpush1.bf16.msra.mxu0 0
        %1342 = vmatprep.subr.bf16.mxu0 0
        %1343 = vmatpush1.bf16.msra.mxu0 0
        %1344 = vmatprep.subr.bf16.mxu0 0
        %1345 = vmatpush1.bf16.msra.mxu0 0
        %1346 = vmatprep.subr.bf16.mxu0 0
        %1347 = vmatpush1.bf16.msra.mxu0 0
        %1348 = vmatprep.mubr.bf16.mxu0 0
        %1349 = vmatmul.mubr.bf16.gmra.mrb[0].mxu0 %v1311
        %v1350 = vpop.f32.mrb[0].mxu0
        %v1351 = vadd.f32 0.0, %v1350
        %v1352 = vpop.f32.mrb[0].mxu0
        %v1353 = vpop.f32.mrb[0].mxu0
        %v1354 = vpop.f32.mrb[0].mxu0
        %1355 = vdwg.mxu0
        %v1356 = vpack.c.bf16 %v1213, %v1213
        %vm1357 = vcmask 60416
        %1358 = vst.msk [vmem:[#allocation2] sm:$0xf] %vm1357, %v1356
        %v1359 = vpack.c.bf16 %v1259, %v1259
        %v1361 = vunpack.c.l.b16 %v1359
        %v1362 = vpack.c.b16 %v1361, %v1361
        %1363 = vrot.lane.b32.xlu0 %v1362, 8
        %v1364 = vpop.permute.xlu0 %1363
        %vm1366 = vcmask 126016
        %1367 = vst.msk [vmem:[#allocation2] sm:$0xf] %vm1366, %v1364
        %v1368 = vpack.c.bf16 %v1305, %v1305
        %v1370 = vunpack.c.l.b16 %v1368
        %v1371 = vpack.c.b16 %v1370, %v1370
        %1372 = vrot.lane.b32.xlu0 %v1371, 16
        %v1373 = vpop.permute.xlu0 %1372
        %vm1375 = vcmask 191616
        %1376 = vst.msk [vmem:[#allocation2] sm:$0xf] %vm1375, %v1373
        %v1377 = vpack.c.bf16 %v1351, %v1351
        %v1379 = vunpack.c.l.b16 %v1377
        %v1380 = vpack.c.b16 %v1379, %v1379
        %1381 = vrot.lane.b32.xlu0 %v1380, 24
        %v1382 = vpop.permute.xlu0 %1381
        %vm1384 = vcmask 257216
        %1385 = vst.msk [vmem:[#allocation2] sm:$0xf] %vm1384, %v1382
        %v1386 = vld [vmem:[#allocation2] sm:$0xf]
        %v1387 = vld [vmem:[#allocation11] sm:$0xf]
        %v1388 = vld [vmem:[#allocation11 + $0x4] sm:$0xf]
        %v1389 = vld [vmem:[#allocation11 + $0x8] sm:$0xf]
        %v1390 = vld [vmem:[#allocation11 + $0xc] sm:$0xf]
        %v1391 = vld [vmem:[#allocation12] sm:$0x1]
        %v1393 = vlaneseq
        %v1394 = vshrl.u32 %v1393, 7
        %v1395 = vsub.s32 0, %v1394
        %v1396 = vrot.slane %v1391, %v1395
        %v1402 = vunpack.c.l.b16 %v1387
        %v1403 = vunpack.c.l.b16 %v1388
        %v1404 = vunpack.c.l.b16 %v1389
        %v1405 = vunpack.c.l.b16 %v1390
        %v1406 = vpack.c.b16 %v1403, %v1402
        %v1407 = vpack.c.b16 %v1405, %v1404
        %v1411 = vsel %vm729, %v1386, 0
        %1413 = vmatprep.subr.bf16.mxu0 0
        %1414 = vmatpush1.bf16.msra.mxu0 %v1406
        %1415 = vmatprep.subr.bf16.mxu0 0
        %1416 = vmatpush1.bf16.msra.mxu0 %v1407
        %1417 = vmatprep.subr.bf16.mxu0 0
        %1418 = vmatpush1.bf16.msra.mxu0 0
        %1419 = vmatprep.subr.bf16.mxu0 0
        %1420 = vmatpush1.bf16.msra.mxu0 0
        %1421 = vmatprep.subr.bf16.mxu0 0
        %1422 = vmatpush1.bf16.msra.mxu0 0
        %1423 = vmatprep.subr.bf16.mxu0 0
        %1424 = vmatpush1.bf16.msra.mxu0 0
        %1425 = vmatprep.subr.bf16.mxu0 0
        %1426 = vmatpush1.bf16.msra.mxu0 0
        %1427 = vmatprep.subr.bf16.mxu0 0
        %1428 = vmatpush1.bf16.msra.mxu0 0
        %1429 = vmatprep.subr.bf16.mxu0 0
        %1430 = vmatpush1.bf16.msra.mxu0 0
        %1431 = vmatprep.subr.bf16.mxu0 0
        %1432 = vmatpush1.bf16.msra.mxu0 0
        %1433 = vmatprep.subr.bf16.mxu0 0
        %1434 = vmatpush1.bf16.msra.mxu0 0
        %1435 = vmatprep.subr.bf16.mxu0 0
        %1436 = vmatpush1.bf16.msra.mxu0 0
        %1437 = vmatprep.subr.bf16.mxu0 0
        %1438 = vmatpush1.bf16.msra.mxu0 0
        %1439 = vmatprep.subr.bf16.mxu0 0
        %1440 = vmatpush1.bf16.msra.mxu0 0
        %1441 = vmatprep.subr.bf16.mxu0 0
        %1442 = vmatpush1.bf16.msra.mxu0 0
        %1443 = vmatprep.subr.bf16.mxu0 0
        %1444 = vmatpush1.bf16.msra.mxu0 0
        %1445 = vmatprep.mubr.bf16.mxu0 0
        %1446 = vmatmul.mubr.bf16.gmra.mrb[0].mxu0 %v1411
        %v1447 = vpop.f32.mrb[0].mxu0
        %v1448 = vadd.f32 %v1396, %v1447
        %v1449 = vpop.f32.mrb[0].mxu0
        %v1450 = vpop.f32.mrb[0].mxu0
        %v1451 = vpop.f32.mrb[0].mxu0
        %1452 = vdwg.mxu0
        %v1453 = vadd.f32 %v1448, %v704
        %v1454 = vsel %vm729, %v1453, 0.0
        %1455 = vadd.xlane.f32.xlu0 %v1454
        %v1456 = vpop.xlane.xlu0 %1455
        %v1457 = vrcp.pop 32.0
        %v1458 = vmul.f32 %v1456, %v1457
        %v1459 = vsub.f32 %v1453, %v1458
        %v1460 = vmul.f32 %v1459, %v1459
        %v1461 = vsel %vm729, %v1460, 0.0
        %1462 = vadd.xlane.f32.xlu0 %v1461
        %v1463 = vpop.xlane.xlu0 %1462
        %v1464 = vmul.f32 %v1463, %v1457
        %v1465 = vadd.f32 %v1464, 1e-12
        %v1466 = vrsqrt.pop %v1465
        %v1467 = vmul.f32 %v1459, %v1466
        %v1468 = vld [vmem:[%s10] sm:$0x1]
        %v1470 = vlaneseq
        %v1471 = vshrl.u32 %v1470, 7
        %v1472 = vsub.s32 0, %v1471
        %v1473 = vrot.slane %v1468, %v1472
        %v1475 = vmul.f32 %v1467, %v1473
        %v1476 = vld [vmem:[%s11] sm:$0x1]
        %v1478 = vlaneseq
        %v1479 = vshrl.u32 %v1478, 7
        %v1480 = vsub.s32 0, %v1479
        %v1481 = vrot.slane %v1476, %v1480
        %v1483 = vadd.f32 %v1475, %v1481
        %v1484 = vpack.c.bf16 %v1483, %v1483
        %v1485 = vld [vmem:[%s12] sm:$0xf]
        %v1486 = vld [vmem:[%s12 + $0x4] sm:$0xf]
        %v1487 = vld [vmem:[%s12 + $0x8] sm:$0xf]
        %v1488 = vld [vmem:[%s12 + $0xc] sm:$0xf]
        %v1489 = vld [vmem:[%s13] sm:$0x1]
        %v1491 = vlaneseq
        %v1492 = vshrl.u32 %v1491, 7
        %v1493 = vsub.s32 0, %v1492
        %v1494 = vrot.slane %v1489, %v1493
        %v1500 = vunpack.c.l.b16 %v1485
        %v1501 = vunpack.c.l.b16 %v1486
        %v1502 = vunpack.c.l.b16 %v1487
        %v1503 = vunpack.c.l.b16 %v1488
        %v1504 = vpack.c.b16 %v1501, %v1500
        %v1505 = vpack.c.b16 %v1503, %v1502
        %v1509 = vsel %vm729, %v1484, 0
        %1511 = vmatprep.subr.bf16.mxu0 0
        %1512 = vmatpush1.bf16.msra.mxu0 %v1504
        %1513 = vmatprep.subr.bf16.mxu0 0
        %1514 = vmatpush1.bf16.msra.mxu0 %v1505
        %1515 = vmatprep.subr.bf16.mxu0 0
        %1516 = vmatpush1.bf16.msra.mxu0 0
        %1517 = vmatprep.subr.bf16.mxu0 0
        %1518 = vmatpush1.bf16.msra.mxu0 0
        %1519 = vmatprep.subr.bf16.mxu0 0
        %1520 = vmatpush1.bf16.msra.mxu0 0
        %1521 = vmatprep.subr.bf16.mxu0 0
        %1522 = vmatpush1.bf16.msra.mxu0 0
        %1523 = vmatprep.subr.bf16.mxu0 0
        %1524 = vmatpush1.bf16.msra.mxu0 0
        %1525 = vmatprep.subr.bf16.mxu0 0
        %1526 = vmatpush1.bf16.msra.mxu0 0
        %1527 = vmatprep.subr.bf16.mxu0 0
        %1528 = vmatpush1.bf16.msra.mxu0 0
        %1529 = vmatprep.subr.bf16.mxu0 0
        %1530 = vmatpush1.bf16.msra.mxu0 0
        %1531 = vmatprep.subr.bf16.mxu0 0
        %1532 = vmatpush1.bf16.msra.mxu0 0
        %1533 = vmatprep.subr.bf16.mxu0 0
        %1534 = vmatpush1.bf16.msra.mxu0 0
        %1535 = vmatprep.subr.bf16.mxu0 0
        %1536 = vmatpush1.bf16.msra.mxu0 0
        %1537 = vmatprep.subr.bf16.mxu0 0
        %1538 = vmatpush1.bf16.msra.mxu0 0
        %1539 = vmatprep.subr.bf16.mxu0 0
        %1540 = vmatpush1.bf16.msra.mxu0 0
        %1541 = vmatprep.subr.bf16.mxu0 0
        %1542 = vmatpush1.bf16.msra.mxu0 0
        %1543 = vmatprep.mubr.bf16.mxu0 0
        %1544 = vmatmul.mubr.bf16.gmra.mrb[0].mxu0 %v1509
        %v1545 = vpop.f32.mrb[0].mxu0
        %v1546 = vadd.f32 %v1494, %v1545
        %v1547 = vpop.f32.mrb[0].mxu0
        %v1548 = vpop.f32.mrb[0].mxu0
        %v1549 = vpop.f32.mrb[0].mxu0
        %1550 = vdwg.mxu0
        %v1551 = vmax.f32 %v1546, 0.0
        %v1552 = vpack.c.bf16 %v1551, %v1551
        %v1553 = vld [vmem:[%s14] sm:$0xf]
        %v1554 = vld [vmem:[%s14 + $0x4] sm:$0xf]
        %v1555 = vld [vmem:[%s14 + $0x8] sm:$0xf]
        %v1556 = vld [vmem:[%s14 + $0xc] sm:$0xf]
        %v1557 = vld [vmem:[%s14 + $0x10] sm:$0xf]
        %v1558 = vld [vmem:[%s14 + $0x14] sm:$0xf]
        %v1559 = vld [vmem:[%s14 + $0x18] sm:$0xf]
        %v1560 = vld [vmem:[%s14 + $0x1c] sm:$0xf]
        %v1561 = vld [vmem:[%s15] sm:$0x1]
        %v1563 = vlaneseq
        %v1564 = vshrl.u32 %v1563, 7
        %v1565 = vsub.s32 0, %v1564
        %v1566 = vrot.slane %v1561, %v1565
        %v1576 = vunpack.c.l.b16 %v1553
        %v1577 = vunpack.c.l.b16 %v1554
        %v1578 = vunpack.c.l.b16 %v1555
        %v1579 = vunpack.c.l.b16 %v1556
        %v1580 = vunpack.c.l.b16 %v1557
        %v1581 = vunpack.c.l.b16 %v1558
        %v1582 = vunpack.c.l.b16 %v1559
        %v1583 = vunpack.c.l.b16 %v1560
        %v1584 = vpack.c.b16 %v1577, %v1576
        %v1585 = vpack.c.b16 %v1579, %v1578
        %v1586 = vpack.c.b16 %v1581, %v1580
        %v1587 = vpack.c.b16 %v1583, %v1582
        %vm1592 = vcmask 523264
        %v1594 = vsel %vm1592, %v1552, 0
        %1596 = vmatprep.subr.bf16.mxu0 0
        %1597 = vmatpush1.bf16.msra.mxu0 %v1584
        %1598 = vmatprep.subr.bf16.mxu0 0
        %1599 = vmatpush1.bf16.msra.mxu0 %v1585
        %1600 = vmatprep.subr.bf16.mxu0 0
        %1601 = vmatpush1.bf16.msra.mxu0 %v1586
        %1602 = vmatprep.subr.bf16.mxu0 0
        %1603 = vmatpush1.bf16.msra.mxu0 %v1587
        %1604 = vmatprep.subr.bf16.mxu0 0
        %1605 = vmatpush1.bf16.msra.mxu0 0
        %1606 = vmatprep.subr.bf16.mxu0 0
        %1607 = vmatpush1.bf16.msra.mxu0 0
        %1608 = vmatprep.subr.bf16.mxu0 0
        %1609 = vmatpush1.bf16.msra.mxu0 0
        %1610 = vmatprep.subr.bf16.mxu0 0
        %1611 = vmatpush1.bf16.msra.mxu0 0
        %1612 = vmatprep.subr.bf16.mxu0 0
        %1613 = vmatpush1.bf16.msra.mxu0 0
        %1614 = vmatprep.subr.bf16.mxu0 0
        %1615 = vmatpush1.bf16.msra.mxu0 0
        %1616 = vmatprep.subr.bf16.mxu0 0
        %1617 = vmatpush1.bf16.msra.mxu0 0
        %1618 = vmatprep.subr.bf16.mxu0 0
        %1619 = vmatpush1.bf16.msra.mxu0 0
        %1620 = vmatprep.subr.bf16.mxu0 0
        %1621 = vmatpush1.bf16.msra.mxu0 0
        %1622 = vmatprep.subr.bf16.mxu0 0
        %1623 = vmatpush1.bf16.msra.mxu0 0
        %1624 = vmatprep.subr.bf16.mxu0 0
        %1625 = vmatpush1.bf16.msra.mxu0 0
        %1626 = vmatprep.subr.bf16.mxu0 0
        %1627 = vmatpush1.bf16.msra.mxu0 0
        %1628 = vmatprep.mubr.bf16.mxu0 0
        %1629 = vmatmul.mubr.bf16.gmra.mrb[0].mxu0 %v1594
        %v1630 = vpop.f32.mrb[0].mxu0
        %v1631 = vadd.f32 %v1566, %v1630
        %v1632 = vpop.f32.mrb[0].mxu0
        %v1633 = vpop.f32.mrb[0].mxu0
        %v1634 = vpop.f32.mrb[0].mxu0
        %1635 = vdwg.mxu0
        %v1636 = vadd.f32 %v1631, %v1483
        %v1637 = vsel %vm729, %v1636, 0.0
        %1638 = vadd.xlane.f32.xlu0 %v1637
        %v1639 = vpop.xlane.xlu0 %1638
        %v1640 = vmul.f32 %v1639, %v1457
        %v1641 = vsub.f32 %v1636, %v1640
        %v1642 = vmul.f32 %v1641, %v1641
        %v1643 = vsel %vm729, %v1642, 0.0
        %1644 = vadd.xlane.f32.xlu0 %v1643
        %v1645 = vpop.xlane.xlu0 %1644
        %v1646 = vmul.f32 %v1645, %v1457
        %v1647 = vadd.f32 %v1646, 1e-12
        %v1648 = vrsqrt.pop %v1647
        %v1649 = vmul.f32 %v1641, %v1648
        %v1650 = vld [vmem:[%s16] sm:$0x1]
        %v1652 = vlaneseq
        %v1653 = vshrl.u32 %v1652, 7
        %v1654 = vsub.s32 0, %v1653
        %v1655 = vrot.slane %v1650, %v1654
        %v1657 = vmul.f32 %v1649, %v1655
        %v1658 = vld [vmem:[%s17] sm:$0x1]
        %v1660 = vlaneseq
        %v1661 = vshrl.u32 %v1660, 7
        %v1662 = vsub.s32 0, %v1661
        %v1663 = vrot.slane %v1658, %v1662
        %v1665 = vadd.f32 %v1657, %v1663
        %1666 = vst.msk [vmem:[%s688] sm:$0xff] %vm729, %v1665
        %s1667 = sand.u32 %s437, 1
        %s1668 = scalar_lea.sflag [#allocation5], %s1667
        %s1669 = sand.u32 %s437, 1
        %s1670 = smul.addr %s1669, 8
        %s1671 = scalar_lea.vmem [#allocation14], %s1670
        %s1672 = sand.u32 %s463, 1
        %s1673 = scalar_lea.sflag [#allocation16], %s1672
        %s1674 = sand.u32 %s463, 1
        %s1675 = smul.addr %s1674, 32
        %s1676 = scalar_lea.vmem [#allocation15], %s1675
        // Predicated region
        $region117: #{tpu_custom_call.1} parent=91 // pred_check
          %p1677 = pneg %p447
        $region118: #{tpu_custom_call.1} parent=91 // pred_check_branch
          %1679 = sbr.rel (%p1677) target = $region120
        $region119: #{tpu_custom_call.1} parent=91 // pred_region
          %s1681 = ssub.s32 128, 128
          %1682 = vsyncadd %s1668, %s1681
          %s1683 = smul.addr %s41, 128
          %s1684 = scalar_lea.hbm %s18, %s1683
          %s1686 = sshll.u32 %s1671, 4
          %s1687 = int_to_ptr.vmem [resolvable:$true] %s1686
          %1689 = dma.vmem_to_hbm [thread:$0]  %s1687, 128, %s1684, %s1668
        $region120: #{tpu_custom_call.1} parent=91 // pred_fallthru
          _
        // Predicated region
        $region121: #{tpu_custom_call.1} parent=91 // pred_check
          %p1690 = pneg %p473
        $region122: #{tpu_custom_call.1} parent=91 // pred_check_branch
          %1692 = sbr.rel (%p1690) target = $region124
        $region123: #{tpu_custom_call.1} parent=91 // pred_region
          %s1694 = ssub.s32 512, 512
          %1695 = vsyncadd %s1673, %s1694
          %s1696 = smul.addr %s41, 4
          %s1697 = smul.addr %s1696, 128
          %s1698 = scalar_lea.hbm %s19, %s1697
          %s1699 = sshll.u32 %s1676, 4
          %s1700 = int_to_ptr.vmem [resolvable:$true] %s1699
          %1705 = dma.vmem_to_hbm [thread:$0]  %s1700, 512, %s1698, %s1673, 128, 128, 8
        $region124: #{tpu_custom_call.1} parent=91 // pred_fallthru
          _
      $region92: #{tpu_custom_call.1} parent=5 // pred_fallthru
        _
      %p1706 = scmp.le.s32.totalorder 2, %s36
      // Predicated region
      $region125: #{tpu_custom_call.1} parent=5 // pred_check
        %p1707 = pneg %p1706
      $region126: #{tpu_custom_call.1} parent=5 // pred_check_branch
        %1709 = sbr.rel (%p1707) target = $region128
      $region127: #{tpu_custom_call.1} parent=5 // pred_region
        %s1710 = ssub.s32 %s36, 2
        // Predicated region
        $region129: #{tpu_custom_call.1} parent=127 // pred_check
          %p1711 = pneg %p453
        $region130: #{tpu_custom_call.1} parent=127 // pred_check_branch
          %1713 = sbr.rel (%p1711) target = $region132
        $region131: #{tpu_custom_call.1} parent=127 // pred_region
          %s1714 = sand.u32 %s438, 1
          %s1715 = scalar_lea.sflag [#allocation5], %s1714
          %s1716 = sand.u32 %s438, 1
          %s1717 = smul.addr %s1716, 8
          %s1718 = scalar_lea.vmem [#allocation14], %s1717
          %1719 = dma.done %s1715, 128
        $region132: #{tpu_custom_call.1} parent=127 // pred_fallthru
          _
        // Predicated region
        $region133: #{tpu_custom_call.1} parent=127 // pred_check
          %p1720 = pneg %p479
        $region134: #{tpu_custom_call.1} parent=127 // pred_check_branch
          %1722 = sbr.rel (%p1720) target = $region136
        $region135: #{tpu_custom_call.1} parent=127 // pred_region
          %s1723 = sand.u32 %s464, 1
          %s1724 = scalar_lea.sflag [#allocation16], %s1723
          %s1725 = sand.u32 %s464, 1
          %s1726 = smul.addr %s1725, 32
          %s1727 = scalar_lea.vmem [#allocation15], %s1726
          %1728 = dma.done %s1724, 512
        $region136: #{tpu_custom_call.1} parent=127 // pred_fallthru
          _
      $region128: #{tpu_custom_call.1} parent=5 // pred_fallthru
        _
    $region6: #{tpu_custom_call.1} parent=1 // loop_footer
      %s40 = sadd.s32 1, %s36
    $region7: #{tpu_custom_call.1} parent=1 // loop_footer_branch
      %35 = sbr.rel target = $region3
    $region8: #{tpu_custom_call.1} parent=1 // loop_exit
      _
    %1729 = vsyncpa [#allocation4], 1
    %s1730 = scalar_lea.sflag [#allocation4], 1
    %1731 = vsyncpa %s1730, 1
    %1732 = vsyncpa [#allocation7], 1
    %1733 = vsyncpa [#allocation10], 1
    %1734 = vsyncpa [#allocation13], 1
    %1735 = vsyncpa [#allocation5], 1
    %s1736 = scalar_lea.sflag [#allocation5], 1
    %1737 = vsyncpa %s1736, 1
    %1738 = vsyncpa [#allocation16], 1
    %s1739 = scalar_lea.sflag [#allocation16], 1
    %1740 = vsyncpa %s1739, 1

// kernel: tpu_custom_call.1
$region0: #{tpu_custom_call.1}
  #allocation0 [shape = 'u32[]', space=smem, size = 0x4, offset = 0x4, fixed_abs, tag = 'smem constant byte address 0x4 - core index']
  #allocation1 [shape = 'u32[144,128]{1,0:T(1,128)}', space=vmem, size = 0x12000, scoped, tag = 'internal scratch']
  #allocation2 [shape = 'bf16[8,32]{1,0:T(8,128)(2,1)}', space=vmem, size = 0x800, scoped, tag = 'scratch operand']
  %s0 = inlined_call_operand.vmem [shape: f32[2,8,32], index: 0, kind: input, shape index: {}]
  %s1 = inlined_call_operand.vmem [shape: f32[2,1,8], index: 1, kind: input, shape index: {}]
  %s2 = inlined_call_operand.vmem [shape: bf16[32,32], index: 2, kind: input, shape index: {}]
  %s3 = inlined_call_operand.hbm [shape: f32[1,32], index: 3, kind: input, shape index: {}]
  %s4 = inlined_call_operand.vmem [shape: bf16[32,32], index: 4, kind: input, shape index: {}]
  %s5 = inlined_call_operand.hbm [shape: f32[1,32], index: 5, kind: input, shape index: {}]
  %s6 = inlined_call_operand.hbm [shape: bf16[32,32], index: 6, kind: input, shape index: {}]
  %s7 = inlined_call_operand.hbm [shape: f32[1,32], index: 7, kind: input, shape index: {}]
  %s8 = inlined_call_operand.hbm [shape: bf16[32,32], index: 8, kind: input, shape index: {}]
  %s9 = inlined_call_operand.hbm [shape: f32[1,32], index: 9, kind: input, shape index: {}]
  %s10 = inlined_call_operand.vmem [shape: f32[1,32], index: 10, kind: input, shape index: {}]
  %s11 = inlined_call_operand.vmem [shape: f32[1,32], index: 11, kind: input, shape index: {}]
  %s12 = inlined_call_operand.vmem [shape: bf16[32,64], index: 12, kind: input, shape index: {}]
  %s13 = inlined_call_operand.vmem [shape: f32[1,64], index: 13, kind: input, shape index: {}]
  %s14 = inlined_call_operand.vmem [shape: bf16[64,32], index: 14, kind: input, shape index: {}]
  %s15 = inlined_call_operand.vmem [shape: f32[1,32], index: 15, kind: input, shape index: {}]
  %s16 = inlined_call_operand.vmem [shape: f32[1,32], index: 16, kind: input, shape index: {}]
  %s17 = inlined_call_operand.vmem [shape: f32[1,32], index: 17, kind: input, shape index: {}]
  %s18 = inlined_call_operand.hbm [shape: f32[2,8,32], index: 18, kind: output, shape index: {0}]
  %s19 = inlined_call_operand.hbm [shape: f32[2,4,8,8], index: 19, kind: output, shape index: {1}]
  %20 = xla_tuple %s18, %s19
  %s21 = sld [smem:[#allocation0]]
  $region137: #{tpu_custom_call.1} parent=0
    _
  %s23 = ssub.s32 1, %s21
  %s24 = scalar_select 0, %s23, %s21
  $region1: #{tpu_custom_call.1} parent=0
    #allocation3 [shape = 'u8[512]{0}', space=vmem, size = 0x400, scoped, tag = 'input window, operand 3, single buffered']
    #allocation4 [shape = 's32[2]{0}', space=sflag, size = 0x8, scoped, tag = 'scoped memory for tpu_custom_call.1']
    #allocation5 [shape = 's32[2]{0}', space=sflag, size = 0x8, scoped, tag = 'scoped memory for tpu_custom_call.1']
    #allocation6 [shape = 'u8[512]{0}', space=vmem, size = 0x400, scoped, tag = 'input window, operand 5, single buffered']
    #allocation7 [shape = 's32[1]{0}', space=sflag, size = 0x4, scoped, tag = 'scoped memory for tpu_custom_call.1']
    #allocation8 [shape = 'u8[8192]{0}', space=vmem, size = 0x2000, scoped, tag = 'input window, operand 6, single buffered']
    #allocation9 [shape = 'u8[512]{0}', space=vmem, size = 0x400, scoped, tag = 'input window, operand 7, single buffered']
    #allocation10 [shape = 's32[1]{0}', space=sflag, size = 0x4, scoped, tag = 'scoped memory for tpu_custom_call.1']
    #allocation11 [shape = 'u8[8192]{0}', space=vmem, size = 0x2000, scoped, tag = 'input window, operand 8, single buffered']
    #allocation12 [shape = 'u8[512]{0}', space=vmem, size = 0x400, scoped, tag = 'input window, operand 9, single buffered']
    #allocation13 [shape = 's32[1]{0}', space=sflag, size = 0x4, scoped, tag = 'scoped memory for tpu_custom_call.1']
    #allocation14 [shape = 'u8[8192]{0}', space=vmem, size = 0x2000, scoped, tag = 'output window, operand 0']
    #allocation15 [shape = 'u8[32768]{0}', space=vmem, size = 0x8000, scoped, tag = 'output window, operand 1']
    #allocation16 [shape = 's32[2]{0}', space=sflag, size = 0x8, scoped, tag = 'scoped memory for tpu_custom_call.1']
    %25 = vsyncpa [#allocation4], 0
    %26 = vsyncpa [#allocation7], 0
    %27 = vsyncpa [#allocation10], 0
    %28 = vsyncpa [#allocation13], 0
    %29 = vsyncpa [#allocation5], 0
    %s30 = scalar_lea.sflag [#allocation5], 1
    %31 = vsyncpa %s30, 0
    %32 = vsyncpa [#allocation16], 0
    %s33 = scalar_lea.sflag [#allocation16], 1
    %34 = vsyncpa %s33, 0
    loop: start=0, step=1, limit=4
    $region2: #{tpu_custom_call.1} parent=1 // loop_pre_header
      _
    $region3: #{tpu_custom_call.1} parent=1 // loop_header
      %s36 = sphi 0, %s40
      %p37 = scmp.ge.s32.totalorder %s36, 4
      %s46 = sphi 0, %s48
      %s49 = sphi 0, %s46
      %s50 = sphi 0, %s49
      %s66 = sphi 0, %s50
      %s72 = sphi 0, %s74
      %s75 = sphi 0, %s72
      %s76 = sphi 0, %s75
      %s92 = sphi 0, %s76
      %s96 = sphi 0, %s96
      %s98 = sphi 0, %s96
      %s99 = sphi 0, %s98
      %s113 = sphi 0, %s99
      %s117 = sphi 0, %s117
      %s119 = sphi 0, %s117
      %s120 = sphi 0, %s119
      %s134 = sphi 0, %s120
      %s138 = sphi 0, %s138
      %s140 = sphi 0, %s138
      %s141 = sphi 0, %s140
      %s155 = sphi 0, %s141
      %s159 = sphi 0, %s159
      %s161 = sphi 0, %s159
      %s162 = sphi 0, %s161
      %s176 = sphi 0, %s162
      %s180 = sphi 0, %s180
      %s182 = sphi 0, %s180
      %s183 = sphi 0, %s182
      %s197 = sphi 0, %s183
      %s201 = sphi 0, %s201
      %s203 = sphi 0, %s201
      %s204 = sphi 0, %s203
      %s218 = sphi 0, %s204
      %s222 = sphi 0, %s222
      %s224 = sphi 0, %s222
      %s225 = sphi 0, %s224
      %s239 = sphi 0, %s225
      %s243 = sphi 0, %s243
      %s245 = sphi 0, %s243
      %s246 = sphi 0, %s245
      %s260 = sphi 0, %s246
      %s264 = sphi 0, %s264
      %s266 = sphi 0, %s264
      %s267 = sphi 0, %s266
      %s281 = sphi 0, %s267
      %s285 = sphi 0, %s285
      %s287 = sphi 0, %s285
      %s288 = sphi 0, %s287
      %s302 = sphi 0, %s288
      %s306 = sphi 0, %s306
      %s308 = sphi 0, %s306
      %s309 = sphi 0, %s308
      %s323 = sphi 0, %s309
      %s327 = sphi 0, %s327
      %s329 = sphi 0, %s327
      %s330 = sphi 0, %s329
      %s344 = sphi 0, %s330
      %s348 = sphi 0, %s348
      %s350 = sphi 0, %s348
      %s351 = sphi 0, %s350
      %s365 = sphi 0, %s351
      %s369 = sphi 0, %s369
      %s371 = sphi 0, %s369
      %s372 = sphi 0, %s371
      %s386 = sphi 0, %s372
      %s390 = sphi 0, %s390
      %s392 = sphi 0, %s390
      %s393 = sphi 0, %s392
      %s407 = sphi 0, %s393
      %s411 = sphi 0, %s411
      %s413 = sphi 0, %s411
      %s414 = sphi 0, %s413
      %s428 = sphi 0, %s414
      %s434 = sphi 0, %s436
      %s437 = sphi 0, %s434
      %s438 = sphi 0, %s437
      %s454 = sphi 0, %s438
      %s460 = sphi 0, %s462
      %s463 = sphi 0, %s460
      %s464 = sphi 0, %s463
      %s480 = sphi 0, %s464
    $region4: #{tpu_custom_call.1} parent=1 // loop_header_branch
      %39 = sbr.rel (%p37) target = $region8
    $region5: #{tpu_custom_call.1} parent=1 // loop_body
      %s41 = ssub.s32 %s36, 1
      %s42 = ssub.s32 %s36, 2
      %s43 = sadd.s32 %s36, 1
      %s44 = ssub.s32 %s36, %s43
      %p45 = scmp.eq.s32.totalorder %s44, 0
      %s47 = sadd.s32 %s46, 1
      %s48 = scalar_select %p45, %s46, %s47
      %p51 = pneg %p45
      %p52 = scmp.eq.s32.totalorder %s36, 1
      %p53 = por %p51, %p52
      %p54 = scmp.ne.s32.totalorder %s46, %s49
      %p55 = scmp.eq.s32.totalorder %s36, 0
      %p56 = por %p54, %p55
      %p57 = scmp.ne.s32.totalorder %s46, %s49
      %p58 = scmp.eq.s32.totalorder %s41, 1
      %p59 = por %p57, %p58
      %p60 = scmp.ne.s32.totalorder %s49, %s50
      %p61 = scmp.eq.s32.totalorder %s41, 0
      %p62 = por %p60, %p61
      %p63 = scmp.ne.s32.totalorder %s49, %s50
      %p64 = scmp.eq.s32.totalorder %s42, 1
      %p65 = por %p63, %p64
      %p67 = scmp.ne.s32.totalorder %s50, %s66
      %p68 = scmp.eq.s32.totalorder %s42, 0
      %p69 = por %p67, %p68
      %s70 = ssub.s32 %s36, %s43
      %p71 = scmp.eq.s32.totalorder %s70, 0
      %s73 = sadd.s32 %s72, 1
      %s74 = scalar_select %p71, %s72, %s73
      %p77 = pneg %p71
      %p78 = scmp.eq.s32.totalorder %s36, 1
      %p79 = por %p77, %p78
      %p80 = scmp.ne.s32.totalorder %s72, %s75
      %p81 = scmp.eq.s32.totalorder %s36, 0
      %p82 = por %p80, %p81
      %p83 = scmp.ne.s32.totalorder %s72, %s75
      %p84 = scmp.eq.s32.totalorder %s41, 1
      %p85 = por %p83, %p84
      %p86 = scmp.ne.s32.totalorder %s75, %s76
      %p87 = scmp.eq.s32.totalorder %s41, 0
      %p88 = por %p86, %p87
      %p89 = scmp.ne.s32.totalorder %s75, %s76
      %p90 = scmp.eq.s32.totalorder %s42, 1
      %p91 = por %p89, %p90
      %p93 = scmp.ne.s32.totalorder %s76, %s92
      %p94 = scmp.eq.s32.totalorder %s42, 0
      %p95 = por %p93, %p94
      %s97 = sadd.s32 %s96, 1
      %p100 = scmp.eq.s32.totalorder %s36, 1
      %p101 = scmp.ne.s32.totalorder %s96, %s98
      %p102 = scmp.eq.s32.totalorder %s36, 0
      %p103 = por %p101, %p102
      %p104 = scmp.ne.s32.totalorder %s96, %s98
      %p105 = scmp.eq.s32.totalorder %s41, 1
      %p106 = por %p104, %p105
      %p107 = scmp.ne.s32.totalorder %s98, %s99
      %p108 = scmp.eq.s32.totalorder %s41, 0
      %p109 = por %p107, %p108
      %p110 = scmp.ne.s32.totalorder %s98, %s99
      %p111 = scmp.eq.s32.totalorder %s42, 1
      %p112 = por %p110, %p111
      %p114 = scmp.ne.s32.totalorder %s99, %s113
      %p115 = scmp.eq.s32.totalorder %s42, 0
      %p116 = por %p114, %p115
      %s118 = sadd.s32 %s117, 1
      %p121 = scmp.eq.s32.totalorder %s36, 1
      %p122 = scmp.ne.s32.totalorder %s117, %s119
      %p123 = scmp.eq.s32.totalorder %s36, 0
      %p124 = por %p122, %p123
      %p125 = scmp.ne.s32.totalorder %s117, %s119
      %p126 = scmp.eq.s32.totalorder %s41, 1
      %p127 = por %p125, %p126
      %p128 = scmp.ne.s32.totalorder %s119, %s120
      %p129 = scmp.eq.s32.totalorder %s41, 0
      %p130 = por %p128, %p129
      %p131 = scmp.ne.s32.totalorder %s119, %s120
      %p132 = scmp.eq.s32.totalorder %s42, 1
      %p133 = por %p131, %p132
      %p135 = scmp.ne.s32.totalorder %s120, %s134
      %p136 = scmp.eq.s32.totalorder %s42, 0
      %p137 = por %p135, %p136
      %s139 = sadd.s32 %s138, 1
      %p142 = scmp.eq.s32.totalorder %s36, 1
      %p143 = scmp.ne.s32.totalorder %s138, %s140
      %p144 = scmp.eq.s32.totalorder %s36, 0
      %p145 = por %p143, %p144
      %p146 = scmp.ne.s32.totalorder %s138, %s140
      %p147 = scmp.eq.s32.totalorder %s41, 1
      %p148 = por %p146, %p147
      %p149 = scmp.ne.s32.totalorder %s140, %s141
      %p150 = scmp.eq.s32.totalorder %s41, 0
      %p151 = por %p149, %p150
      %p152 = scmp.ne.s32.totalorder %s140, %s141
      %p153 = scmp.eq.s32.totalorder %s42, 1
      %p154 = por %p152, %p153
      %p156 = scmp.ne.s32.totalorder %s141, %s155
      %p157 = scmp.eq.s32.totalorder %s42, 0
      %p158 = por %p156, %p157
      %s160 = sadd.s32 %s159, 1
      %p163 = scmp.eq.s32.totalorder %s36, 1
      %p164 = scmp.ne.s32.totalorder %s159, %s161
      %p165 = scmp.eq.s32.totalorder %s36, 0
      %p166 = por %p164, %p165
      %p167 = scmp.ne.s32.totalorder %s159, %s161
      %p168 = scmp.eq.s32.totalorder %s41, 1
      %p169 = por %p167, %p168
      %p170 = scmp.ne.s32.totalorder %s161, %s162
      %p171 = scmp.eq.s32.totalorder %s41, 0
      %p172 = por %p170, %p171
      %p173 = scmp.ne.s32.totalorder %s161, %s162
      %p174 = scmp.eq.s32.totalorder %s42, 1
      %p175 = por %p173, %p174
      %p177 = scmp.ne.s32.totalorder %s162, %s176
      %p178 = scmp.eq.s32.totalorder %s42, 0
      %p179 = por %p177, %p178
      %s181 = sadd.s32 %s180, 1
      %p184 = scmp.eq.s32.totalorder %s36, 1
      %p185 = scmp.ne.s32.totalorder %s180, %s182
      %p186 = scmp.eq.s32.totalorder %s36, 0
      %p187 = por %p185, %p186
      %p188 = scmp.ne.s32.totalorder %s180, %s182
      %p189 = scmp.eq.s32.totalorder %s41, 1
      %p190 = por %p188, %p189
      %p191 = scmp.ne.s32.totalorder %s182, %s183
      %p192 = scmp.eq.s32.totalorder %s41, 0
      %p193 = por %p191, %p192
      %p194 = scmp.ne.s32.totalorder %s182, %s183
      %p195 = scmp.eq.s32.totalorder %s42, 1
      %p196 = por %p194, %p195
      %p198 = scmp.ne.s32.totalorder %s183, %s197
      %p199 = scmp.eq.s32.totalorder %s42, 0
      %p200 = por %p198, %p199
      %s202 = sadd.s32 %s201, 1
      %p205 = scmp.eq.s32.totalorder %s36, 1
      %p206 = scmp.ne.s32.totalorder %s201, %s203
      %p207 = scmp.eq.s32.totalorder %s36, 0
      %p208 = por %p206, %p207
      %p209 = scmp.ne.s32.totalorder %s201, %s203
      %p210 = scmp.eq.s32.totalorder %s41, 1
      %p211 = por %p209, %p210
      %p212 = scmp.ne.s32.totalorder %s203, %s204
      %p213 = scmp.eq.s32.totalorder %s41, 0
      %p214 = por %p212, %p213
      %p215 = scmp.ne.s32.totalorder %s203, %s204
      %p216 = scmp.eq.s32.totalorder %s42, 1
      %p217 = por %p215, %p216
      %p219 = scmp.ne.s32.totalorder %s204, %s218
      %p220 = scmp.eq.s32.totalorder %s42, 0
      %p221 = por %p219, %p220
      %s223 = sadd.s32 %s222, 1
      %p226 = scmp.eq.s32.totalorder %s36, 1
      %p227 = scmp.ne.s32.totalorder %s222, %s224
      %p228 = scmp.eq.s32.totalorder %s36, 0
      %p229 = por %p227, %p228
      %p230 = scmp.ne.s32.totalorder %s222, %s224
      %p231 = scmp.eq.s32.totalorder %s41, 1
      %p232 = por %p230, %p231
      %p233 = scmp.ne.s32.totalorder %s224, %s225
      %p234 = scmp.eq.s32.totalorder %s41, 0
      %p235 = por %p233, %p234
      %p236 = scmp.ne.s32.totalorder %s224, %s225
      %p237 = scmp.eq.s32.totalorder %s42, 1
      %p238 = por %p236, %p237
      %p240 = scmp.ne.s32.totalorder %s225, %s239
      %p241 = scmp.eq.s32.totalorder %s42, 0
      %p242 = por %p240, %p241
      %s244 = sadd.s32 %s243, 1
      %p247 = scmp.eq.s32.totalorder %s36, 1
      %p248 = scmp.ne.s32.totalorder %s243, %s245
      %p249 = scmp.eq.s32.totalorder %s36, 0
      %p250 = por %p248, %p249
      %p251 = scmp.ne.s32.totalorder %s243, %s245
      %p252 = scmp.eq.s32.totalorder %s41, 1
      %p253 = por %p251, %p252
      %p254 = scmp.ne.s32.totalorder %s245, %s246
      %p255 = scmp.eq.s32.totalorder %s41, 0
      %p256 = por %p254, %p255
      %p257 = scmp.ne.s32.totalorder %s245, %s246
      %p258 = scmp.eq.s32.totalorder %s42, 1
      %p259 = por %p257, %p258
      %p261 = scmp.ne.s32.totalorder %s246, %s260
      %p262 = scmp.eq.s32.totalorder %s42, 0
      %p263 = por %p261, %p262
      %s265 = sadd.s32 %s264, 1
      %p268 = scmp.eq.s32.totalorder %s36, 1
      %p269 = scmp.ne.s32.totalorder %s264, %s266
      %p270 = scmp.eq.s32.totalorder %s36, 0
      %p271 = por %p269, %p270
      %p272 = scmp.ne.s32.totalorder %s264, %s266
      %p273 = scmp.eq.s32.totalorder %s41, 1
      %p274 = por %p272, %p273
      %p275 = scmp.ne.s32.totalorder %s266, %s267
      %p276 = scmp.eq.s32.totalorder %s41, 0
      %p277 = por %p275, %p276
      %p278 = scmp.ne.s32.totalorder %s266, %s267
      %p279 = scmp.eq.s32.totalorder %s42, 1
      %p280 = por %p278, %p279
      %p282 = scmp.ne.s32.totalorder %s267, %s281
      %p283 = scmp.eq.s32.totalorder %s42, 0
      %p284 = por %p282, %p283
      %s286 = sadd.s32 %s285, 1
      %p289 = scmp.eq.s32.totalorder %s36, 1
      %p290 = scmp.ne.s32.totalorder %s285, %s287
      %p291 = scmp.eq.s32.totalorder %s36, 0
      %p292 = por %p290, %p291
      %p293 = scmp.ne.s32.totalorder %s285, %s287
      %p294 = scmp.eq.s32.totalorder %s41, 1
      %p295 = por %p293, %p294
      %p296 = scmp.ne.s32.totalorder %s287, %s288
      %p297 = scmp.eq.s32.totalorder %s41, 0
      %p298 = por %p296, %p297
      %p299 = scmp.ne.s32.totalorder %s287, %s288
      %p300 = scmp.eq.s32.totalorder %s42, 1
      %p301 = por %p299, %p300
      %p303 = scmp.ne.s32.totalorder %s288, %s302
      %p304 = scmp.eq.s32.totalorder %s42, 0
      %p305 = por %p303, %p304
      %s307 = sadd.s32 %s306, 1
      %p310 = scmp.eq.s32.totalorder %s36, 1
      %p311 = scmp.ne.s32.totalorder %s306, %s308
      %p312 = scmp.eq.s32.totalorder %s36, 0
      %p313 = por %p311, %p312
      %p314 = scmp.ne.s32.totalorder %s306, %s308
      %p315 = scmp.eq.s32.totalorder %s41, 1
      %p316 = por %p314, %p315
      %p317 = scmp.ne.s32.totalorder %s308, %s309
      %p318 = scmp.eq.s32.totalorder %s41, 0
      %p319 = por %p317, %p318
      %p320 = scmp.ne.s32.totalorder %s308, %s309
      %p321 = scmp.eq.s32.totalorder %s42, 1
      %p322 = por %p320, %p321
      %p324 = scmp.ne.s32.totalorder %s309, %s323
      %p325 = scmp.eq.s32.totalorder %s42, 0
      %p326 = por %p324, %p325
      %s328 = sadd.s32 %s327, 1
      %p331 = scmp.eq.s32.totalorder %s36, 1
      %p332 = scmp.ne.s32.totalorder %s327, %s329
      %p333 = scmp.eq.s32.totalorder %s36, 0
      %p334 = por %p332, %p333
      %p335 = scmp.ne.s32.totalorder %s327, %s329
      %p336 = scmp.eq.s32.totalorder %s41, 1
      %p337 = por %p335, %p336
      %p338 = scmp.ne.s32.totalorder %s329, %s330
      %p339 = scmp.eq.s32.totalorder %s41, 0
      %p340 = por %p338, %p339
      %p341 = scmp.ne.s32.totalorder %s329, %s330
      %p342 = scmp.eq.s32.totalorder %s42, 1
      %p343 = por %p341, %p342
      %p345 = scmp.ne.s32.totalorder %s330, %s344
      %p346 = scmp.eq.s32.totalorder %s42, 0
      %p347 = por %p345, %p346
      %s349 = sadd.s32 %s348, 1
      %p352 = scmp.eq.s32.totalorder %s36, 1
      %p353 = scmp.ne.s32.totalorder %s348, %s350
      %p354 = scmp.eq.s32.totalorder %s36, 0
      %p355 = por %p353, %p354
      %p356 = scmp.ne.s32.totalorder %s348, %s350
      %p357 = scmp.eq.s32.totalorder %s41, 1
      %p358 = por %p356, %p357
      %p359 = scmp.ne.s32.totalorder %s350, %s351
      %p360 = scmp.eq.s32.totalorder %s41, 0
      %p361 = por %p359, %p360
      %p362 = scmp.ne.s32.totalorder %s350, %s351
      %p363 = scmp.eq.s32.totalorder %s42, 1
      %p364 = por %p362, %p363
      %p366 = scmp.ne.s32.totalorder %s351, %s365
      %p367 = scmp.eq.s32.totalorder %s42, 0
      %p368 = por %p366, %p367
      %s370 = sadd.s32 %s369, 1
      %p373 = scmp.eq.s32.totalorder %s36, 1
      %p374 = scmp.ne.s32.totalorder %s369, %s371
      %p375 = scmp.eq.s32.totalorder %s36, 0
      %p376 = por %p374, %p375
      %p377 = scmp.ne.s32.totalorder %s369, %s371
      %p378 = scmp.eq.s32.totalorder %s41, 1
      %p379 = por %p377, %p378
      %p380 = scmp.ne.s32.totalorder %s371, %s372
      %p381 = scmp.eq.s32.totalorder %s41, 0
      %p382 = por %p380, %p381
      %p383 = scmp.ne.s32.totalorder %s371, %s372
      %p384 = scmp.eq.s32.totalorder %s42, 1
      %p385 = por %p383, %p384
      %p387 = scmp.ne.s32.totalorder %s372, %s386
      %p388 = scmp.eq.s32.totalorder %s42, 0
      %p389 = por %p387, %p388
      %s391 = sadd.s32 %s390, 1
      %p394 = scmp.eq.s32.totalorder %s36, 1
      %p395 = scmp.ne.s32.totalorder %s390, %s392
      %p396 = scmp.eq.s32.totalorder %s36, 0
      %p397 = por %p395, %p396
      %p398 = scmp.ne.s32.totalorder %s390, %s392
      %p399 = scmp.eq.s32.totalorder %s41, 1
      %p400 = por %p398, %p399
      %p401 = scmp.ne.s32.totalorder %s392, %s393
      %p402 = scmp.eq.s32.totalorder %s41, 0
      %p403 = por %p401, %p402
      %p404 = scmp.ne.s32.totalorder %s392, %s393
      %p405 = scmp.eq.s32.totalorder %s42, 1
      %p406 = por %p404, %p405
      %p408 = scmp.ne.s32.totalorder %s393, %s407
      %p409 = scmp.eq.s32.totalorder %s42, 0
      %p410 = por %p408, %p409
      %s412 = sadd.s32 %s411, 1
      %p415 = scmp.eq.s32.totalorder %s36, 1
      %p416 = scmp.ne.s32.totalorder %s411, %s413
      %p417 = scmp.eq.s32.totalorder %s36, 0
      %p418 = por %p416, %p417
      %p419 = scmp.ne.s32.totalorder %s411, %s413
      %p420 = scmp.eq.s32.totalorder %s41, 1
      %p421 = por %p419, %p420
      %p422 = scmp.ne.s32.totalorder %s413, %s414
      %p423 = scmp.eq.s32.totalorder %s41, 0
      %p424 = por %p422, %p423
      %p425 = scmp.ne.s32.totalorder %s413, %s414
      %p426 = scmp.eq.s32.totalorder %s42, 1
      %p427 = por %p425, %p426
      %p429 = scmp.ne.s32.totalorder %s414, %s428
      %p430 = scmp.eq.s32.totalorder %s42, 0
      %p431 = por %p429, %p430
      %s432 = ssub.s32 %s36, %s43
      %p433 = scmp.eq.s32.totalorder %s432, 0
      %s435 = sadd.s32 %s434, 1
      %s436 = scalar_select %p433, %s434, %s435
      %p439 = pneg %p433
      %p440 = scmp.eq.s32.totalorder %s36, 1
      %p441 = por %p439, %p440
      %p442 = scmp.ne.s32.totalorder %s434, %s437
      %p443 = scmp.eq.s32.totalorder %s36, 0
      %p444 = por %p442, %p443
      %p445 = scmp.ne.s32.totalorder %s434, %s437
      %p446 = scmp.eq.s32.totalorder %s41, 1
      %p447 = por %p445, %p446
      %p448 = scmp.ne.s32.totalorder %s437, %s438
      %p449 = scmp.eq.s32.totalorder %s41, 0
      %p450 = por %p448, %p449
      %p451 = scmp.ne.s32.totalorder %s437, %s438
      %p452 = scmp.eq.s32.totalorder %s42, 1
      %p453 = por %p451, %p452
      %p455 = scmp.ne.s32.totalorder %s438, %s454
      %p456 = scmp.eq.s32.totalorder %s42, 0
      %p457 = por %p455, %p456
      %s458 = ssub.s32 %s36, %s43
      %p459 = scmp.eq.s32.totalorder %s458, 0
      %s461 = sadd.s32 %s460, 1
      %s462 = scalar_select %p459, %s460, %s461
      %p465 = pneg %p459
      %p466 = scmp.eq.s32.totalorder %s36, 1
      %p467 = por %p465, %p466
      %p468 = scmp.ne.s32.totalorder %s460, %s463
      %p469 = scmp.eq.s32.totalorder %s36, 0
      %p470 = por %p468, %p469
      %p471 = scmp.ne.s32.totalorder %s460, %s463
      %p472 = scmp.eq.s32.totalorder %s41, 1
      %p473 = por %p471, %p472
      %p474 = scmp.ne.s32.totalorder %s463, %s464
      %p475 = scmp.eq.s32.totalorder %s41, 0
      %p476 = por %p474, %p475
      %p477 = scmp.ne.s32.totalorder %s463, %s464
      %p478 = scmp.eq.s32.totalorder %s42, 1
      %p479 = por %p477, %p478
      %p481 = scmp.ne.s32.totalorder %s464, %s480
      %p482 = scmp.eq.s32.totalorder %s42, 0
      %p483 = por %p481, %p482
      %p484 = scmp.le.s32.totalorder 1, %s36
      %p485 = scmp.lt.s32.totalorder %s36, 3
      %p486 = pnand %p484, %p485
      %p487 = pneg %p486
      // Predicated region
      $region9: #{tpu_custom_call.1} parent=5 // pred_check
        _
      $region10: #{tpu_custom_call.1} parent=5 // pred_check_branch
        %489 = sbr.rel (%p486) target = $region12
      $region11: #{tpu_custom_call.1} parent=5 // pred_region
        %s490 = ssub.s32 %s36, 1
        // Predicated region
        $region13: #{tpu_custom_call.1} parent=11 // pred_check
          %p491 = pneg %p109
        $region14: #{tpu_custom_call.1} parent=11 // pred_check_branch
          %493 = sbr.rel (%p491) target = $region16
        $region15: #{tpu_custom_call.1} parent=11 // pred_region
          _
        $region16: #{tpu_custom_call.1} parent=11 // pred_fallthru
          _
        // Predicated region
        $region17: #{tpu_custom_call.1} parent=11 // pred_check
          %p494 = pneg %p130
        $region18: #{tpu_custom_call.1} parent=11 // pred_check_branch
          %496 = sbr.rel (%p494) target = $region20
        $region19: #{tpu_custom_call.1} parent=11 // pred_region
          %s498 = ssub.s32 16, 16
          %499 = vsyncadd [#allocation4], %s498
          %s501 = sshll.u32 [#allocation3], 4
          %s502 = int_to_ptr.vmem [resolvable:$true] %s501
          %504 = dma.hbm_to_vmem [thread:$0]  %s3, 16, %s502, [#allocation4]
        $region20: #{tpu_custom_call.1} parent=11 // pred_fallthru
          _
        // Predicated region
        $region21: #{tpu_custom_call.1} parent=11 // pred_check
          %p505 = pneg %p151
        $region22: #{tpu_custom_call.1} parent=11 // pred_check_branch
          %507 = sbr.rel (%p505) target = $region24
        $region23: #{tpu_custom_call.1} parent=11 // pred_region
          _
        $region24: #{tpu_custom_call.1} parent=11 // pred_fallthru
          _
        // Predicated region
        $region25: #{tpu_custom_call.1} parent=11 // pred_check
          %p508 = pneg %p172
        $region26: #{tpu_custom_call.1} parent=11 // pred_check_branch
          %510 = sbr.rel (%p508) target = $region28
        $region27: #{tpu_custom_call.1} parent=11 // pred_region
          %s512 = ssub.s32 16, 16
          %513 = vsyncadd [#allocation7], %s512
          %s515 = sshll.u32 [#allocation6], 4
          %s516 = int_to_ptr.vmem [resolvable:$true] %s515
          %518 = dma.hbm_to_vmem [thread:$0]  %s5, 16, %s516, [#allocation7]
        $region28: #{tpu_custom_call.1} parent=11 // pred_fallthru
          _
        // Predicated region
        $region29: #{tpu_custom_call.1} parent=11 // pred_check
          %p519 = pneg %p193
        $region30: #{tpu_custom_call.1} parent=11 // pred_check_branch
          %521 = sbr.rel (%p519) target = $region32
        $region31: #{tpu_custom_call.1} parent=11 // pred_region
          %s523 = ssub.s32 256, 256
          %524 = vsyncadd [#allocation7], %s523
          %s525 = sshll.u32 [#allocation8], 4
          %s526 = int_to_ptr.vmem [resolvable:$true] %s525
          %531 = dma.hbm_to_vmem [thread:$0]  %s6, 256, %s526, [#allocation7], 64, 64, 4
        $region32: #{tpu_custom_call.1} parent=11 // pred_fallthru
          _
        // Predicated region
        $region33: #{tpu_custom_call.1} parent=11 // pred_check
          %p532 = pneg %p214
        $region34: #{tpu_custom_call.1} parent=11 // pred_check_branch
          %534 = sbr.rel (%p532) target = $region36
        $region35: #{tpu_custom_call.1} parent=11 // pred_region
          %s536 = ssub.s32 16, 16
          %537 = vsyncadd [#allocation10], %s536
          %s539 = sshll.u32 [#allocation9], 4
          %s540 = int_to_ptr.vmem [resolvable:$true] %s539
          %542 = dma.hbm_to_vmem [thread:$0]  %s7, 16, %s540, [#allocation10]
        $region36: #{tpu_custom_call.1} parent=11 // pred_fallthru
          _
        // Predicated region
        $region37: #{tpu_custom_call.1} parent=11 // pred_check
          %p543 = pneg %p235
        $region38: #{tpu_custom_call.1} parent=11 // pred_check_branch
          %545 = sbr.rel (%p543) target = $region40
        $region39: #{tpu_custom_call.1} parent=11 // pred_region
          %s547 = ssub.s32 256, 256
          %548 = vsyncadd [#allocation10], %s547
          %s549 = sshll.u32 [#allocation11], 4
          %s550 = int_to_ptr.vmem [resolvable:$true] %s549
          %555 = dma.hbm_to_vmem [thread:$0]  %s8, 256, %s550, [#allocation10], 64, 64, 4
        $region40: #{tpu_custom_call.1} parent=11 // pred_fallthru
          _
        // Predicated region
        $region41: #{tpu_custom_call.1} parent=11 // pred_check
          %p556 = pneg %p256
        $region42: #{tpu_custom_call.1} parent=11 // pred_check_branch
          %558 = sbr.rel (%p556) target = $region44
        $region43: #{tpu_custom_call.1} parent=11 // pred_region
          %s560 = ssub.s32 16, 16
          %561 = vsyncadd [#allocation13], %s560
          %s563 = sshll.u32 [#allocation12], 4
          %s564 = int_to_ptr.vmem [resolvable:$true] %s563
          %566 = dma.hbm_to_vmem [thread:$0]  %s9, 16, %s564, [#allocation13]
        $region44: #{tpu_custom_call.1} parent=11 // pred_fallthru
          _
        // Predicated region
        $region45: #{tpu_custom_call.1} parent=11 // pred_check
          %p567 = pneg %p277
        $region46: #{tpu_custom_call.1} parent=11 // pred_check_branch
          %569 = sbr.rel (%p567) target = $region48
        $region47: #{tpu_custom_call.1} parent=11 // pred_region
          _
        $region48: #{tpu_custom_call.1} parent=11 // pred_fallthru
          _
        // Predicated region
        $region49: #{tpu_custom_call.1} parent=11 // pred_check
          %p570 = pneg %p298
        $region50: #{tpu_custom_call.1} parent=11 // pred_check_branch
          %572 = sbr.rel (%p570) target = $region52
        $region51: #{tpu_custom_call.1} parent=11 // pred_region
          _
        $region52: #{tpu_custom_call.1} parent=11 // pred_fallthru
          _
        // Predicated region
        $region53: #{tpu_custom_call.1} parent=11 // pred_check
          %p573 = pneg %p319
        $region54: #{tpu_custom_call.1} parent=11 // pred_check_branch
          %575 = sbr.rel (%p573) target = $region56
        $region55: #{tpu_custom_call.1} parent=11 // pred_region
          _
        $region56: #{tpu_custom_call.1} parent=11 // pred_fallthru
          _
        // Predicated region
        $region57: #{tpu_custom_call.1} parent=11 // pred_check
          %p576 = pneg %p340
        $region58: #{tpu_custom_call.1} parent=11 // pred_check_branch
          %578 = sbr.rel (%p576) target = $region60
        $region59: #{tpu_custom_call.1} parent=11 // pred_region
          _
        $region60: #{tpu_custom_call.1} parent=11 // pred_fallthru
          _
        // Predicated region
        $region61: #{tpu_custom_call.1} parent=11 // pred_check
          %p579 = pneg %p361
        $region62: #{tpu_custom_call.1} parent=11 // pred_check_branch
          %581 = sbr.rel (%p579) target = $region64
        $region63: #{tpu_custom_call.1} parent=11 // pred_region
          _
        $region64: #{tpu_custom_call.1} parent=11 // pred_fallthru
          _
        // Predicated region
        $region65: #{tpu_custom_call.1} parent=11 // pred_check
          %p582 = pneg %p382
        $region66: #{tpu_custom_call.1} parent=11 // pred_check_branch
          %584 = sbr.rel (%p582) target = $region68
        $region67: #{tpu_custom_call.1} parent=11 // pred_region
          _
        $region68: #{tpu_custom_call.1} parent=11 // pred_fallthru
          _
        // Predicated region
        $region69: #{tpu_custom_call.1} parent=11 // pred_check
          %p585 = pneg %p403
        $region70: #{tpu_custom_call.1} parent=11 // pred_check_branch
          %587 = sbr.rel (%p585) target = $region72
        $region71: #{tpu_custom_call.1} parent=11 // pred_region
          _
        $region72: #{tpu_custom_call.1} parent=11 // pred_fallthru
          _
        // Predicated region
        $region73: #{tpu_custom_call.1} parent=11 // pred_check
          %p588 = pneg %p424
        $region74: #{tpu_custom_call.1} parent=11 // pred_check_branch
          %590 = sbr.rel (%p588) target = $region76
        $region75: #{tpu_custom_call.1} parent=11 // pred_region
          _
        $region76: #{tpu_custom_call.1} parent=11 // pred_fallthru
          _
      $region12: #{tpu_custom_call.1} parent=5 // pred_fallthru
        _
      %p591 = scmp.lt.s32.totalorder %s36, 2
      // Predicated region
      $region77: #{tpu_custom_call.1} parent=5 // pred_check
        %p592 = pneg %p591
      $region78: #{tpu_custom_call.1} parent=5 // pred_check_branch
        %594 = sbr.rel (%p592) target = $region80
      $region79: #{tpu_custom_call.1} parent=5 // pred_region
        // Predicated region
        $region81: #{tpu_custom_call.1} parent=79 // pred_check
          %p595 = pneg %p56
        $region82: #{tpu_custom_call.1} parent=79 // pred_check_branch
          %597 = sbr.rel (%p595) target = $region84
        $region83: #{tpu_custom_call.1} parent=79 // pred_region
          %p598 = scmp.lt.s32.totalorder %s36, 1
          %s599 = scalar_select %p598, %s36, 1
          %s600 = smul.addr %s599, 8
          %s601 = scalar_lea.vmem %s0, %s600
        $region84: #{tpu_custom_call.1} parent=79 // pred_fallthru
          _
        // Predicated region
        $region85: #{tpu_custom_call.1} parent=79 // pred_check
          %p602 = pneg %p82
        $region86: #{tpu_custom_call.1} parent=79 // pred_check_branch
          %604 = sbr.rel (%p602) target = $region88
        $region87: #{tpu_custom_call.1} parent=79 // pred_region
          %p605 = scmp.lt.s32.totalorder %s36, 1
          %s606 = scalar_select %p605, %s36, 1
          %s607 = scalar_lea.vmem %s1, %s606
        $region88: #{tpu_custom_call.1} parent=79 // pred_fallthru
          _
      $region80: #{tpu_custom_call.1} parent=5 // pred_fallthru
        _
      %p608 = scmp.le.s32.totalorder 1, %s36
      %p609 = scmp.lt.s32.totalorder %s36, 3
      %p610 = pnand %p608, %p609
      %p611 = pneg %p610
      // Predicated region
      $region89: #{tpu_custom_call.1} parent=5 // pred_check
        _
      $region90: #{tpu_custom_call.1} parent=5 // pred_check_branch
        %613 = sbr.rel (%p610) target = $region92
      $region91: #{tpu_custom_call.1} parent=5 // pred_region
        %s614 = ssub.s32 %s36, 1
        // Predicated region
        $region93: #{tpu_custom_call.1} parent=91 // pred_check
          %p615 = pneg %p130
        $region94: #{tpu_custom_call.1} parent=91 // pred_check_branch
          %617 = sbr.rel (%p615) target = $region96
        $region95: #{tpu_custom_call.1} parent=91 // pred_region
          %618 = dma.done [#allocation4], 16
        $region96: #{tpu_custom_call.1} parent=91 // pred_fallthru
          _
        // Predicated region
        $region97: #{tpu_custom_call.1} parent=91 // pred_check
          %p619 = pneg %p172
        $region98: #{tpu_custom_call.1} parent=91 // pred_check_branch
          %621 = sbr.rel (%p619) target = $region100
        $region99: #{tpu_custom_call.1} parent=91 // pred_region
          %622 = dma.done [#allocation7], 16
        $region100: #{tpu_custom_call.1} parent=91 // pred_fallthru
          _
        // Predicated region
        $region101: #{tpu_custom_call.1} parent=91 // pred_check
          %p623 = pneg %p193
        $region102: #{tpu_custom_call.1} parent=91 // pred_check_branch
          %625 = sbr.rel (%p623) target = $region104
        $region103: #{tpu_custom_call.1} parent=91 // pred_region
          %626 = dma.done [#allocation7], 256
        $region104: #{tpu_custom_call.1} parent=91 // pred_fallthru
          _
        // Predicated region
        $region105: #{tpu_custom_call.1} parent=91 // pred_check
          %p627 = pneg %p214
        $region106: #{tpu_custom_call.1} parent=91 // pred_check_branch
          %629 = sbr.rel (%p627) target = $region108
        $region107: #{tpu_custom_call.1} parent=91 // pred_region
          %630 = dma.done [#allocation10], 16
        $region108: #{tpu_custom_call.1} parent=91 // pred_fallthru
          _
        // Predicated region
        $region109: #{tpu_custom_call.1} parent=91 // pred_check
          %p631 = pneg %p235
        $region110: #{tpu_custom_call.1} parent=91 // pred_check_branch
          %633 = sbr.rel (%p631) target = $region112
        $region111: #{tpu_custom_call.1} parent=91 // pred_region
          %634 = dma.done [#allocation10], 256
        $region112: #{tpu_custom_call.1} parent=91 // pred_fallthru
          _
        // Predicated region
        $region113: #{tpu_custom_call.1} parent=91 // pred_check
          %p635 = pneg %p256
        $region114: #{tpu_custom_call.1} parent=91 // pred_check_branch
          %637 = sbr.rel (%p635) target = $region116
        $region115: #{tpu_custom_call.1} parent=91 // pred_region
          %638 = dma.done [#allocation13], 16
        $region116: #{tpu_custom_call.1} parent=91 // pred_fallthru
          _
        %p639 = scmp.lt.s32.totalorder %s41, 1
        %s640 = scalar_select %p639, %s41, 1
        %s641 = smul.addr %s640, 8
        %s642 = scalar_lea.vmem %s0, %s641
        %p643 = pneg %p62
        %p644 = pneg %p59
        %p645 = scmp.lt.s32.totalorder %s41, 1
        %s646 = scalar_select %p645, %s41, 1
        %s647 = scalar_lea.vmem %s1, %s646
        %p648 = pneg %p88
        %p649 = pneg %p85
        %p650 = pneg %p109
        %p651 = pneg %p106
        %p652 = pneg %p130
        %p653 = pneg %p127
        %p654 = pneg %p151
        %p655 = pneg %p148
        %p656 = pneg %p172
        %p657 = pneg %p169
        %p658 = pneg %p193
        %p659 = pneg %p190
        %p660 = pneg %p214
        %p661 = pneg %p211
        %p662 = pneg %p235
        %p663 = pneg %p232
        %p664 = pneg %p256
        %p665 = pneg %p253
        %p666 = pneg %p277
        %p667 = pneg %p274
        %p668 = pneg %p298
        %p669 = pneg %p295
        %p670 = pneg %p319
        %p671 = pneg %p316
        %p672 = pneg %p340
        %p673 = pneg %p337
        %p674 = pneg %p361
        %p675 = pneg %p358
        %p676 = pneg %p382
        %p677 = pneg %p379
        %p678 = pneg %p403
        %p679 = pneg %p400
        %p680 = pneg %p424
        %p681 = pneg %p421
        %p682 = pneg %p450
        %p683 = pneg %p447
        %s684 = sand.u32 %s437, 1
        %s685 = scalar_lea.sflag [#allocation5], %s684
        %s686 = sand.u32 %s437, 1
        %s687 = smul.addr %s686, 8
        %s688 = scalar_lea.vmem [#allocation14], %s687
        %p689 = pneg %p476
        %p690 = pneg %p473
        %s691 = sand.u32 %s463, 1
        %s692 = scalar_lea.sflag [#allocation16], %s691
        %s693 = sand.u32 %s463, 1
        %s694 = smul.addr %s693, 32
        %s695 = scalar_lea.vmem [#allocation15], %s694
        %p696 = scmp.lt.s32.totalorder %s41, 1
        %s697 = scalar_select %p696, %s41, 1
        %s698 = smul.addr %s697, 8
        %s699 = scalar_lea.vmem %s0, %s698
        %p700 = scmp.lt.s32.totalorder %s41, 1
        %s701 = scalar_select %p700, %s41, 1
        %s702 = scalar_lea.vmem %s1, %s701
        %v704 = vld [vmem:[%s699] sm:$0xff]
        %v705 = vpack.c.bf16 %v704, %v704
        %v706 = vld [vmem:[%s2] sm:$0xf]
        %v707 = vld [vmem:[%s2 + $0x4] sm:$0xf]
        %v708 = vld [vmem:[%s2 + $0x8] sm:$0xf]
        %v709 = vld [vmem:[%s2 + $0xc] sm:$0xf]
        %v710 = vld [vmem:[#allocation3] sm:$0x1]
        %v712 = vlaneseq
        %v713 = vshrl.u32 %v712, 7
        %v714 = vsub.s32 0, %v713
        %v715 = vrot.slane %v710, %v714
        %v721 = vunpack.c.l.b16 %v706
        %v722 = vunpack.c.l.b16 %v707
        %v723 = vunpack.c.l.b16 %v708
        %v724 = vunpack.c.l.b16 %v709
        %v725 = vpack.c.b16 %v722, %v721
        %v726 = vpack.c.b16 %v724, %v723
        %vm729 = vcmask 261120
        %v731 = vsel %vm729, %v705, 0
        %733 = vmatprep.subr.bf16.mxu0 0
        %734 = vmatpush1.bf16.msra.mxu0 %v725
        %735 = vmatprep.subr.bf16.mxu0 0
        %736 = vmatpush1.bf16.msra.mxu0 %v726
        %737 = vmatprep.subr.bf16.mxu0 0
        %738 = vmatpush1.bf16.msra.mxu0 0
        %739 = vmatprep.subr.bf16.mxu0 0
        %740 = vmatpush1.bf16.msra.mxu0 0
        %741 = vmatprep.subr.bf16.mxu0 0
        %742 = vmatpush1.bf16.msra.mxu0 0
        %743 = vmatprep.subr.bf16.mxu0 0
        %744 = vmatpush1.bf16.msra.mxu0 0
        %745 = vmatprep.subr.bf16.mxu0 0
        %746 = vmatpush1.bf16.msra.mxu0 0
        %747 = vmatprep.subr.bf16.mxu0 0
        %748 = vmatpush1.bf16.msra.mxu0 0
        %749 = vmatprep.subr.bf16.mxu0 0
        %750 = vmatpush1.bf16.msra.mxu0 0
        %751 = vmatprep.subr.bf16.mxu0 0
        %752 = vmatpush1.bf16.msra.mxu0 0
        %753 = vmatprep.subr.bf16.mxu0 0
        %754 = vmatpush1.bf16.msra.mxu0 0
        %755 = vmatprep.subr.bf16.mxu0 0
        %756 = vmatpush1.bf16.msra.mxu0 0
        %757 = vmatprep.subr.bf16.mxu0 0
        %758 = vmatpush1.bf16.msra.mxu0 0
        %759 = vmatprep.subr.bf16.mxu0 0
        %760 = vmatpush1.bf16.msra.mxu0 0
        %761 = vmatprep.subr.bf16.mxu0 0
        %762 = vmatpush1.bf16.msra.mxu0 0
        %763 = vmatprep.subr.bf16.mxu0 0
        %764 = vmatpush1.bf16.msra.mxu0 0
        %765 = vmatprep.mubr.bf16.mxu0 0
        %766 = vmatmul.mubr.bf16.gmra.mrb[0].mxu0 %v731
        %v767 = vpop.f32.mrb[0].mxu0
        %v768 = vadd.f32 %v715, %v767
        %v769 = vpop.f32.mrb[0].mxu0
        %v770 = vpop.f32.mrb[0].mxu0
        %v771 = vpop.f32.mrb[0].mxu0
        %772 = vdwg.mxu0
        %v773 = vpack.c.bf16 %v768, %v768
        %v774 = vld [vmem:[%s4] sm:$0xf]
        %v775 = vld [vmem:[%s4 + $0x4] sm:$0xf]
        %v776 = vld [vmem:[%s4 + $0x8] sm:$0xf]
        %v777 = vld [vmem:[%s4 + $0xc] sm:$0xf]
        %v778 = vld [vmem:[#allocation6] sm:$0x1]
        %v780 = vlaneseq
        %v781 = vshrl.u32 %v780, 7
        %v782 = vsub.s32 0, %v781
        %v783 = vrot.slane %v778, %v782
        %v789 = vunpack.c.l.b16 %v774
        %v790 = vunpack.c.l.b16 %v775
        %v791 = vunpack.c.l.b16 %v776
        %v792 = vunpack.c.l.b16 %v777
        %v793 = vpack.c.b16 %v790, %v789
        %v794 = vpack.c.b16 %v792, %v791
        %797 = vmatprep.subr.bf16.mxu0 0
        %798 = vmatpush1.bf16.msra.mxu0 %v793
        %799 = vmatprep.subr.bf16.mxu0 0
        %800 = vmatpush1.bf16.msra.mxu0 %v794
        %801 = vmatprep.subr.bf16.mxu0 0
        %802 = vmatpush1.bf16.msra.mxu0 0
        %803 = vmatprep.subr.bf16.mxu0 0
        %804 = vmatpush1.bf16.msra.mxu0 0
        %805 = vmatprep.subr.bf16.mxu0 0
        %806 = vmatpush1.bf16.msra.mxu0 0
        %807 = vmatprep.subr.bf16.mxu0 0
        %808 = vmatpush1.bf16.msra.mxu0 0
        %809 = vmatprep.subr.bf16.mxu0 0
        %810 = vmatpush1.bf16.msra.mxu0 0
        %811 = vmatprep.subr.bf16.mxu0 0
        %812 = vmatpush1.bf16.msra.mxu0 0
        %813 = vmatprep.subr.bf16.mxu0 0
        %814 = vmatpush1.bf16.msra.mxu0 0
        %815 = vmatprep.subr.bf16.mxu0 0
        %816 = vmatpush1.bf16.msra.mxu0 0
        %817 = vmatprep.subr.bf16.mxu0 0
        %818 = vmatpush1.bf16.msra.mxu0 0
        %819 = vmatprep.subr.bf16.mxu0 0
        %820 = vmatpush1.bf16.msra.mxu0 0
        %821 = vmatprep.subr.bf16.mxu0 0
        %822 = vmatpush1.bf16.msra.mxu0 0
        %823 = vmatprep.subr.bf16.mxu0 0
        %824 = vmatpush1.bf16.msra.mxu0 0
        %825 = vmatprep.subr.bf16.mxu0 0
        %826 = vmatpush1.bf16.msra.mxu0 0
        %827 = vmatprep.subr.bf16.mxu0 0
        %828 = vmatpush1.bf16.msra.mxu0 0
        %829 = vmatprep.mubr.bf16.mxu0 0
        %830 = vmatmul.mubr.bf16.gmra.mrb[0].mxu0 %v731
        %v831 = vpop.f32.mrb[0].mxu0
        %v832 = vadd.f32 %v783, %v831
        %v833 = vpop.f32.mrb[0].mxu0
        %v834 = vpop.f32.mrb[0].mxu0
        %v835 = vpop.f32.mrb[0].mxu0
        %836 = vdwg.mxu0
        %v837 = vpack.c.bf16 %v832, %v832
        %v838 = vld [vmem:[#allocation8] sm:$0xf]
        %v839 = vld [vmem:[#allocation8 + $0x4] sm:$0xf]
        %v840 = vld [vmem:[#allocation8 + $0x8] sm:$0xf]
        %v841 = vld [vmem:[#allocation8 + $0xc] sm:$0xf]
        %v842 = vld [vmem:[#allocation9] sm:$0x1]
        %v844 = vlaneseq
        %v845 = vshrl.u32 %v844, 7
        %v846 = vsub.s32 0, %v845
        %v847 = vrot.slane %v842, %v846
        %v853 = vunpack.c.l.b16 %v838
        %v854 = vunpack.c.l.b16 %v839
        %v855 = vunpack.c.l.b16 %v840
        %v856 = vunpack.c.l.b16 %v841
        %v857 = vpack.c.b16 %v854, %v853
        %v858 = vpack.c.b16 %v856, %v855
        %861 = vmatprep.subr.bf16.mxu0 0
        %862 = vmatpush1.bf16.msra.mxu0 %v857
        %863 = vmatprep.subr.bf16.mxu0 0
        %864 = vmatpush1.bf16.msra.mxu0 %v858
        %865 = vmatprep.subr.bf16.mxu0 0
        %866 = vmatpush1.bf16.msra.mxu0 0
        %867 = vmatprep.subr.bf16.mxu0 0
        %868 = vmatpush1.bf16.msra.mxu0 0
        %869 = vmatprep.subr.bf16.mxu0 0
        %870 = vmatpush1.bf16.msra.mxu0 0
        %871 = vmatprep.subr.bf16.mxu0 0
        %872 = vmatpush1.bf16.msra.mxu0 0
        %873 = vmatprep.subr.bf16.mxu0 0
        %874 = vmatpush1.bf16.msra.mxu0 0
        %875 = vmatprep.subr.bf16.mxu0 0
        %876 = vmatpush1.bf16.msra.mxu0 0
        %877 = vmatprep.subr.bf16.mxu0 0
        %878 = vmatpush1.bf16.msra.mxu0 0
        %879 = vmatprep.subr.bf16.mxu0 0
        %880 = vmatpush1.bf16.msra.mxu0 0
        %881 = vmatprep.subr.bf16.mxu0 0
        %882 = vmatpush1.bf16.msra.mxu0 0
        %883 = vmatprep.subr.bf16.mxu0 0
        %884 = vmatpush1.bf16.msra.mxu0 0
        %885 = vmatprep.subr.bf16.mxu0 0
        %886 = vmatpush1.bf16.msra.mxu0 0
        %887 = vmatprep.subr.bf16.mxu0 0
        %888 = vmatpush1.bf16.msra.mxu0 0
        %889 = vmatprep.subr.bf16.mxu0 0
        %890 = vmatpush1.bf16.msra.mxu0 0
        %891 = vmatprep.subr.bf16.mxu0 0
        %892 = vmatpush1.bf16.msra.mxu0 0
        %893 = vmatprep.mubr.bf16.mxu0 0
        %894 = vmatmul.mubr.bf16.gmra.mrb[0].mxu0 %v731
        %v895 = vpop.f32.mrb[0].mxu0
        %v896 = vadd.f32 %v847, %v895
        %v897 = vpop.f32.mrb[0].mxu0
        %v898 = vpop.f32.mrb[0].mxu0
        %v899 = vpop.f32.mrb[0].mxu0
        %900 = vdwg.mxu0
        %v901 = vpack.c.bf16 %v896, %v896
        %903 = vrot.lane.b32.xlu0 %v773, 120
        %v904 = vpop.permute.xlu0 %903
        %905 = vrot.lane.b32.xlu0 %v773, 112
        %v906 = vpop.permute.xlu0 %905
        %907 = vrot.lane.b32.xlu0 %v773, 104
        %v908 = vpop.permute.xlu0 %907
        %910 = vrot.lane.b32.xlu0 %v837, 120
        %v911 = vpop.permute.xlu0 %910
        %912 = vrot.lane.b32.xlu0 %v837, 112
        %v913 = vpop.permute.xlu0 %912
        %914 = vrot.lane.b32.xlu0 %v837, 104
        %v915 = vpop.permute.xlu0 %914
        %917 = vrot.lane.b32.xlu0 %v901, 120
        %v918 = vpop.permute.xlu0 %917
        %919 = vrot.lane.b32.xlu0 %v901, 112
        %v920 = vpop.permute.xlu0 %919
        %921 = vrot.lane.b32.xlu0 %v901, 104
        %v922 = vpop.permute.xlu0 %921
        %vm923 = vcmask 64512
        %v925 = vsel %vm923, %v773, 0
        %v928 = vsel %vm923, %v837, 0
        %930 = vmatprep.subr.bf16.mxu0 0
        %931 = vmatpush1.bf16.xpose.msra.mxu0 %v928
        %932 = vmatprep.subr.bf16.mxu0 0
        %933 = vmatpush1.bf16.xpose.msra.mxu0 0
        %934 = vmatprep.subr.bf16.mxu0 0
        %935 = vmatpush1.bf16.xpose.msra.mxu0 0
        %936 = vmatprep.subr.bf16.mxu0 0
        %937 = vmatpush1.bf16.xpose.msra.mxu0 0
        %938 = vmatprep.subr.bf16.mxu0 0
        %939 = vmatpush1.bf16.xpose.msra.mxu0 0
        %940 = vmatprep.subr.bf16.mxu0 0
        %941 = vmatpush1.bf16.xpose.msra.mxu0 0
        %942 = vmatprep.subr.bf16.mxu0 0
        %943 = vmatpush1.bf16.xpose.msra.mxu0 0
        %944 = vmatprep.subr.bf16.mxu0 0
        %945 = vmatpush1.bf16.xpose.msra.mxu0 0
        %946 = vmatprep.subr.bf16.mxu0 0
        %947 = vmatpush1.bf16.xpose.msra.mxu0 0
        %948 = vmatprep.subr.bf16.mxu0 0
        %949 = vmatpush1.bf16.xpose.msra.mxu0 0
        %950 = vmatprep.subr.bf16.mxu0 0
        %951 = vmatpush1.bf16.xpose.msra.mxu0 0
        %952 = vmatprep.subr.bf16.mxu0 0
        %953 = vmatpush1.bf16.xpose.msra.mxu0 0
        %954 = vmatprep.subr.bf16.mxu0 0
        %955 = vmatpush1.bf16.xpose.msra.mxu0 0
        %956 = vmatprep.subr.bf16.mxu0 0
        %957 = vmatpush1.bf16.xpose.msra.mxu0 0
        %958 = vmatprep.subr.bf16.mxu0 0
        %959 = vmatpush1.bf16.xpose.msra.mxu0 0
        %960 = vmatprep.subr.bf16.mxu0 0
        %961 = vmatpush1.bf16.xpose.msra.mxu0 0
        %962 = vmatprep.mubr.bf16.mxu0 0
        %963 = vmatmul.mubr.bf16.gmra.mrb[0].mxu0 %v925
        %v964 = vpop.f32.mrb[0].mxu0
        %v965 = vadd.f32 0.0, %v964
        %v966 = vpop.f32.mrb[0].mxu0
        %v967 = vpop.f32.mrb[0].mxu0
        %v968 = vpop.f32.mrb[0].mxu0
        %969 = vdwg.mxu0
        %v971 = vsel %vm923, %v904, 0
        %v974 = vsel %vm923, %v911, 0
        %976 = vmatprep.subr.bf16.mxu0 0
        %977 = vmatpush1.bf16.xpose.msra.mxu0 %v974
        %978 = vmatprep.subr.bf16.mxu0 0
        %979 = vmatpush1.bf16.xpose.msra.mxu0 0
        %980 = vmatprep.subr.bf16.mxu0 0
        %981 = vmatpush1.bf16.xpose.msra.mxu0 0
        %982 = vmatprep.subr.bf16.mxu0 0
        %983 = vmatpush1.bf16.xpose.msra.mxu0 0
        %984 = vmatprep.subr.bf16.mxu0 0
        %985 = vmatpush1.bf16.xpose.msra.mxu0 0
        %986 = vmatprep.subr.bf16.mxu0 0
        %987 = vmatpush1.bf16.xpose.msra.mxu0 0
        %988 = vmatprep.subr.bf16.mxu0 0
        %989 = vmatpush1.bf16.xpose.msra.mxu0 0
        %990 = vmatprep.subr.bf16.mxu0 0
        %991 = vmatpush1.bf16.xpose.msra.mxu0 0
        %992 = vmatprep.subr.bf16.mxu0 0
        %993 = vmatpush1.bf16.xpose.msra.mxu0 0
        %994 = vmatprep.subr.bf16.mxu0 0
        %995 = vmatpush1.bf16.xpose.msra.mxu0 0
        %996 = vmatprep.subr.bf16.mxu0 0
        %997 = vmatpush1.bf16.xpose.msra.mxu0 0
        %998 = vmatprep.subr.bf16.mxu0 0
        %999 = vmatpush1.bf16.xpose.msra.mxu0 0
        %1000 = vmatprep.subr.bf16.mxu0 0
        %1001 = vmatpush1.bf16.xpose.msra.mxu0 0
        %1002 = vmatprep.subr.bf16.mxu0 0
        %1003 = vmatpush1.bf16.xpose.msra.mxu0 0
        %1004 = vmatprep.subr.bf16.mxu0 0
        %1005 = vmatpush1.bf16.xpose.msra.mxu0 0
        %1006 = vmatprep.subr.bf16.mxu0 0
        %1007 = vmatpush1.bf16.xpose.msra.mxu0 0
        %1008 = vmatprep.mubr.bf16.mxu0 0
        %1009 = vmatmul.mubr.bf16.gmra.mrb[0].mxu0 %v971
        %v1010 = vpop.f32.mrb[0].mxu0
        %v1011 = vadd.f32 0.0, %v1010
        %v1012 = vpop.f32.mrb[0].mxu0
        %v1013 = vpop.f32.mrb[0].mxu0
        %v1014 = vpop.f32.mrb[0].mxu0
        %1015 = vdwg.mxu0
        %v1017 = vsel %vm923, %v906, 0
        %v1020 = vsel %vm923, %v913, 0
        %1022 = vmatprep.subr.bf16.mxu0 0
        %1023 = vmatpush1.bf16.xpose.msra.mxu0 %v1020
        %1024 = vmatprep.subr.bf16.mxu0 0
        %1025 = vmatpush1.bf16.xpose.msra.mxu0 0
        %1026 = vmatprep.subr.bf16.mxu0 0
        %1027 = vmatpush1.bf16.xpose.msra.mxu0 0
        %1028 = vmatprep.subr.bf16.mxu0 0
        %1029 = vmatpush1.bf16.xpose.msra.mxu0 0
        %1030 = vmatprep.subr.bf16.mxu0 0
        %1031 = vmatpush1.bf16.xpose.msra.mxu0 0
        %1032 = vmatprep.subr.bf16.mxu0 0
        %1033 = vmatpush1.bf16.xpose.msra.mxu0 0
        %1034 = vmatprep.subr.bf16.mxu0 0
        %1035 = vmatpush1.bf16.xpose.msra.mxu0 0
        %1036 = vmatprep.subr.bf16.mxu0 0
        %1037 = vmatpush1.bf16.xpose.msra.mxu0 0
        %1038 = vmatprep.subr.bf16.mxu0 0
        %1039 = vmatpush1.bf16.xpose.msra.mxu0 0
        %1040 = vmatprep.subr.bf16.mxu0 0
        %1041 = vmatpush1.bf16.xpose.msra.mxu0 0
        %1042 = vmatprep.subr.bf16.mxu0 0
        %1043 = vmatpush1.bf16.xpose.msra.mxu0 0
        %1044 = vmatprep.subr.bf16.mxu0 0
        %1045 = vmatpush1.bf16.xpose.msra.mxu0 0
        %1046 = vmatprep.subr.bf16.mxu0 0
        %1047 = vmatpush1.bf16.xpose.msra.mxu0 0
        %1048 = vmatprep.subr.bf16.mxu0 0
        %1049 = vmatpush1.bf16.xpose.msra.mxu0 0
        %1050 = vmatprep.subr.bf16.mxu0 0
        %1051 = vmatpush1.bf16.xpose.msra.mxu0 0
        %1052 = vmatprep.subr.bf16.mxu0 0
        %1053 = vmatpush1.bf16.xpose.msra.mxu0 0
        %1054 = vmatprep.mubr.bf16.mxu0 0
        %1055 = vmatmul.mubr.bf16.gmra.mrb[0].mxu0 %v1017
        %v1056 = vpop.f32.mrb[0].mxu0
        %v1057 = vadd.f32 0.0, %v1056
        %v1058 = vpop.f32.mrb[0].mxu0
        %v1059 = vpop.f32.mrb[0].mxu0
        %v1060 = vpop.f32.mrb[0].mxu0
        %1061 = vdwg.mxu0
        %v1063 = vsel %vm923, %v908, 0
        %v1066 = vsel %vm923, %v915, 0
        %1068 = vmatprep.subr.bf16.mxu0 0
        %1069 = vmatpush1.bf16.xpose.msra.mxu0 %v1066
        %1070 = vmatprep.subr.bf16.mxu0 0
        %1071 = vmatpush1.bf16.xpose.msra.mxu0 0
        %1072 = vmatprep.subr.bf16.mxu0 0
        %1073 = vmatpush1.bf16.xpose.msra.mxu0 0
        %1074 = vmatprep.subr.bf16.mxu0 0
        %1075 = vmatpush1.bf16.xpose.msra.mxu0 0
        %1076 = vmatprep.subr.bf16.mxu0 0
        %1077 = vmatpush1.bf16.xpose.msra.mxu0 0
        %1078 = vmatprep.subr.bf16.mxu0 0
        %1079 = vmatpush1.bf16.xpose.msra.mxu0 0
        %1080 = vmatprep.subr.bf16.mxu0 0
        %1081 = vmatpush1.bf16.xpose.msra.mxu0 0
        %1082 = vmatprep.subr.bf16.mxu0 0
        %1083 = vmatpush1.bf16.xpose.msra.mxu0 0
        %1084 = vmatprep.subr.bf16.mxu0 0
        %1085 = vmatpush1.bf16.xpose.msra.mxu0 0
        %1086 = vmatprep.subr.bf16.mxu0 0
        %1087 = vmatpush1.bf16.xpose.msra.mxu0 0
        %1088 = vmatprep.subr.bf16.mxu0 0
        %1089 = vmatpush1.bf16.xpose.msra.mxu0 0
        %1090 = vmatprep.subr.bf16.mxu0 0
        %1091 = vmatpush1.bf16.xpose.msra.mxu0 0
        %1092 = vmatprep.subr.bf16.mxu0 0
        %1093 = vmatpush1.bf16.xpose.msra.mxu0 0
        %1094 = vmatprep.subr.bf16.mxu0 0
        %1095 = vmatpush1.bf16.xpose.msra.mxu0 0
        %1096 = vmatprep.subr.bf16.mxu0 0
        %1097 = vmatpush1.bf16.xpose.msra.mxu0 0
        %1098 = vmatprep.subr.bf16.mxu0 0
        %1099 = vmatpush1.bf16.xpose.msra.mxu0 0
        %1100 = vmatprep.mubr.bf16.mxu0 0
        %1101 = vmatmul.mubr.bf16.gmra.mrb[0].mxu0 %v1063
        %v1102 = vpop.f32.mrb[0].mxu0
        %v1103 = vadd.f32 0.0, %v1102
        %v1104 = vpop.f32.mrb[0].mxu0
        %v1105 = vpop.f32.mrb[0].mxu0
        %v1106 = vpop.f32.mrb[0].mxu0
        %1107 = vdwg.mxu0
        %v1108 = vld [vmem:[%s702] sm:$0x1]
        %v1110 = vlaneseq
        %v1111 = vshrl.u32 %v1110, 7
        %v1112 = vsub.s32 0, %v1111
        %v1113 = vrot.slane %v1108, %v1112
        %v1115 = vmin.f32 %v965, %v1113
        %v1116 = vmin.f32 %v1011, %v1113
        %v1117 = vmin.f32 %v1057, %v1113
        %v1118 = vmin.f32 %v1103, %v1113
        %v1119 = vsel %vm923, %v1115, -inf
        %1120 = vmax.xlane.f32.xlu0 %v1119
        %v1121 = vpop.xlane.xlu0 %1120
        %v1122 = vsel %vm923, %v1116, -inf
        %1123 = vmax.xlane.f32.xlu0 %v1122
        %v1124 = vpop.xlane.xlu0 %1123
        %v1125 = vsel %vm923, %v1117, -inf
        %1126 = vmax.xlane.f32.xlu0 %v1125
        %v1127 = vpop.xlane.xlu0 %1126
        %v1128 = vsel %vm923, %v1118, -inf
        %1129 = vmax.xlane.f32.xlu0 %v1128
        %v1130 = vpop.xlane.xlu0 %1129
        %v1131 = vsub.f32 %v1115, %v1121
        %v1132 = vsub.f32 %v1116, %v1124
        %v1133 = vsub.f32 %v1117, %v1127
        %v1134 = vsub.f32 %v1118, %v1130
        %v1135 = vmul.f32 %v1131, 1.442695
        %v1136 = vpow.pop %v1135
        %v1137 = vmul.f32 %v1132, 1.442695
        %v1138 = vpow.pop %v1137
        %v1139 = vmul.f32 %v1133, 1.442695
        %v1140 = vpow.pop %v1139
        %v1141 = vmul.f32 %v1134, 1.442695
        %v1142 = vpow.pop %v1141
        %v1143 = vsel %vm923, %v1136, 0.0
        %1144 = vadd.xlane.f32.xlu0 %v1143
        %v1145 = vpop.xlane.xlu0 %1144
        %v1146 = vsel %vm923, %v1138, 0.0
        %1147 = vadd.xlane.f32.xlu0 %v1146
        %v1148 = vpop.xlane.xlu0 %1147
        %v1149 = vsel %vm923, %v1140, 0.0
        %1150 = vadd.xlane.f32.xlu0 %v1149
        %v1151 = vpop.xlane.xlu0 %1150
        %v1152 = vsel %vm923, %v1142, 0.0
        %1153 = vadd.xlane.f32.xlu0 %v1152
        %v1154 = vpop.xlane.xlu0 %1153
        %v1155 = vrcp.pop %v1145
        %v1156 = vrcp.pop %v1148
        %v1157 = vrcp.pop %v1151
        %v1158 = vrcp.pop %v1154
        %v1159 = vmul.f32 %v1136, %v1155
        %v1160 = vmul.f32 %v1138, %v1156
        %v1161 = vmul.f32 %v1140, %v1157
        %v1162 = vmul.f32 %v1142, %v1158
        %1163 = vst.msk [vmem:[%s695] sm:$0xff] %vm923, %v1159
        %1164 = vst.msk [vmem:[%s695 + $0x8] sm:$0xff] %vm923, %v1160
        %1165 = vst.msk [vmem:[%s695 + $0x10] sm:$0xff] %vm923, %v1161
        %1166 = vst.msk [vmem:[%s695 + $0x18] sm:$0xff] %vm923, %v1162
        %v1167 = vpack.c.bf16 %v1159, %v1159
        %v1168 = vpack.c.bf16 %v1160, %v1160
        %v1169 = vpack.c.bf16 %v1161, %v1161
        %v1170 = vpack.c.bf16 %v1162, %v1162
        %v1172 = vsel %vm923, %v1167, 0
        %vm1174 = vcmask 1043456
        %v1176 = vsel %vm1174, %v901, 0
        %1178 = vmatprep.subr.bf16.mxu0 0
        %1179 = vmatpush1.bf16.msra.mxu0 %v1176
        %1180 = vmatprep.subr.bf16.mxu0 0
        %1181 = vmatpush1.bf16.msra.mxu0 0
        %1182 = vmatprep.subr.bf16.mxu0 0
        %1183 = vmatpush1.bf16.msra.mxu0 0
        %1184 = vmatprep.subr.bf16.mxu0 0
        %1185 = vmatpush1.bf16.msra.mxu0 0
        %1186 = vmatprep.subr.bf16.mxu0 0
        %1187 = vmatpush1.bf16.msra.mxu0 0
        %1188 = vmatprep.subr.bf16.mxu0 0
        %1189 = vmatpush1.bf16.msra.mxu0 0
        %1190 = vmatprep.subr.bf16.mxu0 0
        %1191 = vmatpush1.bf16.msra.mxu0 0
        %1192 = vmatprep.subr.bf16.mxu0 0
        %1193 = vmatpush1.bf16.msra.mxu0 0
        %1194 = vmatprep.subr.bf16.mxu0 0
        %1195 = vmatpush1.bf16.msra.mxu0 0
        %1196 = vmatprep.subr.bf16.mxu0 0
        %1197 = vmatpush1.bf16.msra.mxu0 0
        %1198 = vmatprep.subr.bf16.mxu0 0
        %1199 = vmatpush1.bf16.msra.mxu0 0
        %1200 = vmatprep.subr.bf16.mxu0 0
        %1201 = vmatpush1.bf16.msra.mxu0 0
        %1202 = vmatprep.subr.bf16.mxu0 0
        %1203 = vmatpush1.bf16.msra.mxu0 0
        %1204 = vmatprep.subr.bf16.mxu0 0
        %1205 = vmatpush1.bf16.msra.mxu0 0
        %1206 = vmatprep.subr.bf16.mxu0 0
        %1207 = vmatpush1.bf16.msra.mxu0 0
        %1208 = vmatprep.subr.bf16.mxu0 0
        %1209 = vmatpush1.bf16.msra.mxu0 0
        %1210 = vmatprep.mubr.bf16.mxu0 0
        %1211 = vmatmul.mubr.bf16.gmra.mrb[0].mxu0 %v1172
        %v1212 = vpop.f32.mrb[0].mxu0
        %v1213 = vadd.f32 0.0, %v1212
        %v1214 = vpop.f32.mrb[0].mxu0
        %v1215 = vpop.f32.mrb[0].mxu0
        %v1216 = vpop.f32.mrb[0].mxu0
        %1217 = vdwg.mxu0
        %v1219 = vsel %vm923, %v1168, 0
        %v1222 = vsel %vm1174, %v918, 0
        %1224 = vmatprep.subr.bf16.mxu0 0
        %1225 = vmatpush1.bf16.msra.mxu0 %v1222
        %1226 = vmatprep.subr.bf16.mxu0 0
        %1227 = vmatpush1.bf16.msra.mxu0 0
        %1228 = vmatprep.subr.bf16.mxu0 0
        %1229 = vmatpush1.bf16.msra.mxu0 0
        %1230 = vmatprep.subr.bf16.mxu0 0
        %1231 = vmatpush1.bf16.msra.mxu0 0
        %1232 = vmatprep.subr.bf16.mxu0 0
        %1233 = vmatpush1.bf16.msra.mxu0 0
        %1234 = vmatprep.subr.bf16.mxu0 0
        %1235 = vmatpush1.bf16.msra.mxu0 0
        %1236 = vmatprep.subr.bf16.mxu0 0
        %1237 = vmatpush1.bf16.msra.mxu0 0
        %1238 = vmatprep.subr.bf16.mxu0 0
        %1239 = vmatpush1.bf16.msra.mxu0 0
        %1240 = vmatprep.subr.bf16.mxu0 0
        %1241 = vmatpush1.bf16.msra.mxu0 0
        %1242 = vmatprep.subr.bf16.mxu0 0
        %1243 = vmatpush1.bf16.msra.mxu0 0
        %1244 = vmatprep.subr.bf16.mxu0 0
        %1245 = vmatpush1.bf16.msra.mxu0 0
        %1246 = vmatprep.subr.bf16.mxu0 0
        %1247 = vmatpush1.bf16.msra.mxu0 0
        %1248 = vmatprep.subr.bf16.mxu0 0
        %1249 = vmatpush1.bf16.msra.mxu0 0
        %1250 = vmatprep.subr.bf16.mxu0 0
        %1251 = vmatpush1.bf16.msra.mxu0 0
        %1252 = vmatprep.subr.bf16.mxu0 0
        %1253 = vmatpush1.bf16.msra.mxu0 0
        %1254 = vmatprep.subr.bf16.mxu0 0
        %1255 = vmatpush1.bf16.msra.mxu0 0
        %1256 = vmatprep.mubr.bf16.mxu0 0
        %1257 = vmatmul.mubr.bf16.gmra.mrb[0].mxu0 %v1219
        %v1258 = vpop.f32.mrb[0].mxu0
        %v1259 = vadd.f32 0.0, %v1258
        %v1260 = vpop.f32.mrb[0].mxu0
        %v1261 = vpop.f32.mrb[0].mxu0
        %v1262 = vpop.f32.mrb[0].mxu0
        %1263 = vdwg.mxu0
        %v1265 = vsel %vm923, %v1169, 0
        %v1268 = vsel %vm1174, %v920, 0
        %1270 = vmatprep.subr.bf16.mxu0 0
        %1271 = vmatpush1.bf16.msra.mxu0 %v1268
        %1272 = vmatprep.subr.bf16.mxu0 0
        %1273 = vmatpush1.bf16.msra.mxu0 0
        %1274 = vmatprep.subr.bf16.mxu0 0
        %1275 = vmatpush1.bf16.msra.mxu0 0
        %1276 = vmatprep.subr.bf16.mxu0 0
        %1277 = vmatpush1.bf16.msra.mxu0 0
        %1278 = vmatprep.subr.bf16.mxu0 0
        %1279 = vmatpush1.bf16.msra.mxu0 0
        %1280 = vmatprep.subr.bf16.mxu0 0
        %1281 = vmatpush1.bf16.msra.mxu0 0
        %1282 = vmatprep.subr.bf16.mxu0 0
        %1283 = vmatpush1.bf16.msra.mxu0 0
        %1284 = vmatprep.subr.bf16.mxu0 0
        %1285 = vmatpush1.bf16.msra.mxu0 0
        %1286 = vmatprep.subr.bf16.mxu0 0
        %1287 = vmatpush1.bf16.msra.mxu0 0
        %1288 = vmatprep.subr.bf16.mxu0 0
        %1289 = vmatpush1.bf16.msra.mxu0 0
        %1290 = vmatprep.subr.bf16.mxu0 0
        %1291 = vmatpush1.bf16.msra.mxu0 0
        %1292 = vmatprep.subr.bf16.mxu0 0
        %1293 = vmatpush1.bf16.msra.mxu0 0
        %1294 = vmatprep.subr.bf16.mxu0 0
        %1295 = vmatpush1.bf16.msra.mxu0 0
        %1296 = vmatprep.subr.bf16.mxu0 0
        %1297 = vmatpush1.bf16.msra.mxu0 0
        %1298 = vmatprep.subr.bf16.mxu0 0
        %1299 = vmatpush1.bf16.msra.mxu0 0
        %1300 = vmatprep.subr.bf16.mxu0 0
        %1301 = vmatpush1.bf16.msra.mxu0 0
        %1302 = vmatprep.mubr.bf16.mxu0 0
        %1303 = vmatmul.mubr.bf16.gmra.mrb[0].mxu0 %v1265
        %v1304 = vpop.f32.mrb[0].mxu0
        %v1305 = vadd.f32 0.0, %v1304
        %v1306 = vpop.f32.mrb[0].mxu0
        %v1307 = vpop.f32.mrb[0].mxu0
        %v1308 = vpop.f32.mrb[0].mxu0
        %1309 = vdwg.mxu0
        %v1311 = vsel %vm923, %v1170, 0
        %v1314 = vsel %vm1174, %v922, 0
        %1316 = vmatprep.subr.bf16.mxu0 0
        %1317 = vmatpush1.bf16.msra.mxu0 %v1314
        %1318 = vmatprep.subr.bf16.mxu0 0
        %1319 = vmatpush1.bf16.msra.mxu0 0
        %1320 = vmatprep.subr.bf16.mxu0 0
        %1321 = vmatpush1.bf16.msra.mxu0 0
        %1322 = vmatprep.subr.bf16.mxu0 0
        %1323 = vmatpush1.bf16.msra.mxu0 0
        %1324 = vmatprep.subr.bf16.mxu0 0
        %1325 = vmatpush1.bf16.msra.mxu0 0
        %1326 = vmatprep.subr.bf16.mxu0 0
        %1327 = vmatpush1.bf16.msra.mxu0 0
        %1328 = vmatprep.subr.bf16.mxu0 0
        %1329 = vmatpush1.bf16.msra.mxu0 0
        %1330 = vmatprep.subr.bf16.mxu0 0
        %1331 = vmatpush1.bf16.msra.mxu0 0
        %1332 = vmatprep.subr.bf16.mxu0 0
        %1333 = vmatpush1.bf16.msra.mxu0 0
        %1334 = vmatprep.subr.bf16.mxu0 0
        %1335 = vmatpush1.bf16.msra.mxu0 0
        %1336 = vmatprep.subr.bf16.mxu0 0
        %1337 = vmatpush1.bf16.msra.mxu0 0
        %1338 = vmatprep.subr.bf16.mxu0 0
        %1339 = vmatpush1.bf16.msra.mxu0 0
        %1340 = vmatprep.subr.bf16.mxu0 0
        %1341 = vmatpush1.bf16.msra.mxu0 0
        %1342 = vmatprep.subr.bf16.mxu0 0
        %1343 = vmatpush1.bf16.msra.mxu0 0
        %1344 = vmatprep.subr.bf16.mxu0 0
        %1345 = vmatpush1.bf16.msra.mxu0 0
        %1346 = vmatprep.subr.bf16.mxu0 0
        %1347 = vmatpush1.bf16.msra.mxu0 0
        %1348 = vmatprep.mubr.bf16.mxu0 0
        %1349 = vmatmul.mubr.bf16.gmra.mrb[0].mxu0 %v1311
        %v1350 = vpop.f32.mrb[0].mxu0
        %v1351 = vadd.f32 0.0, %v1350
        %v1352 = vpop.f32.mrb[0].mxu0
        %v1353 = vpop.f32.mrb[0].mxu0
        %v1354 = vpop.f32.mrb[0].mxu0
        %1355 = vdwg.mxu0
        %v1356 = vpack.c.bf16 %v1213, %v1213
        %vm1357 = vcmask 60416
        %1358 = vst.msk [vmem:[#allocation2] sm:$0xf] %vm1357, %v1356
        %v1359 = vpack.c.bf16 %v1259, %v1259
        %v1361 = vunpack.c.l.b16 %v1359
        %v1362 = vpack.c.b16 %v1361, %v1361
        %1363 = vrot.lane.b32.xlu0 %v1362, 8
        %v1364 = vpop.permute.xlu0 %1363
        %vm1366 = vcmask 126016
        %1367 = vst.msk [vmem:[#allocation2] sm:$0xf] %vm1366, %v1364
        %v1368 = vpack.c.bf16 %v1305, %v1305
        %v1370 = vunpack.c.l.b16 %v1368
        %v1371 = vpack.c.b16 %v1370, %v1370
        %1372 = vrot.lane.b32.xlu0 %v1371, 16
        %v1373 = vpop.permute.xlu0 %1372
        %vm1375 = vcmask 191616
        %1376 = vst.msk [vmem:[#allocation2] sm:$0xf] %vm1375, %v1373
        %v1377 = vpack.c.bf16 %v1351, %v1351
        %v1379 = vunpack.c.l.b16 %v1377
        %v1380 = vpack.c.b16 %v1379, %v1379
        %1381 = vrot.lane.b32.xlu0 %v1380, 24
        %v1382 = vpop.permute.xlu0 %1381
        %vm1384 = vcmask 257216
        %1385 = vst.msk [vmem:[#allocation2] sm:$0xf] %vm1384, %v1382
        %v1386 = vld [vmem:[#allocation2] sm:$0xf]
        %v1387 = vld [vmem:[#allocation11] sm:$0xf]
        %v1388 = vld [vmem:[#allocation11 + $0x4] sm:$0xf]
        %v1389 = vld [vmem:[#allocation11 + $0x8] sm:$0xf]
        %v1390 = vld [vmem:[#allocation11 + $0xc] sm:$0xf]
        %v1391 = vld [vmem:[#allocation12] sm:$0x1]
        %v1393 = vlaneseq
        %v1394 = vshrl.u32 %v1393, 7
        %v1395 = vsub.s32 0, %v1394
        %v1396 = vrot.slane %v1391, %v1395
        %v1402 = vunpack.c.l.b16 %v1387
        %v1403 = vunpack.c.l.b16 %v1388
        %v1404 = vunpack.c.l.b16 %v1389
        %v1405 = vunpack.c.l.b16 %v1390
        %v1406 = vpack.c.b16 %v1403, %v1402
        %v1407 = vpack.c.b16 %v1405, %v1404
        %v1411 = vsel %vm729, %v1386, 0
        %1413 = vmatprep.subr.bf16.mxu0 0
        %1414 = vmatpush1.bf16.msra.mxu0 %v1406
        %1415 = vmatprep.subr.bf16.mxu0 0
        %1416 = vmatpush1.bf16.msra.mxu0 %v1407
        %1417 = vmatprep.subr.bf16.mxu0 0
        %1418 = vmatpush1.bf16.msra.mxu0 0
        %1419 = vmatprep.subr.bf16.mxu0 0
        %1420 = vmatpush1.bf16.msra.mxu0 0
        %1421 = vmatprep.subr.bf16.mxu0 0
        %1422 = vmatpush1.bf16.msra.mxu0 0
        %1423 = vmatprep.subr.bf16.mxu0 0
        %1424 = vmatpush1.bf16.msra.mxu0 0
        %1425 = vmatprep.subr.bf16.mxu0 0
        %1426 = vmatpush1.bf16.msra.mxu0 0
        %1427 = vmatprep.subr.bf16.mxu0 0
        %1428 = vmatpush1.bf16.msra.mxu0 0
        %1429 = vmatprep.subr.bf16.mxu0 0
        %1430 = vmatpush1.bf16.msra.mxu0 0
        %1431 = vmatprep.subr.bf16.mxu0 0
        %1432 = vmatpush1.bf16.msra.mxu0 0
        %1433 = vmatprep.subr.bf16.mxu0 0
        %1434 = vmatpush1.bf16.msra.mxu0 0
        %1435 = vmatprep.subr.bf16.mxu0 0
        %1436 = vmatpush1.bf16.msra.mxu0 0
        %1437 = vmatprep.subr.bf16.mxu0 0
        %1438 = vmatpush1.bf16.msra.mxu0 0
        %1439 = vmatprep.subr.bf16.mxu0 0
        %1440 = vmatpush1.bf16.msra.mxu0 0
        %1441 = vmatprep.subr.bf16.mxu0 0
        %1442 = vmatpush1.bf16.msra.mxu0 0
        %1443 = vmatprep.subr.bf16.mxu0 0
        %1444 = vmatpush1.bf16.msra.mxu0 0
        %1445 = vmatprep.mubr.bf16.mxu0 0
        %1446 = vmatmul.mubr.bf16.gmra.mrb[0].mxu0 %v1411
        %v1447 = vpop.f32.mrb[0].mxu0
        %v1448 = vadd.f32 %v1396, %v1447
        %v1449 = vpop.f32.mrb[0].mxu0
        %v1450 = vpop.f32.mrb[0].mxu0
        %v1451 = vpop.f32.mrb[0].mxu0
        %1452 = vdwg.mxu0
        %v1453 = vadd.f32 %v1448, %v704
        %v1454 = vsel %vm729, %v1453, 0.0
        %1455 = vadd.xlane.f32.xlu0 %v1454
        %v1456 = vpop.xlane.xlu0 %1455
        %v1457 = vrcp.pop 32.0
        %v1458 = vmul.f32 %v1456, %v1457
        %v1459 = vsub.f32 %v1453, %v1458
        %v1460 = vmul.f32 %v1459, %v1459
        %v1461 = vsel %vm729, %v1460, 0.0
        %1462 = vadd.xlane.f32.xlu0 %v1461
        %v1463 = vpop.xlane.xlu0 %1462
        %v1464 = vmul.f32 %v1463, %v1457
        %v1465 = vadd.f32 %v1464, 1e-12
        %v1466 = vrsqrt.pop %v1465
        %v1467 = vmul.f32 %v1459, %v1466
        %v1468 = vld [vmem:[%s10] sm:$0x1]
        %v1470 = vlaneseq
        %v1471 = vshrl.u32 %v1470, 7
        %v1472 = vsub.s32 0, %v1471
        %v1473 = vrot.slane %v1468, %v1472
        %v1475 = vmul.f32 %v1467, %v1473
        %v1476 = vld [vmem:[%s11] sm:$0x1]
        %v1478 = vlaneseq
        %v1479 = vshrl.u32 %v1478, 7
        %v1480 = vsub.s32 0, %v1479
        %v1481 = vrot.slane %v1476, %v1480
        %v1483 = vadd.f32 %v1475, %v1481
        %v1484 = vpack.c.bf16 %v1483, %v1483
        %v1485 = vld [vmem:[%s12] sm:$0xf]
        %v1486 = vld [vmem:[%s12 + $0x4] sm:$0xf]
        %v1487 = vld [vmem:[%s12 + $0x8] sm:$0xf]
        %v1488 = vld [vmem:[%s12 + $0xc] sm:$0xf]
        %v1489 = vld [vmem:[%s13] sm:$0x1]
        %v1491 = vlaneseq
        %v1492 = vshrl.u32 %v1491, 7
        %v1493 = vsub.s32 0, %v1492
        %v1494 = vrot.slane %v1489, %v1493
        %v1500 = vunpack.c.l.b16 %v1485
        %v1501 = vunpack.c.l.b16 %v1486
        %v1502 = vunpack.c.l.b16 %v1487
        %v1503 = vunpack.c.l.b16 %v1488
        %v1504 = vpack.c.b16 %v1501, %v1500
        %v1505 = vpack.c.b16 %v1503, %v1502
        %v1509 = vsel %vm729, %v1484, 0
        %1511 = vmatprep.subr.bf16.mxu0 0
        %1512 = vmatpush1.bf16.msra.mxu0 %v1504
        %1513 = vmatprep.subr.bf16.mxu0 0
        %1514 = vmatpush1.bf16.msra.mxu0 %v1505
        %1515 = vmatprep.subr.bf16.mxu0 0
        %1516 = vmatpush1.bf16.msra.mxu0 0
        %1517 = vmatprep.subr.bf16.mxu0 0
        %1518 = vmatpush1.bf16.msra.mxu0 0
        %1519 = vmatprep.subr.bf16.mxu0 0
        %1520 = vmatpush1.bf16.msra.mxu0 0
        %1521 = vmatprep.subr.bf16.mxu0 0
        %1522 = vmatpush1.bf16.msra.mxu0 0
        %1523 = vmatprep.subr.bf16.mxu0 0
        %1524 = vmatpush1.bf16.msra.mxu0 0
        %1525 = vmatprep.subr.bf16.mxu0 0
        %1526 = vmatpush1.bf16.msra.mxu0 0
        %1527 = vmatprep.subr.bf16.mxu0 0
        %1528 = vmatpush1.bf16.msra.mxu0 0
        %1529 = vmatprep.subr.bf16.mxu0 0
        %1530 = vmatpush1.bf16.msra.mxu0 0
        %1531 = vmatprep.subr.bf16.mxu0 0
        %1532 = vmatpush1.bf16.msra.mxu0 0
        %1533 = vmatprep.subr.bf16.mxu0 0
        %1534 = vmatpush1.bf16.msra.mxu0 0
        %1535 = vmatprep.subr.bf16.mxu0 0
        %1536 = vmatpush1.bf16.msra.mxu0 0
        %1537 = vmatprep.subr.bf16.mxu0 0
        %1538 = vmatpush1.bf16.msra.mxu0 0
        %1539 = vmatprep.subr.bf16.mxu0 0
        %1540 = vmatpush1.bf16.msra.mxu0 0
        %1541 = vmatprep.subr.bf16.mxu0 0
        %1542 = vmatpush1.bf16.msra.mxu0 0
        %1543 = vmatprep.mubr.bf16.mxu0 0
        %1544 = vmatmul.mubr.bf16.gmra.mrb[0].mxu0 %v1509
        %v1545 = vpop.f32.mrb[0].mxu0
        %v1546 = vadd.f32 %v1494, %v1545
        %v1547 = vpop.f32.mrb[0].mxu0
        %v1548 = vpop.f32.mrb[0].mxu0
        %v1549 = vpop.f32.mrb[0].mxu0
        %1550 = vdwg.mxu0
        %v1551 = vmax.f32 %v1546, 0.0
        %v1552 = vpack.c.bf16 %v1551, %v1551
        %v1553 = vld [vmem:[%s14] sm:$0xf]
        %v1554 = vld [vmem:[%s14 + $0x4] sm:$0xf]
        %v1555 = vld [vmem:[%s14 + $0x8] sm:$0xf]
        %v1556 = vld [vmem:[%s14 + $0xc] sm:$0xf]
        %v1557 = vld [vmem:[%s14 + $0x10] sm:$0xf]
        %v1558 = vld [vmem:[%s14 + $0x14] sm:$0xf]
        %v1559 = vld [vmem:[%s14 + $0x18] sm:$0xf]
        %v1560 = vld [vmem:[%s14 + $0x1c] sm:$0xf]
        %v1561 = vld [vmem:[%s15] sm:$0x1]
        %v1563 = vlaneseq
        %v1564 = vshrl.u32 %v1563, 7
        %v1565 = vsub.s32 0, %v1564
        %v1566 = vrot.slane %v1561, %v1565
        %v1576 = vunpack.c.l.b16 %v1553
        %v1577 = vunpack.c.l.b16 %v1554
        %v1578 = vunpack.c.l.b16 %v1555
        %v1579 = vunpack.c.l.b16 %v1556
        %v1580 = vunpack.c.l.b16 %v1557
        %v1581 = vunpack.c.l.b16 %v1558
        %v1582 = vunpack.c.l.b16 %v1559
        %v1583 = vunpack.c.l.b16 %v1560
        %v1584 = vpack.c.b16 %v1577, %v1576
        %v1585 = vpack.c.b16 %v1579, %v1578
        %v1586 = vpack.c.b16 %v1581, %v1580
        %v1587 = vpack.c.b16 %v1583, %v1582
        %vm1592 = vcmask 523264
        %v1594 = vsel %vm1592, %v1552, 0
        %1596 = vmatprep.subr.bf16.mxu0 0
        %1597 = vmatpush1.bf16.msra.mxu0 %v1584
        %1598 = vmatprep.subr.bf16.mxu0 0
        %1599 = vmatpush1.bf16.msra.mxu0 %v1585
        %1600 = vmatprep.subr.bf16.mxu0 0
        %1601 = vmatpush1.bf16.msra.mxu0 %v1586
        %1602 = vmatprep.subr.bf16.mxu0 0
        %1603 = vmatpush1.bf16.msra.mxu0 %v1587
        %1604 = vmatprep.subr.bf16.mxu0 0
        %1605 = vmatpush1.bf16.msra.mxu0 0
        %1606 = vmatprep.subr.bf16.mxu0 0
        %1607 = vmatpush1.bf16.msra.mxu0 0
        %1608 = vmatprep.subr.bf16.mxu0 0
        %1609 = vmatpush1.bf16.msra.mxu0 0
        %1610 = vmatprep.subr.bf16.mxu0 0
        %1611 = vmatpush1.bf16.msra.mxu0 0
        %1612 = vmatprep.subr.bf16.mxu0 0
        %1613 = vmatpush1.bf16.msra.mxu0 0
        %1614 = vmatprep.subr.bf16.mxu0 0
        %1615 = vmatpush1.bf16.msra.mxu0 0
        %1616 = vmatprep.subr.bf16.mxu0 0
        %1617 = vmatpush1.bf16.msra.mxu0 0
        %1618 = vmatprep.subr.bf16.mxu0 0
        %1619 = vmatpush1.bf16.msra.mxu0 0
        %1620 = vmatprep.subr.bf16.mxu0 0
        %1621 = vmatpush1.bf16.msra.mxu0 0
        %1622 = vmatprep.subr.bf16.mxu0 0
        %1623 = vmatpush1.bf16.msra.mxu0 0
        %1624 = vmatprep.subr.bf16.mxu0 0
        %1625 = vmatpush1.bf16.msra.mxu0 0
        %1626 = vmatprep.subr.bf16.mxu0 0
        %1627 = vmatpush1.bf16.msra.mxu0 0
        %1628 = vmatprep.mubr.bf16.mxu0 0
        %1629 = vmatmul.mubr.bf16.gmra.mrb[0].mxu0 %v1594
        %v1630 = vpop.f32.mrb[0].mxu0
        %v1631 = vadd.f32 %v1566, %v1630
        %v1632 = vpop.f32.mrb[0].mxu0
        %v1633 = vpop.f32.mrb[0].mxu0
        %v1634 = vpop.f32.mrb[0].mxu0
        %1635 = vdwg.mxu0
        %v1636 = vadd.f32 %v1631, %v1483
        %v1637 = vsel %vm729, %v1636, 0.0
        %1638 = vadd.xlane.f32.xlu0 %v1637
        %v1639 = vpop.xlane.xlu0 %1638
        %v1640 = vmul.f32 %v1639, %v1457
        %v1641 = vsub.f32 %v1636, %v1640
        %v1642 = vmul.f32 %v1641, %v1641
        %v1643 = vsel %vm729, %v1642, 0.0
        %1644 = vadd.xlane.f32.xlu0 %v1643
        %v1645 = vpop.xlane.xlu0 %1644
        %v1646 = vmul.f32 %v1645, %v1457
        %v1647 = vadd.f32 %v1646, 1e-12
        %v1648 = vrsqrt.pop %v1647
        %v1649 = vmul.f32 %v1641, %v1648
        %v1650 = vld [vmem:[%s16] sm:$0x1]
        %v1652 = vlaneseq
        %v1653 = vshrl.u32 %v1652, 7
        %v1654 = vsub.s32 0, %v1653
        %v1655 = vrot.slane %v1650, %v1654
        %v1657 = vmul.f32 %v1649, %v1655
        %v1658 = vld [vmem:[%s17] sm:$0x1]
        %v1660 = vlaneseq
        %v1661 = vshrl.u32 %v1660, 7
        %v1662 = vsub.s32 0, %v1661
        %v1663 = vrot.slane %v1658, %v1662
        %v1665 = vadd.f32 %v1657, %v1663
        %1666 = vst.msk [vmem:[%s688] sm:$0xff] %vm729, %v1665
        %s1667 = sand.u32 %s437, 1
        %s1668 = scalar_lea.sflag [#allocation5], %s1667
        %s1669 = sand.u32 %s437, 1
        %s1670 = smul.addr %s1669, 8
        %s1671 = scalar_lea.vmem [#allocation14], %s1670
        %s1672 = sand.u32 %s463, 1
        %s1673 = scalar_lea.sflag [#allocation16], %s1672
        %s1674 = sand.u32 %s463, 1
        %s1675 = smul.addr %s1674, 32
        %s1676 = scalar_lea.vmem [#allocation15], %s1675
        // Predicated region
        $region117: #{tpu_custom_call.1} parent=91 // pred_check
          %p1677 = pneg %p447
        $region118: #{tpu_custom_call.1} parent=91 // pred_check_branch
          %1679 = sbr.rel (%p1677) target = $region120
        $region119: #{tpu_custom_call.1} parent=91 // pred_region
          %s1681 = ssub.s32 128, 128
          %1682 = vsyncadd %s1668, %s1681
          %s1683 = smul.addr %s41, 128
          %s1684 = scalar_lea.hbm %s18, %s1683
          %s1686 = sshll.u32 %s1671, 4
          %s1687 = int_to_ptr.vmem [resolvable:$true] %s1686
          %1689 = dma.vmem_to_hbm [thread:$0]  %s1687, 128, %s1684, %s1668
        $region120: #{tpu_custom_call.1} parent=91 // pred_fallthru
          _
        // Predicated region
        $region121: #{tpu_custom_call.1} parent=91 // pred_check
          %p1690 = pneg %p473
        $region122: #{tpu_custom_call.1} parent=91 // pred_check_branch
          %1692 = sbr.rel (%p1690) target = $region124
        $region123: #{tpu_custom_call.1} parent=91 // pred_region
          %s1694 = ssub.s32 512, 512
          %1695 = vsyncadd %s1673, %s1694
          %s1696 = smul.addr %s41, 4
          %s1697 = smul.addr %s1696, 128
          %s1698 = scalar_lea.hbm %s19, %s1697
          %s1699 = sshll.u32 %s1676, 4
          %s1700 = int_to_ptr.vmem [resolvable:$true] %s1699
          %1705 = dma.vmem_to_hbm [thread:$0]  %s1700, 512, %s1698, %s1673, 128, 128, 8
        $region124: #{tpu_custom_call.1} parent=91 // pred_fallthru
          _
      $region92: #{tpu_custom_call.1} parent=5 // pred_fallthru
        _
      %p1706 = scmp.le.s32.totalorder 2, %s36
      // Predicated region
      $region125: #{tpu_custom_call.1} parent=5 // pred_check
        %p1707 = pneg %p1706
      $region126: #{tpu_custom_call.1} parent=5 // pred_check_branch
        %1709 = sbr.rel (%p1707) target = $region128
      $region127: #{tpu_custom_call.1} parent=5 // pred_region
        %s1710 = ssub.s32 %s36, 2
        // Predicated region
        $region129: #{tpu_custom_call.1} parent=127 // pred_check
          %p1711 = pneg %p453
        $region130: #{tpu_custom_call.1} parent=127 // pred_check_branch
          %1713 = sbr.rel (%p1711) target = $region132
        $region131: #{tpu_custom_call.1} parent=127 // pred_region
          %s1714 = sand.u32 %s438, 1
          %s1715 = scalar_lea.sflag [#allocation5], %s1714
          %s1716 = sand.u32 %s438, 1
          %s1717 = smul.addr %s1716, 8
          %s1718 = scalar_lea.vmem [#allocation14], %s1717
          %1719 = dma.done %s1715, 128
        $region132: #{tpu_custom_call.1} parent=127 // pred_fallthru
          _
        // Predicated region
        $region133: #{tpu_custom_call.1} parent=127 // pred_check
          %p1720 = pneg %p479
        $region134: #{tpu_custom_call.1} parent=127 // pred_check_branch
          %1722 = sbr.rel (%p1720) target = $region136
        $region135: #{tpu_custom_call.1} parent=127 // pred_region
          %s1723 = sand.u32 %s464, 1
          %s1724 = scalar_lea.sflag [#allocation16], %s1723
          %s1725 = sand.u32 %s464, 1
          %s1726 = smul.addr %s1725, 32
          %s1727 = scalar_lea.vmem [#allocation15], %s1726
          %1728 = dma.done %s1724, 512
        $region136: #{tpu_custom_call.1} parent=127 // pred_fallthru
          _
      $region128: #{tpu_custom_call.1} parent=5 // pred_fallthru
        _
    $region6: #{tpu_custom_call.1} parent=1 // loop_footer
      %s40 = sadd.s32 1, %s36
    $region7: #{tpu_custom_call.1} parent=1 // loop_footer_branch
      %35 = sbr.rel target = $region3
    $region8: #{tpu_custom_call.1} parent=1 // loop_exit
      _
    %1729 = vsyncpa [#allocation4], 1
    %s1730 = scalar_lea.sflag [#allocation4], 1
    %1731 = vsyncpa %s1730, 1
    %1732 = vsyncpa [#allocation7], 1
    %1733 = vsyncpa [#allocation10], 1
    %1734 = vsyncpa [#allocation13], 1
    %1735 = vsyncpa [#allocation5], 1
    %s1736 = scalar_lea.sflag [#allocation5], 1
    %1737 = vsyncpa %s1736, 1
    %1738 = vsyncpa [#allocation16], 1
    %s1739 = scalar_lea.sflag [#allocation16], 1
    %1740 = vsyncpa %s1739, 1

</llo_original>
